<compile_context>
chip_gen: v7x
topology: tpu7x:2x2x1
jax: 0.10.0
libtpu: 0.0.40
codegen_flags: <defaults>
</compile_context>

<pallas_src>
import functools
import math

import jax
import jax.numpy as jnp
from jax import lax
from jax.experimental import pallas as pl
from jax.experimental.pallas import tpu as pltpu

LANE = 128


def _round_up(x, m):
    return (x + m - 1) // m * m


def _pad_last_to(x, d_pad):
    d = x.shape[-1]
    if d == d_pad:
        return x
    pad = [(0, 0)] * (x.ndim - 1) + [(0, d_pad - d)]
    return jnp.pad(x, pad)


# ---------------------------------------------------------------------------
# Shared residual + LayerNorm epilogue (f32, two-pass variance, pad-masked)
# ---------------------------------------------------------------------------
def _res_layernorm(z, gamma, beta, *, d_model, inv_d, eps):
    """LayerNorm over the last axis of `z` (zero-padded beyond d_model).

    Uses the two-pass (z - mean) variance; padded columns are masked out of the
    variance sum and come out as 0 because gamma/beta are zero-padded, so the
    "padded feature columns are zero" invariant is preserved across layers.
    """
    d_pad = z.shape[-1]
    mean = jnp.sum(z, axis=-1, keepdims=True) * inv_d
    diff = z - mean
    if d_pad != d_model:
        col = lax.broadcasted_iota(jnp.int32, (1, d_pad), 1)
        diff = jnp.where(col < d_model, diff, 0.0)
    var = jnp.sum(diff * diff, axis=-1, keepdims=True) * inv_d
    return diff * lax.rsqrt(var + eps) * gamma + beta


# ---------------------------------------------------------------------------
# Fused FFN + residual + LayerNorm kernel (optionally fused final projection)
# ---------------------------------------------------------------------------
def _ffn_ln_block(x_ref, w1_ref, b1_ref, w2_ref, b2_ref, g_ref, be_ref, *,
                  d_model, inv_d, eps, compute_dtype):
    x_f32 = x_ref[...].astype(jnp.float32)                # residual, f32
    x_mm = x_ref[...].astype(compute_dtype)               # MXU operand, bf16

    # fc[0]: Linear(d_model -> d_ff) + bias, ReLU  (bf16 operands, f32 accum)
    h = jnp.dot(x_mm, w1_ref[...], preferred_element_type=jnp.float32) + b1_ref[...]
    h = jnp.maximum(h, 0.0)
    # fc[2]: Linear(d_ff -> d_model) + bias
    y = jnp.dot(h.astype(compute_dtype), w2_ref[...],
                preferred_element_type=jnp.float32) + b2_ref[...]

    z = y + x_f32
    return _res_layernorm(z, g_ref[...], be_ref[...],
                          d_model=d_model, inv_d=inv_d, eps=eps)


def _ffn_res_ln_kernel(x_ref, w1_ref, b1_ref, w2_ref, b2_ref, g_ref, be_ref,
                       o_ref, *, d_model, inv_d, eps, compute_dtype):
    o_ref[...] = _ffn_ln_block(
        x_ref, w1_ref, b1_ref, w2_ref, b2_ref, g_ref, be_ref,
        d_model=d_model, inv_d=inv_d, eps=eps,
        compute_dtype=compute_dtype).astype(o_ref.dtype)


def _ffn_res_ln_proj_kernel(x_ref, w1_ref, b1_ref, w2_ref, b2_ref, g_ref,
                            be_ref, wp_ref, o_ref, *, d_model, inv_d, eps,
                            compute_dtype):
    out = _ffn_ln_block(
        x_ref, w1_ref, b1_ref, w2_ref, b2_ref, g_ref, be_ref,
        d_model=d_model, inv_d=inv_d, eps=eps, compute_dtype=compute_dtype)
    # Final Linear(d_model, 1, bias=False): wp is (d_pad, LANE) with only
    # column 0 nonzero -> lane-dense (tm, 128) store; wrapper keeps column 0.
    o_ref[...] = jnp.dot(out, wp_ref[...],
                         preferred_element_type=jnp.float32).astype(o_ref.dtype)


def poswise_ffn_res_ln(x, ffn_p, *, d_model, eps=1e-5, tm=256,
                       compute_dtype=jnp.bfloat16, w_proj=None):
    """x: [B, N, d_pad] (zero-padded features).

    Returns [B, N, d_pad], or the fused final projection [B, N] if `w_proj`
    (pre-padded to (d_pad, LANE)) is provided.
    """
    B, N, d_pad = x.shape
    d_ff = ffn_p["w1"].shape[1]
    M = B * N

    # Large row tile; round down only for tiny problems, pad rows so the grid
    # always divides cleanly (padded rows are sliced away below).
    # (v6e with 128 MiB VMEM can profitably use tm=512; keep 256 for v7x.)
    tm_eff = min(tm, _round_up(M, 8))
    M_pad = _round_up(M, tm_eff)

    x2 = x.reshape(M, d_pad)
    if M_pad != M:
        x2 = jnp.pad(x2, ((0, M_pad - M), (0, 0)))

    kernel_kw = dict(d_model=d_model, inv_d=1.0 / d_model, eps=eps,
                     compute_dtype=compute_dtype)
    grid = (M_pad // tm_eff,)
    row_spec = pl.BlockSpec((tm_eff, d_pad), lambda i: (i, 0))
    # Constant-index (resident) weight specs.  NOTE(perf/v7x): could be
    # single-buffered with pipeline_mode=pl.Buffered(1); omitted for portability.
    w_specs = [
        pl.BlockSpec((d_pad, d_ff), lambda i: (0, 0)),    # W1 (bf16)
        pl.BlockSpec((1, d_ff), lambda i: (0, 0)),        # b1
        pl.BlockSpec((d_ff, d_pad), lambda i: (0, 0)),    # W2 (bf16)
        pl.BlockSpec((1, d_pad), lambda i: (0, 0)),       # b2
        pl.BlockSpec((1, d_pad), lambda i: (0, 0)),       # LN gamma
        pl.BlockSpec((1, d_pad), lambda i: (0, 0)),       # LN beta
    ]
    cparams = pltpu.CompilerParams(dimension_semantics=("parallel",),
                                   vmem_limit_bytes=48 * 1024 * 1024)
    wsize = jnp.dtype(compute_dtype).itemsize
    base_flops = 4 * M_pad * d_pad * d_ff

    if w_proj is None:
        cost = pl.CostEstimate(
            flops=base_flops, transcendentals=M_pad,
            bytes_accessed=2 * M_pad * d_pad * 4 + 2 * d_pad * d_ff * wsize)
        out2 = pl.pallas_call(
            functools.partial(_ffn_res_ln_kernel, **kernel_kw),
            out_shape=jax.ShapeDtypeStruct((M_pad, d_pad), x.dtype),
            grid_spec=pltpu.PrefetchScalarGridSpec(
                num_scalar_prefetch=0, grid=grid,
                in_specs=[row_spec] + w_specs,
                out_specs=row_spec),
            compiler_params=cparams,
            cost_estimate=cost,
        )(x2, ffn_p["w1"], ffn_p["b1"], ffn_p["w2"], ffn_p["b2"],
          ffn_p["gamma"], ffn_p["beta"])
        return out2[:M].reshape(B, N, d_pad)

    # Last layer: fuse the Linear(d_model, 1) projection into the epilogue.
    cost = pl.CostEstimate(
        flops=base_flops + 2 * M_pad * d_pad * LANE, transcendentals=M_pad,
        bytes_accessed=M_pad * d_pad * 4 + M_pad * LANE * 4
        + 2 * d_pad * d_ff * wsize)
    out2 = pl.pallas_call(
        functools.partial(_ffn_res_ln_proj_kernel, **kernel_kw),
        out_shape=jax.ShapeDtypeStruct((M_pad, LANE), x.dtype),
        grid_spec=pltpu.PrefetchScalarGridSpec(
            num_scalar_prefetch=0, grid=grid,
            in_specs=[row_spec] + w_specs
            + [pl.BlockSpec((d_pad, LANE), lambda i: (0, 0))],   # w_proj
            out_specs=pl.BlockSpec((tm_eff, LANE), lambda i: (i, 0))),
        compiler_params=cparams,
        cost_estimate=cost,
    )(x2, ffn_p["w1"], ffn_p["b1"], ffn_p["w2"], ffn_p["b2"],
      ffn_p["gamma"], ffn_p["beta"], w_proj)
    return out2[:M, 0].reshape(B, N)


# ---------------------------------------------------------------------------
# Fused multi-head attention + residual + LayerNorm kernel
#   grid = (batch, query tiles); per-head projections from (H, d_pad, d_k)
#   weights; per-head contexts stacked in VMEM scratch; one fused ctx @ W_O.
# ---------------------------------------------------------------------------
def _mha_res_ln_kernel(xq_ref, xkv_ref, wq_ref, wk_ref, wv_ref, wo_ref,
                       g_ref, be_ref, o_ref, ctx_ref, *,
                       n_heads, d_k, d_v, d_model, inv_d, eps, scale,
                       compute_dtype):
    xq_f32 = xq_ref[0].astype(jnp.float32)             # (tq, d_pad) residual
    xq = xq_ref[0].astype(compute_dtype)               # MXU operands (bf16)
    xkv = xkv_ref[0].astype(compute_dtype)

    for h in range(n_heads):                            # static unroll
        # Per-head projections from pre-reshaped weights: no lane-unaligned
        # column slicing of a fused q/k/v intermediate.
        qh = jnp.dot(xq, wq_ref[h], preferred_element_type=jnp.float32) * scale
        kh = jnp.dot(xkv, wk_ref[h], preferred_element_type=jnp.float32)
        vh = jnp.dot(xkv, wv_ref[h], preferred_element_type=jnp.float32)

        # scores (tq, kv_n), softmax in f32; reciprocal on the EUP slot.
        s = lax.dot_general(qh.astype(compute_dtype), kh.astype(compute_dtype),
                            (((1,), (1,)), ((), ())),
                            preferred_element_type=jnp.float32)
        s = s - jnp.max(s, axis=-1, keepdims=True)
        p = jnp.exp(s)
        p = p * pl.reciprocal(jnp.sum(p, axis=-1, keepdims=True), approx=True)

        ctx_ref[:, h * d_v:(h + 1) * d_v] = jnp.dot(
            p.astype(compute_dtype), vh.astype(compute_dtype),
            preferred_element_type=jnp.float32)

    # One fused (tq, H*d_v) @ (H*d_v, d_pad) matmul instead of H small ones.
    y = jnp.dot(ctx_ref[...].astype(compute_dtype), wo_ref[...],
                preferred_element_type=jnp.float32)
    z = y + xq_f32
    o_ref[0] = _res_layernorm(z, g_ref[...], be_ref[...], d_model=d_model,
                              inv_d=inv_d, eps=eps).astype(o_ref.dtype)


def mha_res_ln(xq, xkv, attn_p, *, d_model, n_heads, d_k, d_v, eps=1e-5,
               tq=256, compute_dtype=jnp.bfloat16):
    """xq: [B, q_n, d_pad], xkv: [B, kv_n, d_pad] -> [B, q_n, d_pad]."""
    B, q_n, d_pad = xq.shape
    kv_n = xkv.shape[1]

    tq_eff = min(tq, _round_up(q_n, 8))
    qn_pad = _round_up(q_n, tq_eff)
    xq_p = xq
    if qn_pad != q_n:
        # Only queries are padded (padded rows sliced away); keys/values stay
        # unpadded so the softmax denominator is never polluted.
        xq_p = jnp.pad(xq, ((0, 0), (0, qn_pad - q_n), (0, 0)))

    kernel = functools.partial(
        _mha_res_ln_kernel, n_heads=n_heads, d_k=d_k, d_v=d_v, d_model=d_model,
        inv_d=1.0 / d_model, eps=eps, scale=1.0 / math.sqrt(d_k),
        compute_dtype=compute_dtype)

    out = pl.pallas_call(
        kernel,
        out_shape=jax.ShapeDtypeStruct((B, qn_pad, d_pad), xq.dtype),
        grid_spec=pltpu.PrefetchScalarGridSpec(
            num_scalar_prefetch=0,
            grid=(B, qn_pad // tq_eff),
            in_specs=[
                pl.BlockSpec((1, tq_eff, d_pad), lambda b, i: (b, i, 0)),   # Q rows
                pl.BlockSpec((1, kv_n, d_pad), lambda b, i: (b, 0, 0)),     # K/V rows
                pl.BlockSpec((n_heads, d_pad, d_k), lambda b, i: (0, 0, 0)),  # W_Q
                pl.BlockSpec((n_heads, d_pad, d_k), lambda b, i: (0, 0, 0)),  # W_K
                pl.BlockSpec((n_heads, d_pad, d_v), lambda b, i: (0, 0, 0)),  # W_V
                pl.BlockSpec((n_heads * d_v, d_pad), lambda b, i: (0, 0)),    # W_O
                pl.BlockSpec((1, d_pad), lambda b, i: (0, 0)),                # gamma
                pl.BlockSpec((1, d_pad), lambda b, i: (0, 0)),                # beta
            ],
            out_specs=pl.BlockSpec((1, tq_eff, d_pad), lambda b, i: (b, i, 0)),
            scratch_shapes=[pltpu.VMEM((tq_eff, n_heads * d_v), jnp.float32)],
        ),
        compiler_params=pltpu.CompilerParams(
            dimension_semantics=("parallel", "parallel"),
            vmem_limit_bytes=48 * 1024 * 1024),
    )(xq_p, xkv, attn_p["wq"], attn_p["wk"], attn_p["wv"], attn_p["wo"],
      attn_p["gamma"], attn_p["beta"])

    return out[:, :q_n] if qn_pad != q_n else out


# ---------------------------------------------------------------------------
# Parameter preparation (done ONCE, outside the jitted forward):
#   * cast weights to bf16
#   * reshape W_Q/W_K/W_V to (H, d_pad, d_head)
#   * zero-pad d_model to a multiple of 128 everywhere (gamma/beta/bias padded
#     with zeros so padded feature columns stay exactly zero)
#   * build w_proj as (d_pad, LANE) with the real vector in column 0
# ---------------------------------------------------------------------------
def prepare_decoder_params(params, *, d_model, n_heads, d_k, d_v,
                           compute_dtype=jnp.bfloat16):
    d_pad = _round_up(d_model, LANE)
    pad_d = d_pad - d_model

    def prep_attn(p):
        def head_split(w, dh):           # (d_model, H*dh) -> (H, d_pad, dh)
            w = w.reshape(d_model, n_heads, dh).transpose(1, 0, 2)
            w = jnp.pad(w, ((0, 0), (0, pad_d), (0, 0)))
            return w.astype(compute_dtype)
        return dict(
            wq=head_split(p["wq"], d_k),
            wk=head_split(p["wk"], d_k),
            wv=head_split(p["wv"], d_v),
            wo=jnp.pad(p["wo"], ((0, 0), (0, pad_d))).astype(compute_dtype),
            gamma=jnp.pad(p["gamma"], (0, pad_d)).reshape(1, d_pad).astype(jnp.float32),
            beta=jnp.pad(p["beta"], (0, pad_d)).reshape(1, d_pad).astype(jnp.float32),
        )

    def prep_ffn(p):
        d_ff = p["w1"].shape[1]
        return dict(
            w1=jnp.pad(p["w1"], ((0, pad_d), (0, 0))).astype(compute_dtype),
            b1=p["b1"].reshape(1, d_ff).astype(jnp.float32),
            w2=jnp.pad(p["w2"], ((0, 0), (0, pad_d))).astype(compute_dtype),
            b2=jnp.pad(p["b2"], (0, pad_d)).reshape(1, d_pad).astype(jnp.float32),
            gamma=jnp.pad(p["gamma"], (0, pad_d)).reshape(1, d_pad).astype(jnp.float32),
            beta=jnp.pad(p["beta"], (0, pad_d)).reshape(1, d_pad).astype(jnp.float32),
        )

    layers = [dict(self_attn=prep_attn(l["self_attn"]),
                   enc_attn=prep_attn(l["enc_attn"]),
                   ffn=prep_ffn(l["ffn"])) for l in params["layers"]]
    w_proj = jnp.zeros((d_pad, LANE), jnp.float32).at[:d_model, 0].set(params["w_proj"])
    return dict(layers=layers, w_proj=w_proj)


# ---------------------------------------------------------------------------
# Full Decoder forward (operates in the 128-padded feature space throughout;
# final projection is fused into the last layer's FFN kernel).
# ---------------------------------------------------------------------------
def decoder_forward(prepared, inputs_decoder, outputs_encoder, *,
                    d_model, n_heads, d_k, d_v, compute_dtype=jnp.bfloat16):
    d_pad = _round_up(d_model, LANE)
    out = _pad_last_to(inputs_decoder, d_pad)
    enc = _pad_last_to(outputs_encoder, d_pad)
    n_layers = len(prepared["layers"])
    for li, layer in enumerate(prepared["layers"]):
        out = mha_res_ln(out, out, layer["self_attn"], d_model=d_model,
                         n_heads=n_heads, d_k=d_k, d_v=d_v,
                         compute_dtype=compute_dtype)
        out = mha_res_ln(out, enc, layer["enc_attn"], d_model=d_model,
                         n_heads=n_heads, d_k=d_k, d_v=d_v,
                         compute_dtype=compute_dtype)
        w_proj = prepared["w_proj"] if li == n_layers - 1 else None
        out = poswise_ffn_res_ln(out, layer["ffn"], d_model=d_model,
                                 compute_dtype=compute_dtype, w_proj=w_proj)
    return out                                          # [B, N]


def init_decoder_params(key, d_model, n_heads, d_k, d_v, d_ff, n_layers):
    def lin(k, fan_in, shape):
        bound = 1.0 / math.sqrt(fan_in)
        return jax.random.uniform(k, shape, jnp.float32, -bound, bound)

    layer_keys = jax.random.split(key, n_layers + 1)
    layers = []
    for li in range(n_layers):
        ks = iter(jax.random.split(layer_keys[li], 18))

        def attn_params():
            return dict(
                wq=lin(next(ks), d_model, (d_model, n_heads * d_k)),
                wk=lin(next(ks), d_model, (d_model, n_heads * d_k)),
                wv=lin(next(ks), d_model, (d_model, n_heads * d_v)),
                wo=lin(next(ks), n_heads * d_v, (n_heads * d_v, d_model)),
                gamma=1.0 + 0.05 * jax.random.normal(next(ks), (d_model,), jnp.float32),
                beta=0.05 * jax.random.normal(next(ks), (d_model,), jnp.float32),
            )

        layer = dict(self_attn=attn_params(), enc_attn=attn_params())
        layer["ffn"] = dict(
            w1=lin(next(ks), d_model, (d_model, d_ff)),
            b1=lin(next(ks), d_model, (d_ff,)),
            w2=lin(next(ks), d_ff, (d_ff, d_model)),
            b2=lin(next(ks), d_ff, (d_model,)),
            gamma=1.0 + 0.05 * jax.random.normal(next(ks), (d_model,), jnp.float32),
            beta=0.05 * jax.random.normal(next(ks), (d_model,), jnp.float32),
        )
        layers.append(layer)
    return dict(layers=layers, w_proj=lin(layer_keys[-1], d_model, (d_model,)))


# ---------------------------------------------------------------------------
# Pure-JAX reference (mirrors the bf16 MXU-operand rounding of the kernels)
# ---------------------------------------------------------------------------
def _ref_mha_res_ln(xq, xkv, p, *, n_heads, d_k, d_v, eps=1e-5, cd=jnp.bfloat16):
    def mm(a, b):
        return jnp.dot(a.astype(cd), b.astype(cd),
                       preferred_element_type=jnp.float32)
    B, q_n, d_model = xq.shape
    kv_n = xkv.shape[1]
    q = (mm(xq, p["wq"]) * (1.0 / math.sqrt(d_k))
         ).reshape(B, q_n, n_heads, d_k).transpose(0, 2, 1, 3)
    k = mm(xkv, p["wk"]).reshape(B, kv_n, n_heads, d_k).transpose(0, 2, 1, 3)
    v = mm(xkv, p["wv"]).reshape(B, kv_n, n_heads, d_v).transpose(0, 2, 1, 3)
    s = jnp.einsum("bhqd,bhkd->bhqk", q.astype(cd), k.astype(cd),
                   preferred_element_type=jnp.float32)
    attn = jax.nn.softmax(s, axis=-1)
    ctx = jnp.einsum("bhqk,bhkd->bhqd", attn.astype(cd), v.astype(cd),
                     preferred_element_type=jnp.float32)
    ctx = ctx.transpose(0, 2, 1, 3).reshape(B, q_n, n_heads * d_v)
    z = mm(ctx, p["wo"]) + xq.astype(jnp.float32)
    mean = jnp.mean(z, axis=-1, keepdims=True)
    var = jnp.mean((z - mean) ** 2, axis=-1, keepdims=True)
    return (((z - mean) / jnp.sqrt(var + eps)) * p["gamma"] + p["beta"]).astype(xq.dtype)


def _ref_ffn_res_ln(x, p, *, eps=1e-5, cd=jnp.bfloat16):
    def mm(a, b):
        return jnp.dot(a.astype(cd), b.astype(cd),
                       preferred_element_type=jnp.float32)
    h = jnp.maximum(mm(x, p["w1"]) + p["b1"], 0.0)
    z = mm(h, p["w2"]) + p["b2"] + x.astype(jnp.float32)
    mean = jnp.mean(z, axis=-1, keepdims=True)
    var = jnp.mean((z - mean) ** 2, axis=-1, keepdims=True)
    return (((z - mean) / jnp.sqrt(var + eps)) * p["gamma"] + p["beta"]).astype(x.dtype)


def _ref_decoder(params, xd, xe, *, n_heads, d_k, d_v, cd=jnp.bfloat16):
    out = xd
    for layer in params["layers"]:
        out = _ref_mha_res_ln(out, out, layer["self_attn"],
                              n_heads=n_heads, d_k=d_k, d_v=d_v, cd=cd)
        out = _ref_mha_res_ln(out, xe, layer["enc_attn"],
                              n_heads=n_heads, d_k=d_k, d_v=d_v, cd=cd)
        out = _ref_ffn_res_ln(out, layer["ffn"], cd=cd)
    B, N, d_model = out.shape
    return (out.astype(jnp.float32) @ params["w_proj"].reshape(d_model, 1)
            ).reshape(B, N).astype(xd.dtype)


if __name__ == "__main__":
    key = jax.random.PRNGKey(0)
    B, N = 2, 8
    d_model, n_heads, d_k, d_v, d_ff, n_layers = 32, 4, 8, 8, 64, 2

    kp, kx, ke = jax.random.split(key, 3)
    params = init_decoder_params(kp, d_model, n_heads, d_k, d_v, d_ff, n_layers)
    inputs_decoder = jax.random.normal(kx, (B, N, d_model), dtype=jnp.float32)
    outputs_encoder = jax.random.normal(ke, (B, N + 1, d_model), dtype=jnp.float32)

    # Weights are cast/reshaped/padded exactly once, outside the jitted forward.
    prepared = jax.tree_util.tree_map(
        lambda a: a, prepare_decoder_params(params, d_model=d_model,
                                            n_heads=n_heads, d_k=d_k, d_v=d_v))

    run = jax.jit(functools.partial(decoder_forward, d_model=d_model,
                                    n_heads=n_heads, d_k=d_k, d_v=d_v))
    out = jax.block_until_ready(run(prepared, inputs_decoder, outputs_encoder))

    ref = _ref_decoder(params, inputs_decoder, outputs_encoder,
                       n_heads=n_heads, d_k=d_k, d_v=d_v)
    assert out.shape == (B, N), out.shape
    max_err = float(jnp.max(jnp.abs(out - ref)))
    assert jnp.allclose(out, ref, atol=1e-2, rtol=1e-2), (
        f"mismatch vs reference, max abs err = {max_err}")

    print("KERNEL_OK")
</pallas_src>

<mosaic_0001>
module attributes {stable_mosaic.version = 11 : i64} {
  func.func @_mha_res_ln_kernel(%arg0: i32, %arg1: i32, %arg2: memref<1x8x128xf32, #tpu.memory_space<vmem>>, %arg3: memref<1x9x128xf32, #tpu.memory_space<vmem>>, %arg4: memref<4x128x8xbf16, #tpu.memory_space<vmem>>, %arg5: memref<4x128x8xbf16, #tpu.memory_space<vmem>>, %arg6: memref<4x128x8xbf16, #tpu.memory_space<vmem>>, %arg7: memref<32x128xbf16, #tpu.memory_space<vmem>>, %arg8: memref<1x128xf32, #tpu.memory_space<vmem>>, %arg9: memref<1x128xf32, #tpu.memory_space<vmem>>, %arg10: memref<1x8x128xf32, #tpu.memory_space<vmem>>, %arg11: memref<8x32xf32, #tpu.memory_space<vmem>>) attributes {dimension_semantics = [#tpu.dimension_semantics<parallel>, #tpu.dimension_semantics<parallel>], iteration_bounds = array<i64: 2, 1>, scalar_prefetch = 0 : i64, scratch_operands = 1 : i64, tpu.core_type = #tpu.core_type<tc>, window_params = [{transform_indices = @transform_0, window_bounds = array<i64: 1, 8, 128>}, {transform_indices = @transform_1, window_bounds = array<i64: 1, 9, 128>}, {pipeline_mode = #tpu.pipeline_mode<synchronous>, transform_indices = @transform_2, window_bounds = array<i64: 4, 128, 8>}, {pipeline_mode = #tpu.pipeline_mode<synchronous>, transform_indices = @transform_3, window_bounds = array<i64: 4, 128, 8>}, {pipeline_mode = #tpu.pipeline_mode<synchronous>, transform_indices = @transform_4, window_bounds = array<i64: 4, 128, 8>}, {pipeline_mode = #tpu.pipeline_mode<synchronous>, transform_indices = @transform_5, window_bounds = array<i64: 32, 128>}, {pipeline_mode = #tpu.pipeline_mode<synchronous>, transform_indices = @transform_6, window_bounds = array<i64: 1, 128>}, {pipeline_mode = #tpu.pipeline_mode<synchronous>, transform_indices = @transform_7, window_bounds = array<i64: 1, 128>}, {transform_indices = @transform_8, window_bounds = array<i64: 1, 8, 128>}]} {
    %c0 = arith.constant 0 : index
    %c0_0 = arith.constant 0 : index
    %c0_1 = arith.constant 0 : index
    %0 = vector.load %arg2[%c0, %c0_0, %c0_1] : memref<1x8x128xf32, #tpu.memory_space<vmem>>, vector<1x8x128xf32>
    %1 = vector.shape_cast %0 : vector<1x8x128xf32> to vector<8x128xf32>
    %c0_2 = arith.constant 0 : index
    %c0_3 = arith.constant 0 : index
    %c0_4 = arith.constant 0 : index
    %2 = vector.load %arg2[%c0_2, %c0_3, %c0_4] : memref<1x8x128xf32, #tpu.memory_space<vmem>>, vector<1x8x128xf32>
    %3 = vector.shape_cast %2 : vector<1x8x128xf32> to vector<8x128xf32>
    %4 = arith.truncf %3 : vector<8x128xf32> to vector<8x128xbf16>
    %c0_5 = arith.constant 0 : index
    %c0_6 = arith.constant 0 : index
    %c0_7 = arith.constant 0 : index
    %5 = vector.load %arg3[%c0_5, %c0_6, %c0_7] : memref<1x9x128xf32, #tpu.memory_space<vmem>>, vector<1x9x128xf32>
    %6 = vector.shape_cast %5 : vector<1x9x128xf32> to vector<9x128xf32>
    %7 = arith.truncf %6 : vector<9x128xf32> to vector<9x128xbf16>
    %c0_8 = arith.constant 0 : index
    %c0_9 = arith.constant 0 : index
    %c0_10 = arith.constant 0 : index
    %8 = vector.load %arg4[%c0_8, %c0_9, %c0_10] : memref<4x128x8xbf16, #tpu.memory_space<vmem>>, vector<1x128x8xbf16>
    %9 = vector.shape_cast %8 : vector<1x128x8xbf16> to vector<128x8xbf16>
    %cst = arith.constant dense<0.000000e+00> : vector<8x8xf32>
    %10 = tpu.matmul %4, %9, %cst {dimension_numbers = #tpu.dot_dimension_numbers<[1], [0], [0], [1], [0, 0, 1, 1], [], []>} : vector<8x128xbf16>, vector<128x8xbf16>, vector<8x8xf32> -> vector<8x8xf32>
    %cst_11 = arith.constant 0.353553385 : f32
    %11 = vector.broadcast %cst_11 : f32 to vector<8x8xf32>
    %12 = arith.mulf %10, %11 : vector<8x8xf32>
    %c0_12 = arith.constant 0 : index
    %c0_13 = arith.constant 0 : index
    %c0_14 = arith.constant 0 : index
    %13 = vector.load %arg5[%c0_12, %c0_13, %c0_14] : memref<4x128x8xbf16, #tpu.memory_space<vmem>>, vector<1x128x8xbf16>
    %14 = vector.shape_cast %13 : vector<1x128x8xbf16> to vector<128x8xbf16>
    %cst_15 = arith.constant dense<0.000000e+00> : vector<9x8xf32>
    %15 = tpu.matmul %7, %14, %cst_15 {dimension_numbers = #tpu.dot_dimension_numbers<[1], [0], [0], [1], [0, 0, 1, 1], [], []>} : vector<9x128xbf16>, vector<128x8xbf16>, vector<9x8xf32> -> vector<9x8xf32>
    %c0_16 = arith.constant 0 : index
    %c0_17 = arith.constant 0 : index
    %c0_18 = arith.constant 0 : index
    %16 = vector.load %arg6[%c0_16, %c0_17, %c0_18] : memref<4x128x8xbf16, #tpu.memory_space<vmem>>, vector<1x128x8xbf16>
    %17 = vector.shape_cast %16 : vector<1x128x8xbf16> to vector<128x8xbf16>
    %cst_19 = arith.constant dense<0.000000e+00> : vector<9x8xf32>
    %18 = tpu.matmul %7, %17, %cst_19 {dimension_numbers = #tpu.dot_dimension_numbers<[1], [0], [0], [1], [0, 0, 1, 1], [], []>} : vector<9x128xbf16>, vector<128x8xbf16>, vector<9x8xf32> -> vector<9x8xf32>
    %19 = arith.truncf %12 : vector<8x8xf32> to vector<8x8xbf16>
    %20 = arith.truncf %15 : vector<9x8xf32> to vector<9x8xbf16>
    %cst_20 = arith.constant dense<0.000000e+00> : vector<8x9xf32>
    %21 = tpu.matmul %19, %20, %cst_20 {dimension_numbers = #tpu.dot_dimension_numbers<[1], [1], [0], [0], [0, 0, 1, 0], [], []>} : vector<8x8xbf16>, vector<9x8xbf16>, vector<8x9xf32> -> vector<8x9xf32>
    %cst_21 = arith.constant dense<0xFF800000> : vector<8xf32>
    %22 = vector.multi_reduction <maximumf>, %21, %cst_21 [1] : vector<8x9xf32> to vector<8xf32>
    %23 = vector.shape_cast %22 : vector<8xf32> to vector<8x1xf32>
    %24 = vector.broadcast %23 : vector<8x1xf32> to vector<8x9xf32>
    %25 = arith.subf %21, %24 : vector<8x9xf32>
    %26 = math.exp %25 : vector<8x9xf32>
    %cst_22 = arith.constant dense<0.000000e+00> : vector<8xf32>
    %27 = vector.multi_reduction <add>, %26, %cst_22 [1] : vector<8x9xf32> to vector<8xf32>
    %28 = vector.shape_cast %27 : vector<8xf32> to vector<8x1xf32>
    %29 = tpu.reciprocal %28 {approx = true} : vector<8x1xf32> -> vector<8x1xf32>
    %30 = vector.broadcast %29 : vector<8x1xf32> to vector<8x9xf32>
    %31 = arith.mulf %26, %30 : vector<8x9xf32>
    %32 = arith.truncf %31 : vector<8x9xf32> to vector<8x9xbf16>
    %33 = arith.truncf %18 : vector<9x8xf32> to vector<9x8xbf16>
    %cst_23 = arith.constant dense<0.000000e+00> : vector<8x8xf32>
    %34 = tpu.matmul %32, %33, %cst_23 {dimension_numbers = #tpu.dot_dimension_numbers<[1], [0], [0], [1], [0, 0, 1, 1], [], []>} : vector<8x9xbf16>, vector<9x8xbf16>, vector<8x8xf32> -> vector<8x8xf32>
    %c0_24 = arith.constant 0 : index
    %c0_25 = arith.constant 0 : index
    %35 = vector.load %arg11[%c0_24, %c0_25] : memref<8x32xf32, #tpu.memory_space<vmem>>, vector<8x8xf32>
    tpu.vector_store %arg11[%c0_24, %c0_25], %34 {strides = array<i32>} : memref<8x32xf32, #tpu.memory_space<vmem>>, vector<8x8xf32>,
    %c1 = arith.constant 1 : index
    %c0_26 = arith.constant 0 : index
    %c0_27 = arith.constant 0 : index
    %36 = vector.load %arg4[%c1, %c0_26, %c0_27] : memref<4x128x8xbf16, #tpu.memory_space<vmem>>, vector<1x128x8xbf16>
    %37 = vector.shape_cast %36 : vector<1x128x8xbf16> to vector<128x8xbf16>
    %cst_28 = arith.constant dense<0.000000e+00> : vector<8x8xf32>
    %38 = tpu.matmul %4, %37, %cst_28 {dimension_numbers = #tpu.dot_dimension_numbers<[1], [0], [0], [1], [0, 0, 1, 1], [], []>} : vector<8x128xbf16>, vector<128x8xbf16>, vector<8x8xf32> -> vector<8x8xf32>
    %cst_29 = arith.constant 0.353553385 : f32
    %39 = vector.broadcast %cst_29 : f32 to vector<8x8xf32>
    %40 = arith.mulf %38, %39 : vector<8x8xf32>
    %c1_30 = arith.constant 1 : index
    %c0_31 = arith.constant 0 : index
    %c0_32 = arith.constant 0 : index
    %41 = vector.load %arg5[%c1_30, %c0_31, %c0_32] : memref<4x128x8xbf16, #tpu.memory_space<vmem>>, vector<1x128x8xbf16>
    %42 = vector.shape_cast %41 : vector<1x128x8xbf16> to vector<128x8xbf16>
    %cst_33 = arith.constant dense<0.000000e+00> : vector<9x8xf32>
    %43 = tpu.matmul %7, %42, %cst_33 {dimension_numbers = #tpu.dot_dimension_numbers<[1], [0], [0], [1], [0, 0, 1, 1], [], []>} : vector<9x128xbf16>, vector<128x8xbf16>, vector<9x8xf32> -> vector<9x8xf32>
    %c1_34 = arith.constant 1 : index
    %c0_35 = arith.constant 0 : index
    %c0_36 = arith.constant 0 : index
    %44 = vector.load %arg6[%c1_34, %c0_35, %c0_36] : memref<4x128x8xbf16, #tpu.memory_space<vmem>>, vector<1x128x8xbf16>
    %45 = vector.shape_cast %44 : vector<1x128x8xbf16> to vector<128x8xbf16>
    %cst_37 = arith.constant dense<0.000000e+00> : vector<9x8xf32>
    %46 = tpu.matmul %7, %45, %cst_37 {dimension_numbers = #tpu.dot_dimension_numbers<[1], [0], [0], [1], [0, 0, 1, 1], [], []>} : vector<9x128xbf16>, vector<128x8xbf16>, vector<9x8xf32> -> vector<9x8xf32>
    %47 = arith.truncf %40 : vector<8x8xf32> to vector<8x8xbf16>
    %48 = arith.truncf %43 : vector<9x8xf32> to vector<9x8xbf16>
    %cst_38 = arith.constant dense<0.000000e+00> : vector<8x9xf32>
    %49 = tpu.matmul %47, %48, %cst_38 {dimension_numbers = #tpu.dot_dimension_numbers<[1], [1], [0], [0], [0, 0, 1, 0], [], []>} : vector<8x8xbf16>, vector<9x8xbf16>, vector<8x9xf32> -> vector<8x9xf32>
    %cst_39 = arith.constant dense<0xFF800000> : vector<8xf32>
    %50 = vector.multi_reduction <maximumf>, %49, %cst_39 [1] : vector<8x9xf32> to vector<8xf32>
    %51 = vector.shape_cast %50 : vector<8xf32> to vector<8x1xf32>
    %52 = vector.broadcast %51 : vector<8x1xf32> to vector<8x9xf32>
    %53 = arith.subf %49, %52 : vector<8x9xf32>
    %54 = math.exp %53 : vector<8x9xf32>
    %cst_40 = arith.constant dense<0.000000e+00> : vector<8xf32>
    %55 = vector.multi_reduction <add>, %54, %cst_40 [1] : vector<8x9xf32> to vector<8xf32>
    %56 = vector.shape_cast %55 : vector<8xf32> to vector<8x1xf32>
    %57 = tpu.reciprocal %56 {approx = true} : vector<8x1xf32> -> vector<8x1xf32>
    %58 = vector.broadcast %57 : vector<8x1xf32> to vector<8x9xf32>
    %59 = arith.mulf %54, %58 : vector<8x9xf32>
    %60 = arith.truncf %59 : vector<8x9xf32> to vector<8x9xbf16>
    %61 = arith.truncf %46 : vector<9x8xf32> to vector<9x8xbf16>
    %cst_41 = arith.constant dense<0.000000e+00> : vector<8x8xf32>
    %62 = tpu.matmul %60, %61, %cst_41 {dimension_numbers = #tpu.dot_dimension_numbers<[1], [0], [0], [1], [0, 0, 1, 1], [], []>} : vector<8x9xbf16>, vector<9x8xbf16>, vector<8x8xf32> -> vector<8x8xf32>
    %c0_42 = arith.constant 0 : index
    %c8 = arith.constant 8 : index
    %63 = vector.load %arg11[%c0_42, %c8] : memref<8x32xf32, #tpu.memory_space<vmem>>, vector<8x8xf32>
    tpu.vector_store %arg11[%c0_42, %c8], %62 {strides = array<i32>} : memref<8x32xf32, #tpu.memory_space<vmem>>, vector<8x8xf32>,
    %c2 = arith.constant 2 : index
    %c0_43 = arith.constant 0 : index
    %c0_44 = arith.constant 0 : index
    %64 = vector.load %arg4[%c2, %c0_43, %c0_44] : memref<4x128x8xbf16, #tpu.memory_space<vmem>>, vector<1x128x8xbf16>
    %65 = vector.shape_cast %64 : vector<1x128x8xbf16> to vector<128x8xbf16>
    %cst_45 = arith.constant dense<0.000000e+00> : vector<8x8xf32>
    %66 = tpu.matmul %4, %65, %cst_45 {dimension_numbers = #tpu.dot_dimension_numbers<[1], [0], [0], [1], [0, 0, 1, 1], [], []>} : vector<8x128xbf16>, vector<128x8xbf16>, vector<8x8xf32> -> vector<8x8xf32>
    %cst_46 = arith.constant 0.353553385 : f32
    %67 = vector.broadcast %cst_46 : f32 to vector<8x8xf32>
    %68 = arith.mulf %66, %67 : vector<8x8xf32>
    %c2_47 = arith.constant 2 : index
    %c0_48 = arith.constant 0 : index
    %c0_49 = arith.constant 0 : index
    %69 = vector.load %arg5[%c2_47, %c0_48, %c0_49] : memref<4x128x8xbf16, #tpu.memory_space<vmem>>, vector<1x128x8xbf16>
    %70 = vector.shape_cast %69 : vector<1x128x8xbf16> to vector<128x8xbf16>
    %cst_50 = arith.constant dense<0.000000e+00> : vector<9x8xf32>
    %71 = tpu.matmul %7, %70, %cst_50 {dimension_numbers = #tpu.dot_dimension_numbers<[1], [0], [0], [1], [0, 0, 1, 1], [], []>} : vector<9x128xbf16>, vector<128x8xbf16>, vector<9x8xf32> -> vector<9x8xf32>
    %c2_51 = arith.constant 2 : index
    %c0_52 = arith.constant 0 : index
    %c0_53 = arith.constant 0 : index
    %72 = vector.load %arg6[%c2_51, %c0_52, %c0_53] : memref<4x128x8xbf16, #tpu.memory_space<vmem>>, vector<1x128x8xbf16>
    %73 = vector.shape_cast %72 : vector<1x128x8xbf16> to vector<128x8xbf16>
    %cst_54 = arith.constant dense<0.000000e+00> : vector<9x8xf32>
    %74 = tpu.matmul %7, %73, %cst_54 {dimension_numbers = #tpu.dot_dimension_numbers<[1], [0], [0], [1], [0, 0, 1, 1], [], []>} : vector<9x128xbf16>, vector<128x8xbf16>, vector<9x8xf32> -> vector<9x8xf32>
    %75 = arith.truncf %68 : vector<8x8xf32> to vector<8x8xbf16>
    %76 = arith.truncf %71 : vector<9x8xf32> to vector<9x8xbf16>
    %cst_55 = arith.constant dense<0.000000e+00> : vector<8x9xf32>
    %77 = tpu.matmul %75, %76, %cst_55 {dimension_numbers = #tpu.dot_dimension_numbers<[1], [1], [0], [0], [0, 0, 1, 0], [], []>} : vector<8x8xbf16>, vector<9x8xbf16>, vector<8x9xf32> -> vector<8x9xf32>
    %cst_56 = arith.constant dense<0xFF800000> : vector<8xf32>
    %78 = vector.multi_reduction <maximumf>, %77, %cst_56 [1] : vector<8x9xf32> to vector<8xf32>
    %79 = vector.shape_cast %78 : vector<8xf32> to vector<8x1xf32>
    %80 = vector.broadcast %79 : vector<8x1xf32> to vector<8x9xf32>
    %81 = arith.subf %77, %80 : vector<8x9xf32>
    %82 = math.exp %81 : vector<8x9xf32>
    %cst_57 = arith.constant dense<0.000000e+00> : vector<8xf32>
    %83 = vector.multi_reduction <add>, %82, %cst_57 [1] : vector<8x9xf32> to vector<8xf32>
    %84 = vector.shape_cast %83 : vector<8xf32> to vector<8x1xf32>
    %85 = tpu.reciprocal %84 {approx = true} : vector<8x1xf32> -> vector<8x1xf32>
    %86 = vector.broadcast %85 : vector<8x1xf32> to vector<8x9xf32>
    %87 = arith.mulf %82, %86 : vector<8x9xf32>
    %88 = arith.truncf %87 : vector<8x9xf32> to vector<8x9xbf16>
    %89 = arith.truncf %74 : vector<9x8xf32> to vector<9x8xbf16>
    %cst_58 = arith.constant dense<0.000000e+00> : vector<8x8xf32>
    %90 = tpu.matmul %88, %89, %cst_58 {dimension_numbers = #tpu.dot_dimension_numbers<[1], [0], [0], [1], [0, 0, 1, 1], [], []>} : vector<8x9xbf16>, vector<9x8xbf16>, vector<8x8xf32> -> vector<8x8xf32>
    %c0_59 = arith.constant 0 : index
    %c16 = arith.constant 16 : index
    %91 = vector.load %arg11[%c0_59, %c16] : memref<8x32xf32, #tpu.memory_space<vmem>>, vector<8x8xf32>
    tpu.vector_store %arg11[%c0_59, %c16], %90 {strides = array<i32>} : memref<8x32xf32, #tpu.memory_space<vmem>>, vector<8x8xf32>,
    %c3 = arith.constant 3 : index
    %c0_60 = arith.constant 0 : index
    %c0_61 = arith.constant 0 : index
    %92 = vector.load %arg4[%c3, %c0_60, %c0_61] : memref<4x128x8xbf16, #tpu.memory_space<vmem>>, vector<1x128x8xbf16>
    %93 = vector.shape_cast %92 : vector<1x128x8xbf16> to vector<128x8xbf16>
    %cst_62 = arith.constant dense<0.000000e+00> : vector<8x8xf32>
    %94 = tpu.matmul %4, %93, %cst_62 {dimension_numbers = #tpu.dot_dimension_numbers<[1], [0], [0], [1], [0, 0, 1, 1], [], []>} : vector<8x128xbf16>, vector<128x8xbf16>, vector<8x8xf32> -> vector<8x8xf32>
    %cst_63 = arith.constant 0.353553385 : f32
    %95 = vector.broadcast %cst_63 : f32 to vector<8x8xf32>
    %96 = arith.mulf %94, %95 : vector<8x8xf32>
    %c3_64 = arith.constant 3 : index
    %c0_65 = arith.constant 0 : index
    %c0_66 = arith.constant 0 : index
    %97 = vector.load %arg5[%c3_64, %c0_65, %c0_66] : memref<4x128x8xbf16, #tpu.memory_space<vmem>>, vector<1x128x8xbf16>
    %98 = vector.shape_cast %97 : vector<1x128x8xbf16> to vector<128x8xbf16>
    %cst_67 = arith.constant dense<0.000000e+00> : vector<9x8xf32>
    %99 = tpu.matmul %7, %98, %cst_67 {dimension_numbers = #tpu.dot_dimension_numbers<[1], [0], [0], [1], [0, 0, 1, 1], [], []>} : vector<9x128xbf16>, vector<128x8xbf16>, vector<9x8xf32> -> vector<9x8xf32>
    %c3_68 = arith.constant 3 : index
    %c0_69 = arith.constant 0 : index
    %c0_70 = arith.constant 0 : index
    %100 = vector.load %arg6[%c3_68, %c0_69, %c0_70] : memref<4x128x8xbf16, #tpu.memory_space<vmem>>, vector<1x128x8xbf16>
    %101 = vector.shape_cast %100 : vector<1x128x8xbf16> to vector<128x8xbf16>
    %cst_71 = arith.constant dense<0.000000e+00> : vector<9x8xf32>
    %102 = tpu.matmul %7, %101, %cst_71 {dimension_numbers = #tpu.dot_dimension_numbers<[1], [0], [0], [1], [0, 0, 1, 1], [], []>} : vector<9x128xbf16>, vector<128x8xbf16>, vector<9x8xf32> -> vector<9x8xf32>
    %103 = arith.truncf %96 : vector<8x8xf32> to vector<8x8xbf16>
    %104 = arith.truncf %99 : vector<9x8xf32> to vector<9x8xbf16>
    %cst_72 = arith.constant dense<0.000000e+00> : vector<8x9xf32>
    %105 = tpu.matmul %103, %104, %cst_72 {dimension_numbers = #tpu.dot_dimension_numbers<[1], [1], [0], [0], [0, 0, 1, 0], [], []>} : vector<8x8xbf16>, vector<9x8xbf16>, vector<8x9xf32> -> vector<8x9xf32>
    %cst_73 = arith.constant dense<0xFF800000> : vector<8xf32>
    %106 = vector.multi_reduction <maximumf>, %105, %cst_73 [1] : vector<8x9xf32> to vector<8xf32>
    %107 = vector.shape_cast %106 : vector<8xf32> to vector<8x1xf32>
    %108 = vector.broadcast %107 : vector<8x1xf32> to vector<8x9xf32>
    %109 = arith.subf %105, %108 : vector<8x9xf32>
    %110 = math.exp %109 : vector<8x9xf32>
    %cst_74 = arith.constant dense<0.000000e+00> : vector<8xf32>
    %111 = vector.multi_reduction <add>, %110, %cst_74 [1] : vector<8x9xf32> to vector<8xf32>
    %112 = vector.shape_cast %111 : vector<8xf32> to vector<8x1xf32>
    %113 = tpu.reciprocal %112 {approx = true} : vector<8x1xf32> -> vector<8x1xf32>
    %114 = vector.broadcast %113 : vector<8x1xf32> to vector<8x9xf32>
    %115 = arith.mulf %110, %114 : vector<8x9xf32>
    %116 = arith.truncf %115 : vector<8x9xf32> to vector<8x9xbf16>
    %117 = arith.truncf %102 : vector<9x8xf32> to vector<9x8xbf16>
    %cst_75 = arith.constant dense<0.000000e+00> : vector<8x8xf32>
    %118 = tpu.matmul %116, %117, %cst_75 {dimension_numbers = #tpu.dot_dimension_numbers<[1], [0], [0], [1], [0, 0, 1, 1], [], []>} : vector<8x9xbf16>, vector<9x8xbf16>, vector<8x8xf32> -> vector<8x8xf32>
    %c0_76 = arith.constant 0 : index
    %c24 = arith.constant 24 : index
    %119 = vector.load %arg11[%c0_76, %c24] : memref<8x32xf32, #tpu.memory_space<vmem>>, vector<8x8xf32>
    tpu.vector_store %arg11[%c0_76, %c24], %118 {strides = array<i32>} : memref<8x32xf32, #tpu.memory_space<vmem>>, vector<8x8xf32>,
    %c0_77 = arith.constant 0 : index
    %c0_78 = arith.constant 0 : index
    %120 = vector.load %arg11[%c0_77, %c0_78] : memref<8x32xf32, #tpu.memory_space<vmem>>, vector<8x32xf32>
    %121 = arith.truncf %120 : vector<8x32xf32> to vector<8x32xbf16>
    %c0_79 = arith.constant 0 : index
    %c0_80 = arith.constant 0 : index
    %122 = vector.load %arg7[%c0_79, %c0_80] : memref<32x128xbf16, #tpu.memory_space<vmem>>, vector<32x128xbf16>
    %cst_81 = arith.constant dense<0.000000e+00> : vector<8x128xf32>
    %123 = tpu.matmul %121, %122, %cst_81 {dimension_numbers = #tpu.dot_dimension_numbers<[1], [0], [0], [1], [0, 0, 1, 1], [], []>} : vector<8x32xbf16>, vector<32x128xbf16>, vector<8x128xf32> -> vector<8x128xf32>
    %124 = arith.addf %123, %1 : vector<8x128xf32>
    %c0_82 = arith.constant 0 : index
    %c0_83 = arith.constant 0 : index
    %125 = vector.load %arg8[%c0_82, %c0_83] : memref<1x128xf32, #tpu.memory_space<vmem>>, vector<1x128xf32>
    %c0_84 = arith.constant 0 : index
    %c0_85 = arith.constant 0 : index
    %126 = vector.load %arg9[%c0_84, %c0_85] : memref<1x128xf32, #tpu.memory_space<vmem>>, vector<1x128xf32>
    %cst_86 = arith.constant dense<0.000000e+00> : vector<8xf32>
    %127 = vector.multi_reduction <add>, %124, %cst_86 [1] : vector<8x128xf32> to vector<8xf32>
    %128 = vector.shape_cast %127 : vector<8xf32> to vector<8x1xf32>
    %cst_87 = arith.constant 3.125000e-02 : f32
    %129 = vector.broadcast %cst_87 : f32 to vector<8x1xf32>
    %130 = arith.mulf %128, %129 : vector<8x1xf32>
    %131 = vector.broadcast %130 : vector<8x1xf32> to vector<8x128xf32>
    %132 = arith.subf %124, %131 : vector<8x128xf32>
    %133 = tpu.iota {dimensions = array<i32: 1>} : vector<1x128xi32>
    %c32_i32 = arith.constant 32 : i32
    %134 = vector.broadcast %c32_i32 : i32 to vector<1x128xi32>
    %135 = arith.cmpi slt, %133, %134 : vector<1x128xi32>
    %cst_88 = arith.constant 0.000000e+00 : f32
    %136 = vector.shape_cast %135 : vector<1x128xi1> to vector<1x128xi1>
    %137 = vector.broadcast %136 : vector<1x128xi1> to vector<8x128xi1>
    %138 = vector.broadcast %cst_88 : f32 to vector<8x128xf32>
    %139 = arith.select %137, %132, %138 : vector<8x128xi1>, vector<8x128xf32>
    %140 = arith.mulf %139, %139 : vector<8x128xf32>
    %cst_89 = arith.constant dense<0.000000e+00> : vector<8xf32>
    %141 = vector.multi_reduction <add>, %140, %cst_89 [1] : vector<8x128xf32> to vector<8xf32>
    %142 = vector.shape_cast %141 : vector<8xf32> to vector<8x1xf32>
    %cst_90 = arith.constant 3.125000e-02 : f32
    %143 = vector.broadcast %cst_90 : f32 to vector<8x1xf32>
    %144 = arith.mulf %142, %143 : vector<8x1xf32>
    %cst_91 = arith.constant 9.99999974E-6 : f32
    %145 = vector.broadcast %cst_91 : f32 to vector<8x1xf32>
    %146 = arith.addf %144, %145 : vector<8x1xf32>
    %147 = math.rsqrt %146 : vector<8x1xf32>
    %148 = vector.broadcast %147 : vector<8x1xf32> to vector<8x128xf32>
    %149 = arith.mulf %139, %148 : vector<8x128xf32>
    %150 = vector.broadcast %125 : vector<1x128xf32> to vector<8x128xf32>
    %151 = arith.mulf %149, %150 : vector<8x128xf32>
    %152 = vector.broadcast %126 : vector<1x128xf32> to vector<8x128xf32>
    %153 = arith.addf %151, %152 : vector<8x128xf32>
    %c0_92 = arith.constant 0 : index
    %c0_93 = arith.constant 0 : index
    %c0_94 = arith.constant 0 : index
    %154 = vector.load %arg10[%c0_92, %c0_93, %c0_94] : memref<1x8x128xf32, #tpu.memory_space<vmem>>, vector<1x8x128xf32>
    %155 = vector.shape_cast %154 : vector<1x8x128xf32> to vector<8x128xf32>
    %156 = vector.shape_cast %153 : vector<8x128xf32> to vector<1x8x128xf32>
    tpu.vector_store %arg10[%c0_92, %c0_93, %c0_94], %156 {strides = array<i32>} : memref<1x8x128xf32, #tpu.memory_space<vmem>>, vector<1x8x128xf32>,
    return
  }
  func.func @transform_0(%arg0: i32, %arg1: i32) -> (i32, i32, i32) {
    %c0_i32 = arith.constant 0 : i32
    %c0_i32_0 = arith.constant 0 : i32
    return %arg0, %arg1, %c0_i32 : i32, i32, i32
  }
  func.func @transform_1(%arg0: i32, %arg1: i32) -> (i32, i32, i32) {
    %c0_i32 = arith.constant 0 : i32
    %c0_i32_0 = arith.constant 0 : i32
    %c0_i32_1 = arith.constant 0 : i32
    return %arg0, %c0_i32, %c0_i32_0 : i32, i32, i32
  }
  func.func @transform_2(%arg0: i32, %arg1: i32) -> (i32, i32, i32) {
    %c0_i32 = arith.constant 0 : i32
    %c0_i32_0 = arith.constant 0 : i32
    %c0_i32_1 = arith.constant 0 : i32
    %c0_i32_2 = arith.constant 0 : i32
    return %c0_i32, %c0_i32_0, %c0_i32_1 : i32, i32, i32
  }
  func.func @transform_3(%arg0: i32, %arg1: i32) -> (i32, i32, i32) {
    %c0_i32 = arith.constant 0 : i32
    %c0_i32_0 = arith.constant 0 : i32
    %c0_i32_1 = arith.constant 0 : i32
    %c0_i32_2 = arith.constant 0 : i32
    return %c0_i32, %c0_i32_0, %c0_i32_1 : i32, i32, i32
  }
  func.func @transform_4(%arg0: i32, %arg1: i32) -> (i32, i32, i32) {
    %c0_i32 = arith.constant 0 : i32
    %c0_i32_0 = arith.constant 0 : i32
    %c0_i32_1 = arith.constant 0 : i32
    %c0_i32_2 = arith.constant 0 : i32
    return %c0_i32, %c0_i32_0, %c0_i32_1 : i32, i32, i32
  }
  func.func @transform_5(%arg0: i32, %arg1: i32) -> (i32, i32) {
    %c0_i32 = arith.constant 0 : i32
    %c0_i32_0 = arith.constant 0 : i32
    %c0_i32_1 = arith.constant 0 : i32
    return %c0_i32, %c0_i32_0 : i32, i32
  }
  func.func @transform_6(%arg0: i32, %arg1: i32) -> (i32, i32) {
    %c0_i32 = arith.constant 0 : i32
    %c0_i32_0 = arith.constant 0 : i32
    %c0_i32_1 = arith.constant 0 : i32
    return %c0_i32, %c0_i32_0 : i32, i32
  }
  func.func @transform_7(%arg0: i32, %arg1: i32) -> (i32, i32) {
    %c0_i32 = arith.constant 0 : i32
    %c0_i32_0 = arith.constant 0 : i32
    %c0_i32_1 = arith.constant 0 : i32
    return %c0_i32, %c0_i32_0 : i32, i32
  }
  func.func @transform_8(%arg0: i32, %arg1: i32) -> (i32, i32, i32) {
    %c0_i32 = arith.constant 0 : i32
    %c0_i32_0 = arith.constant 0 : i32
    return %arg0, %arg1, %c0_i32 : i32, i32, i32
  }
}

module attributes {stable_mosaic.version = 11 : i64} {
  func.func @_ffn_res_ln_kernel(%arg0: i32, %arg1: memref<16x128xf32, #tpu.memory_space<vmem>>, %arg2: memref<128x64xbf16, #tpu.memory_space<vmem>>, %arg3: memref<1x64xf32, #tpu.memory_space<vmem>>, %arg4: memref<64x128xbf16, #tpu.memory_space<vmem>>, %arg5: memref<1x128xf32, #tpu.memory_space<vmem>>, %arg6: memref<1x128xf32, #tpu.memory_space<vmem>>, %arg7: memref<1x128xf32, #tpu.memory_space<vmem>>, %arg8: memref<16x128xf32, #tpu.memory_space<vmem>>) attributes {dimension_semantics = [#tpu.dimension_semantics<parallel>], iteration_bounds = array<i64: 1>, scalar_prefetch = 0 : i64, scratch_operands = 0 : i64, tpu.core_type = #tpu.core_type<tc>, window_params = [{transform_indices = @transform_0, window_bounds = array<i64: 16, 128>}, {pipeline_mode = #tpu.pipeline_mode<synchronous>, transform_indices = @transform_1, window_bounds = array<i64: 128, 64>}, {pipeline_mode = #tpu.pipeline_mode<synchronous>, transform_indices = @transform_2, window_bounds = array<i64: 1, 64>}, {pipeline_mode = #tpu.pipeline_mode<synchronous>, transform_indices = @transform_3, window_bounds = array<i64: 64, 128>}, {pipeline_mode = #tpu.pipeline_mode<synchronous>, transform_indices = @transform_4, window_bounds = array<i64: 1, 128>}, {pipeline_mode = #tpu.pipeline_mode<synchronous>, transform_indices = @transform_5, window_bounds = array<i64: 1, 128>}, {pipeline_mode = #tpu.pipeline_mode<synchronous>, transform_indices = @transform_6, window_bounds = array<i64: 1, 128>}, {transform_indices = @transform_7, window_bounds = array<i64: 16, 128>}]} {
    %c0 = arith.constant 0 : index
    %c0_0 = arith.constant 0 : index
    %0 = vector.load %arg1[%c0, %c0_0] : memref<16x128xf32, #tpu.memory_space<vmem>>, vector<16x128xf32>
    %c0_1 = arith.constant 0 : index
    %c0_2 = arith.constant 0 : index
    %1 = vector.load %arg1[%c0_1, %c0_2] : memref<16x128xf32, #tpu.memory_space<vmem>>, vector<16x128xf32>
    %2 = arith.truncf %1 : vector<16x128xf32> to vector<16x128xbf16>
    %c0_3 = arith.constant 0 : index
    %c0_4 = arith.constant 0 : index
    %3 = vector.load %arg2[%c0_3, %c0_4] : memref<128x64xbf16, #tpu.memory_space<vmem>>, vector<128x64xbf16>
    %cst = arith.constant dense<0.000000e+00> : vector<16x64xf32>
    %4 = tpu.matmul %2, %3, %cst {dimension_numbers = #tpu.dot_dimension_numbers<[1], [0], [0], [1], [0, 0, 1, 1], [], []>} : vector<16x128xbf16>, vector<128x64xbf16>, vector<16x64xf32> -> vector<16x64xf32>
    %c0_5 = arith.constant 0 : index
    %c0_6 = arith.constant 0 : index
    %5 = vector.load %arg3[%c0_5, %c0_6] : memref<1x64xf32, #tpu.memory_space<vmem>>, vector<1x64xf32>
    %6 = vector.broadcast %5 : vector<1x64xf32> to vector<16x64xf32>
    %7 = arith.addf %4, %6 : vector<16x64xf32>
    %cst_7 = arith.constant 0.000000e+00 : f32
    %8 = vector.broadcast %cst_7 : f32 to vector<16x64xf32>
    %9 = arith.maximumf %7, %8 : vector<16x64xf32>
    %10 = arith.truncf %9 : vector<16x64xf32> to vector<16x64xbf16>
    %c0_8 = arith.constant 0 : index
    %c0_9 = arith.constant 0 : index
    %11 = vector.load %arg4[%c0_8, %c0_9] : memref<64x128xbf16, #tpu.memory_space<vmem>>, vector<64x128xbf16>
    %cst_10 = arith.constant dense<0.000000e+00> : vector<16x128xf32>
    %12 = tpu.matmul %10, %11, %cst_10 {dimension_numbers = #tpu.dot_dimension_numbers<[1], [0], [0], [1], [0, 0, 1, 1], [], []>} : vector<16x64xbf16>, vector<64x128xbf16>, vector<16x128xf32> -> vector<16x128xf32>
    %c0_11 = arith.constant 0 : index
    %c0_12 = arith.constant 0 : index
    %13 = vector.load %arg5[%c0_11, %c0_12] : memref<1x128xf32, #tpu.memory_space<vmem>>, vector<1x128xf32>
    %14 = vector.broadcast %13 : vector<1x128xf32> to vector<16x128xf32>
    %15 = arith.addf %12, %14 : vector<16x128xf32>
    %16 = arith.addf %15, %0 : vector<16x128xf32>
    %c0_13 = arith.constant 0 : index
    %c0_14 = arith.constant 0 : index
    %17 = vector.load %arg6[%c0_13, %c0_14] : memref<1x128xf32, #tpu.memory_space<vmem>>, vector<1x128xf32>
    %c0_15 = arith.constant 0 : index
    %c0_16 = arith.constant 0 : index
    %18 = vector.load %arg7[%c0_15, %c0_16] : memref<1x128xf32, #tpu.memory_space<vmem>>, vector<1x128xf32>
    %cst_17 = arith.constant dense<0.000000e+00> : vector<16xf32>
    %19 = vector.multi_reduction <add>, %16, %cst_17 [1] : vector<16x128xf32> to vector<16xf32>
    %20 = vector.shape_cast %19 : vector<16xf32> to vector<16x1xf32>
    %cst_18 = arith.constant 3.125000e-02 : f32
    %21 = vector.broadcast %cst_18 : f32 to vector<16x1xf32>
    %22 = arith.mulf %20, %21 : vector<16x1xf32>
    %23 = vector.broadcast %22 : vector<16x1xf32> to vector<16x128xf32>
    %24 = arith.subf %16, %23 : vector<16x128xf32>
    %25 = tpu.iota {dimensions = array<i32: 1>} : vector<1x128xi32>
    %c32_i32 = arith.constant 32 : i32
    %26 = vector.broadcast %c32_i32 : i32 to vector<1x128xi32>
    %27 = arith.cmpi slt, %25, %26 : vector<1x128xi32>
    %cst_19 = arith.constant 0.000000e+00 : f32
    %28 = vector.shape_cast %27 : vector<1x128xi1> to vector<1x128xi1>
    %29 = vector.broadcast %28 : vector<1x128xi1> to vector<16x128xi1>
    %30 = vector.broadcast %cst_19 : f32 to vector<16x128xf32>
    %31 = arith.select %29, %24, %30 : vector<16x128xi1>, vector<16x128xf32>
    %32 = arith.mulf %31, %31 : vector<16x128xf32>
    %cst_20 = arith.constant dense<0.000000e+00> : vector<16xf32>
    %33 = vector.multi_reduction <add>, %32, %cst_20 [1] : vector<16x128xf32> to vector<16xf32>
    %34 = vector.shape_cast %33 : vector<16xf32> to vector<16x1xf32>
    %cst_21 = arith.constant 3.125000e-02 : f32
    %35 = vector.broadcast %cst_21 : f32 to vector<16x1xf32>
    %36 = arith.mulf %34, %35 : vector<16x1xf32>
    %cst_22 = arith.constant 9.99999974E-6 : f32
    %37 = vector.broadcast %cst_22 : f32 to vector<16x1xf32>
    %38 = arith.addf %36, %37 : vector<16x1xf32>
    %39 = math.rsqrt %38 : vector<16x1xf32>
    %40 = vector.broadcast %39 : vector<16x1xf32> to vector<16x128xf32>
    %41 = arith.mulf %31, %40 : vector<16x128xf32>
    %42 = vector.broadcast %17 : vector<1x128xf32> to vector<16x128xf32>
    %43 = arith.mulf %41, %42 : vector<16x128xf32>
    %44 = vector.broadcast %18 : vector<1x128xf32> to vector<16x128xf32>
    %45 = arith.addf %43, %44 : vector<16x128xf32>
    %c0_23 = arith.constant 0 : index
    %c0_24 = arith.constant 0 : index
    %46 = vector.load %arg8[%c0_23, %c0_24] : memref<16x128xf32, #tpu.memory_space<vmem>>, vector<16x128xf32>
    tpu.vector_store %arg8[%c0_23, %c0_24], %45 {strides = array<i32>} : memref<16x128xf32, #tpu.memory_space<vmem>>, vector<16x128xf32>,
    return
  }
  func.func @transform_0(%arg0: i32) -> (i32, i32) {
    %c0_i32 = arith.constant 0 : i32
    %c0_i32_0 = arith.constant 0 : i32
    return %arg0, %c0_i32 : i32, i32
  }
  func.func @transform_1(%arg0: i32) -> (i32, i32) {
    %c0_i32 = arith.constant 0 : i32
    %c0_i32_0 = arith.constant 0 : i32
    %c0_i32_1 = arith.constant 0 : i32
    return %c0_i32, %c0_i32_0 : i32, i32
  }
  func.func @transform_2(%arg0: i32) -> (i32, i32) {
    %c0_i32 = arith.constant 0 : i32
    %c0_i32_0 = arith.constant 0 : i32
    %c0_i32_1 = arith.constant 0 : i32
    return %c0_i32, %c0_i32_0 : i32, i32
  }
  func.func @transform_3(%arg0: i32) -> (i32, i32) {
    %c0_i32 = arith.constant 0 : i32
    %c0_i32_0 = arith.constant 0 : i32
    %c0_i32_1 = arith.constant 0 : i32
    return %c0_i32, %c0_i32_0 : i32, i32
  }
  func.func @transform_4(%arg0: i32) -> (i32, i32) {
    %c0_i32 = arith.constant 0 : i32
    %c0_i32_0 = arith.constant 0 : i32
    %c0_i32_1 = arith.constant 0 : i32
    return %c0_i32, %c0_i32_0 : i32, i32
  }
  func.func @transform_5(%arg0: i32) -> (i32, i32) {
    %c0_i32 = arith.constant 0 : i32
    %c0_i32_0 = arith.constant 0 : i32
    %c0_i32_1 = arith.constant 0 : i32
    return %c0_i32, %c0_i32_0 : i32, i32
  }
  func.func @transform_6(%arg0: i32) -> (i32, i32) {
    %c0_i32 = arith.constant 0 : i32
    %c0_i32_0 = arith.constant 0 : i32
    %c0_i32_1 = arith.constant 0 : i32
    return %c0_i32, %c0_i32_0 : i32, i32
  }
  func.func @transform_7(%arg0: i32) -> (i32, i32) {
    %c0_i32 = arith.constant 0 : i32
    %c0_i32_0 = arith.constant 0 : i32
    return %arg0, %c0_i32 : i32, i32
  }
}

module attributes {stable_mosaic.version = 11 : i64} {
  func.func @_mha_res_ln_kernel(%arg0: i32, %arg1: i32, %arg2: memref<1x8x128xf32, #tpu.memory_space<vmem>>, %arg3: memref<1x8x128xf32, #tpu.memory_space<vmem>>, %arg4: memref<4x128x8xbf16, #tpu.memory_space<vmem>>, %arg5: memref<4x128x8xbf16, #tpu.memory_space<vmem>>, %arg6: memref<4x128x8xbf16, #tpu.memory_space<vmem>>, %arg7: memref<32x128xbf16, #tpu.memory_space<vmem>>, %arg8: memref<1x128xf32, #tpu.memory_space<vmem>>, %arg9: memref<1x128xf32, #tpu.memory_space<vmem>>, %arg10: memref<1x8x128xf32, #tpu.memory_space<vmem>>, %arg11: memref<8x32xf32, #tpu.memory_space<vmem>>) attributes {dimension_semantics = [#tpu.dimension_semantics<parallel>, #tpu.dimension_semantics<parallel>], iteration_bounds = array<i64: 2, 1>, scalar_prefetch = 0 : i64, scratch_operands = 1 : i64, tpu.core_type = #tpu.core_type<tc>, window_params = [{transform_indices = @transform_0, window_bounds = array<i64: 1, 8, 128>}, {transform_indices = @transform_1, window_bounds = array<i64: 1, 8, 128>}, {pipeline_mode = #tpu.pipeline_mode<synchronous>, transform_indices = @transform_2, window_bounds = array<i64: 4, 128, 8>}, {pipeline_mode = #tpu.pipeline_mode<synchronous>, transform_indices = @transform_3, window_bounds = array<i64: 4, 128, 8>}, {pipeline_mode = #tpu.pipeline_mode<synchronous>, transform_indices = @transform_4, window_bounds = array<i64: 4, 128, 8>}, {pipeline_mode = #tpu.pipeline_mode<synchronous>, transform_indices = @transform_5, window_bounds = array<i64: 32, 128>}, {pipeline_mode = #tpu.pipeline_mode<synchronous>, transform_indices = @transform_6, window_bounds = array<i64: 1, 128>}, {pipeline_mode = #tpu.pipeline_mode<synchronous>, transform_indices = @transform_7, window_bounds = array<i64: 1, 128>}, {transform_indices = @transform_8, window_bounds = array<i64: 1, 8, 128>}]} {
    %c0 = arith.constant 0 : index
    %c0_0 = arith.constant 0 : index
    %c0_1 = arith.constant 0 : index
    %0 = vector.load %arg2[%c0, %c0_0, %c0_1] : memref<1x8x128xf32, #tpu.memory_space<vmem>>, vector<1x8x128xf32>
    %1 = vector.shape_cast %0 : vector<1x8x128xf32> to vector<8x128xf32>
    %c0_2 = arith.constant 0 : index
    %c0_3 = arith.constant 0 : index
    %c0_4 = arith.constant 0 : index
    %2 = vector.load %arg2[%c0_2, %c0_3, %c0_4] : memref<1x8x128xf32, #tpu.memory_space<vmem>>, vector<1x8x128xf32>
    %3 = vector.shape_cast %2 : vector<1x8x128xf32> to vector<8x128xf32>
    %4 = arith.truncf %3 : vector<8x128xf32> to vector<8x128xbf16>
    %c0_5 = arith.constant 0 : index
    %c0_6 = arith.constant 0 : index
    %c0_7 = arith.constant 0 : index
    %5 = vector.load %arg3[%c0_5, %c0_6, %c0_7] : memref<1x8x128xf32, #tpu.memory_space<vmem>>, vector<1x8x128xf32>
    %6 = vector.shape_cast %5 : vector<1x8x128xf32> to vector<8x128xf32>
    %7 = arith.truncf %6 : vector<8x128xf32> to vector<8x128xbf16>
    %c0_8 = arith.constant 0 : index
    %c0_9 = arith.constant 0 : index
    %c0_10 = arith.constant 0 : index
    %8 = vector.load %arg4[%c0_8, %c0_9, %c0_10] : memref<4x128x8xbf16, #tpu.memory_space<vmem>>, vector<1x128x8xbf16>
    %9 = vector.shape_cast %8 : vector<1x128x8xbf16> to vector<128x8xbf16>
    %cst = arith.constant dense<0.000000e+00> : vector<8x8xf32>
    %10 = tpu.matmul %4, %9, %cst {dimension_numbers = #tpu.dot_dimension_numbers<[1], [0], [0], [1], [0, 0, 1, 1], [], []>} : vector<8x128xbf16>, vector<128x8xbf16>, vector<8x8xf32> -> vector<8x8xf32>
    %cst_11 = arith.constant 0.353553385 : f32
    %11 = vector.broadcast %cst_11 : f32 to vector<8x8xf32>
    %12 = arith.mulf %10, %11 : vector<8x8xf32>
    %c0_12 = arith.constant 0 : index
    %c0_13 = arith.constant 0 : index
    %c0_14 = arith.constant 0 : index
    %13 = vector.load %arg5[%c0_12, %c0_13, %c0_14] : memref<4x128x8xbf16, #tpu.memory_space<vmem>>, vector<1x128x8xbf16>
    %14 = vector.shape_cast %13 : vector<1x128x8xbf16> to vector<128x8xbf16>
    %cst_15 = arith.constant dense<0.000000e+00> : vector<8x8xf32>
    %15 = tpu.matmul %7, %14, %cst_15 {dimension_numbers = #tpu.dot_dimension_numbers<[1], [0], [0], [1], [0, 0, 1, 1], [], []>} : vector<8x128xbf16>, vector<128x8xbf16>, vector<8x8xf32> -> vector<8x8xf32>
    %c0_16 = arith.constant 0 : index
    %c0_17 = arith.constant 0 : index
    %c0_18 = arith.constant 0 : index
    %16 = vector.load %arg6[%c0_16, %c0_17, %c0_18] : memref<4x128x8xbf16, #tpu.memory_space<vmem>>, vector<1x128x8xbf16>
    %17 = vector.shape_cast %16 : vector<1x128x8xbf16> to vector<128x8xbf16>
    %cst_19 = arith.constant dense<0.000000e+00> : vector<8x8xf32>
    %18 = tpu.matmul %7, %17, %cst_19 {dimension_numbers = #tpu.dot_dimension_numbers<[1], [0], [0], [1], [0, 0, 1, 1], [], []>} : vector<8x128xbf16>, vector<128x8xbf16>, vector<8x8xf32> -> vector<8x8xf32>
    %19 = arith.truncf %12 : vector<8x8xf32> to vector<8x8xbf16>
    %20 = arith.truncf %15 : vector<8x8xf32> to vector<8x8xbf16>
    %cst_20 = arith.constant dense<0.000000e+00> : vector<8x8xf32>
    %21 = tpu.matmul %19, %20, %cst_20 {dimension_numbers = #tpu.dot_dimension_numbers<[1], [1], [0], [0], [0, 0, 1, 0], [], []>} : vector<8x8xbf16>, vector<8x8xbf16>, vector<8x8xf32> -> vector<8x8xf32>
    %cst_21 = arith.constant dense<0xFF800000> : vector<8xf32>
    %22 = vector.multi_reduction <maximumf>, %21, %cst_21 [1] : vector<8x8xf32> to vector<8xf32>
    %23 = vector.shape_cast %22 : vector<8xf32> to vector<8x1xf32>
    %24 = vector.broadcast %23 : vector<8x1xf32> to vector<8x8xf32>
    %25 = arith.subf %21, %24 : vector<8x8xf32>
    %26 = math.exp %25 : vector<8x8xf32>
    %cst_22 = arith.constant dense<0.000000e+00> : vector<8xf32>
    %27 = vector.multi_reduction <add>, %26, %cst_22 [1] : vector<8x8xf32> to vector<8xf32>
    %28 = vector.shape_cast %27 : vector<8xf32> to vector<8x1xf32>
    %29 = tpu.reciprocal %28 {approx = true} : vector<8x1xf32> -> vector<8x1xf32>
    %30 = vector.broadcast %29 : vector<8x1xf32> to vector<8x8xf32>
    %31 = arith.mulf %26, %30 : vector<8x8xf32>
    %32 = arith.truncf %31 : vector<8x8xf32> to vector<8x8xbf16>
    %33 = arith.truncf %18 : vector<8x8xf32> to vector<8x8xbf16>
    %cst_23 = arith.constant dense<0.000000e+00> : vector<8x8xf32>
    %34 = tpu.matmul %32, %33, %cst_23 {dimension_numbers = #tpu.dot_dimension_numbers<[1], [0], [0], [1], [0, 0, 1, 1], [], []>} : vector<8x8xbf16>, vector<8x8xbf16>, vector<8x8xf32> -> vector<8x8xf32>
    %c0_24 = arith.constant 0 : index
    %c0_25 = arith.constant 0 : index
    %35 = vector.load %arg11[%c0_24, %c0_25] : memref<8x32xf32, #tpu.memory_space<vmem>>, vector<8x8xf32>
    tpu.vector_store %arg11[%c0_24, %c0_25], %34 {strides = array<i32>} : memref<8x32xf32, #tpu.memory_space<vmem>>, vector<8x8xf32>,
    %c1 = arith.constant 1 : index
    %c0_26 = arith.constant 0 : index
    %c0_27 = arith.constant 0 : index
    %36 = vector.load %arg4[%c1, %c0_26, %c0_27] : memref<4x128x8xbf16, #tpu.memory_space<vmem>>, vector<1x128x8xbf16>
    %37 = vector.shape_cast %36 : vector<1x128x8xbf16> to vector<128x8xbf16>
    %cst_28 = arith.constant dense<0.000000e+00> : vector<8x8xf32>
    %38 = tpu.matmul %4, %37, %cst_28 {dimension_numbers = #tpu.dot_dimension_numbers<[1], [0], [0], [1], [0, 0, 1, 1], [], []>} : vector<8x128xbf16>, vector<128x8xbf16>, vector<8x8xf32> -> vector<8x8xf32>
    %cst_29 = arith.constant 0.353553385 : f32
    %39 = vector.broadcast %cst_29 : f32 to vector<8x8xf32>
    %40 = arith.mulf %38, %39 : vector<8x8xf32>
    %c1_30 = arith.constant 1 : index
    %c0_31 = arith.constant 0 : index
    %c0_32 = arith.constant 0 : index
    %41 = vector.load %arg5[%c1_30, %c0_31, %c0_32] : memref<4x128x8xbf16, #tpu.memory_space<vmem>>, vector<1x128x8xbf16>
    %42 = vector.shape_cast %41 : vector<1x128x8xbf16> to vector<128x8xbf16>
    %cst_33 = arith.constant dense<0.000000e+00> : vector<8x8xf32>
    %43 = tpu.matmul %7, %42, %cst_33 {dimension_numbers = #tpu.dot_dimension_numbers<[1], [0], [0], [1], [0, 0, 1, 1], [], []>} : vector<8x128xbf16>, vector<128x8xbf16>, vector<8x8xf32> -> vector<8x8xf32>
    %c1_34 = arith.constant 1 : index
    %c0_35 = arith.constant 0 : index
    %c0_36 = arith.constant 0 : index
    %44 = vector.load %arg6[%c1_34, %c0_35, %c0_36] : memref<4x128x8xbf16, #tpu.memory_space<vmem>>, vector<1x128x8xbf16>
    %45 = vector.shape_cast %44 : vector<1x128x8xbf16> to vector<128x8xbf16>
    %cst_37 = arith.constant dense<0.000000e+00> : vector<8x8xf32>
    %46 = tpu.matmul %7, %45, %cst_37 {dimension_numbers = #tpu.dot_dimension_numbers<[1], [0], [0], [1], [0, 0, 1, 1], [], []>} : vector<8x128xbf16>, vector<128x8xbf16>, vector<8x8xf32> -> vector<8x8xf32>
    %47 = arith.truncf %40 : vector<8x8xf32> to vector<8x8xbf16>
    %48 = arith.truncf %43 : vector<8x8xf32> to vector<8x8xbf16>
    %cst_38 = arith.constant dense<0.000000e+00> : vector<8x8xf32>
    %49 = tpu.matmul %47, %48, %cst_38 {dimension_numbers = #tpu.dot_dimension_numbers<[1], [1], [0], [0], [0, 0, 1, 0], [], []>} : vector<8x8xbf16>, vector<8x8xbf16>, vector<8x8xf32> -> vector<8x8xf32>
    %cst_39 = arith.constant dense<0xFF800000> : vector<8xf32>
    %50 = vector.multi_reduction <maximumf>, %49, %cst_39 [1] : vector<8x8xf32> to vector<8xf32>
    %51 = vector.shape_cast %50 : vector<8xf32> to vector<8x1xf32>
    %52 = vector.broadcast %51 : vector<8x1xf32> to vector<8x8xf32>
    %53 = arith.subf %49, %52 : vector<8x8xf32>
    %54 = math.exp %53 : vector<8x8xf32>
    %cst_40 = arith.constant dense<0.000000e+00> : vector<8xf32>
    %55 = vector.multi_reduction <add>, %54, %cst_40 [1] : vector<8x8xf32> to vector<8xf32>
    %56 = vector.shape_cast %55 : vector<8xf32> to vector<8x1xf32>
    %57 = tpu.reciprocal %56 {approx = true} : vector<8x1xf32> -> vector<8x1xf32>
    %58 = vector.broadcast %57 : vector<8x1xf32> to vector<8x8xf32>
    %59 = arith.mulf %54, %58 : vector<8x8xf32>
    %60 = arith.truncf %59 : vector<8x8xf32> to vector<8x8xbf16>
    %61 = arith.truncf %46 : vector<8x8xf32> to vector<8x8xbf16>
    %cst_41 = arith.constant dense<0.000000e+00> : vector<8x8xf32>
    %62 = tpu.matmul %60, %61, %cst_41 {dimension_numbers = #tpu.dot_dimension_numbers<[1], [0], [0], [1], [0, 0, 1, 1], [], []>} : vector<8x8xbf16>, vector<8x8xbf16>, vector<8x8xf32> -> vector<8x8xf32>
    %c0_42 = arith.constant 0 : index
    %c8 = arith.constant 8 : index
    %63 = vector.load %arg11[%c0_42, %c8] : memref<8x32xf32, #tpu.memory_space<vmem>>, vector<8x8xf32>
    tpu.vector_store %arg11[%c0_42, %c8], %62 {strides = array<i32>} : memref<8x32xf32, #tpu.memory_space<vmem>>, vector<8x8xf32>,
    %c2 = arith.constant 2 : index
    %c0_43 = arith.constant 0 : index
    %c0_44 = arith.constant 0 : index
    %64 = vector.load %arg4[%c2, %c0_43, %c0_44] : memref<4x128x8xbf16, #tpu.memory_space<vmem>>, vector<1x128x8xbf16>
    %65 = vector.shape_cast %64 : vector<1x128x8xbf16> to vector<128x8xbf16>
    %cst_45 = arith.constant dense<0.000000e+00> : vector<8x8xf32>
    %66 = tpu.matmul %4, %65, %cst_45 {dimension_numbers = #tpu.dot_dimension_numbers<[1], [0], [0], [1], [0, 0, 1, 1], [], []>} : vector<8x128xbf16>, vector<128x8xbf16>, vector<8x8xf32> -> vector<8x8xf32>
    %cst_46 = arith.constant 0.353553385 : f32
    %67 = vector.broadcast %cst_46 : f32 to vector<8x8xf32>
    %68 = arith.mulf %66, %67 : vector<8x8xf32>
    %c2_47 = arith.constant 2 : index
    %c0_48 = arith.constant 0 : index
    %c0_49 = arith.constant 0 : index
    %69 = vector.load %arg5[%c2_47, %c0_48, %c0_49] : memref<4x128x8xbf16, #tpu.memory_space<vmem>>, vector<1x128x8xbf16>
    %70 = vector.shape_cast %69 : vector<1x128x8xbf16> to vector<128x8xbf16>
    %cst_50 = arith.constant dense<0.000000e+00> : vector<8x8xf32>
    %71 = tpu.matmul %7, %70, %cst_50 {dimension_numbers = #tpu.dot_dimension_numbers<[1], [0], [0], [1], [0, 0, 1, 1], [], []>} : vector<8x128xbf16>, vector<128x8xbf16>, vector<8x8xf32> -> vector<8x8xf32>
    %c2_51 = arith.constant 2 : index
    %c0_52 = arith.constant 0 : index
    %c0_53 = arith.constant 0 : index
    %72 = vector.load %arg6[%c2_51, %c0_52, %c0_53] : memref<4x128x8xbf16, #tpu.memory_space<vmem>>, vector<1x128x8xbf16>
    %73 = vector.shape_cast %72 : vector<1x128x8xbf16> to vector<128x8xbf16>
    %cst_54 = arith.constant dense<0.000000e+00> : vector<8x8xf32>
    %74 = tpu.matmul %7, %73, %cst_54 {dimension_numbers = #tpu.dot_dimension_numbers<[1], [0], [0], [1], [0, 0, 1, 1], [], []>} : vector<8x128xbf16>, vector<128x8xbf16>, vector<8x8xf32> -> vector<8x8xf32>
    %75 = arith.truncf %68 : vector<8x8xf32> to vector<8x8xbf16>
    %76 = arith.truncf %71 : vector<8x8xf32> to vector<8x8xbf16>
    %cst_55 = arith.constant dense<0.000000e+00> : vector<8x8xf32>
    %77 = tpu.matmul %75, %76, %cst_55 {dimension_numbers = #tpu.dot_dimension_numbers<[1], [1], [0], [0], [0, 0, 1, 0], [], []>} : vector<8x8xbf16>, vector<8x8xbf16>, vector<8x8xf32> -> vector<8x8xf32>
    %cst_56 = arith.constant dense<0xFF800000> : vector<8xf32>
    %78 = vector.multi_reduction <maximumf>, %77, %cst_56 [1] : vector<8x8xf32> to vector<8xf32>
    %79 = vector.shape_cast %78 : vector<8xf32> to vector<8x1xf32>
    %80 = vector.broadcast %79 : vector<8x1xf32> to vector<8x8xf32>
    %81 = arith.subf %77, %80 : vector<8x8xf32>
    %82 = math.exp %81 : vector<8x8xf32>
    %cst_57 = arith.constant dense<0.000000e+00> : vector<8xf32>
    %83 = vector.multi_reduction <add>, %82, %cst_57 [1] : vector<8x8xf32> to vector<8xf32>
    %84 = vector.shape_cast %83 : vector<8xf32> to vector<8x1xf32>
    %85 = tpu.reciprocal %84 {approx = true} : vector<8x1xf32> -> vector<8x1xf32>
    %86 = vector.broadcast %85 : vector<8x1xf32> to vector<8x8xf32>
    %87 = arith.mulf %82, %86 : vector<8x8xf32>
    %88 = arith.truncf %87 : vector<8x8xf32> to vector<8x8xbf16>
    %89 = arith.truncf %74 : vector<8x8xf32> to vector<8x8xbf16>
    %cst_58 = arith.constant dense<0.000000e+00> : vector<8x8xf32>
    %90 = tpu.matmul %88, %89, %cst_58 {dimension_numbers = #tpu.dot_dimension_numbers<[1], [0], [0], [1], [0, 0, 1, 1], [], []>} : vector<8x8xbf16>, vector<8x8xbf16>, vector<8x8xf32> -> vector<8x8xf32>
    %c0_59 = arith.constant 0 : index
    %c16 = arith.constant 16 : index
    %91 = vector.load %arg11[%c0_59, %c16] : memref<8x32xf32, #tpu.memory_space<vmem>>, vector<8x8xf32>
    tpu.vector_store %arg11[%c0_59, %c16], %90 {strides = array<i32>} : memref<8x32xf32, #tpu.memory_space<vmem>>, vector<8x8xf32>,
    %c3 = arith.constant 3 : index
    %c0_60 = arith.constant 0 : index
    %c0_61 = arith.constant 0 : index
    %92 = vector.load %arg4[%c3, %c0_60, %c0_61] : memref<4x128x8xbf16, #tpu.memory_space<vmem>>, vector<1x128x8xbf16>
    %93 = vector.shape_cast %92 : vector<1x128x8xbf16> to vector<128x8xbf16>
    %cst_62 = arith.constant dense<0.000000e+00> : vector<8x8xf32>
    %94 = tpu.matmul %4, %93, %cst_62 {dimension_numbers = #tpu.dot_dimension_numbers<[1], [0], [0], [1], [0, 0, 1, 1], [], []>} : vector<8x128xbf16>, vector<128x8xbf16>, vector<8x8xf32> -> vector<8x8xf32>
    %cst_63 = arith.constant 0.353553385 : f32
    %95 = vector.broadcast %cst_63 : f32 to vector<8x8xf32>
    %96 = arith.mulf %94, %95 : vector<8x8xf32>
    %c3_64 = arith.constant 3 : index
    %c0_65 = arith.constant 0 : index
    %c0_66 = arith.constant 0 : index
    %97 = vector.load %arg5[%c3_64, %c0_65, %c0_66] : memref<4x128x8xbf16, #tpu.memory_space<vmem>>, vector<1x128x8xbf16>
    %98 = vector.shape_cast %97 : vector<1x128x8xbf16> to vector<128x8xbf16>
    %cst_67 = arith.constant dense<0.000000e+00> : vector<8x8xf32>
    %99 = tpu.matmul %7, %98, %cst_67 {dimension_numbers = #tpu.dot_dimension_numbers<[1], [0], [0], [1], [0, 0, 1, 1], [], []>} : vector<8x128xbf16>, vector<128x8xbf16>, vector<8x8xf32> -> vector<8x8xf32>
    %c3_68 = arith.constant 3 : index
    %c0_69 = arith.constant 0 : index
    %c0_70 = arith.constant 0 : index
    %100 = vector.load %arg6[%c3_68, %c0_69, %c0_70] : memref<4x128x8xbf16, #tpu.memory_space<vmem>>, vector<1x128x8xbf16>
    %101 = vector.shape_cast %100 : vector<1x128x8xbf16> to vector<128x8xbf16>
    %cst_71 = arith.constant dense<0.000000e+00> : vector<8x8xf32>
    %102 = tpu.matmul %7, %101, %cst_71 {dimension_numbers = #tpu.dot_dimension_numbers<[1], [0], [0], [1], [0, 0, 1, 1], [], []>} : vector<8x128xbf16>, vector<128x8xbf16>, vector<8x8xf32> -> vector<8x8xf32>
    %103 = arith.truncf %96 : vector<8x8xf32> to vector<8x8xbf16>
    %104 = arith.truncf %99 : vector<8x8xf32> to vector<8x8xbf16>
    %cst_72 = arith.constant dense<0.000000e+00> : vector<8x8xf32>
    %105 = tpu.matmul %103, %104, %cst_72 {dimension_numbers = #tpu.dot_dimension_numbers<[1], [1], [0], [0], [0, 0, 1, 0], [], []>} : vector<8x8xbf16>, vector<8x8xbf16>, vector<8x8xf32> -> vector<8x8xf32>
    %cst_73 = arith.constant dense<0xFF800000> : vector<8xf32>
    %106 = vector.multi_reduction <maximumf>, %105, %cst_73 [1] : vector<8x8xf32> to vector<8xf32>
    %107 = vector.shape_cast %106 : vector<8xf32> to vector<8x1xf32>
    %108 = vector.broadcast %107 : vector<8x1xf32> to vector<8x8xf32>
    %109 = arith.subf %105, %108 : vector<8x8xf32>
    %110 = math.exp %109 : vector<8x8xf32>
    %cst_74 = arith.constant dense<0.000000e+00> : vector<8xf32>
    %111 = vector.multi_reduction <add>, %110, %cst_74 [1] : vector<8x8xf32> to vector<8xf32>
    %112 = vector.shape_cast %111 : vector<8xf32> to vector<8x1xf32>
    %113 = tpu.reciprocal %112 {approx = true} : vector<8x1xf32> -> vector<8x1xf32>
    %114 = vector.broadcast %113 : vector<8x1xf32> to vector<8x8xf32>
    %115 = arith.mulf %110, %114 : vector<8x8xf32>
    %116 = arith.truncf %115 : vector<8x8xf32> to vector<8x8xbf16>
    %117 = arith.truncf %102 : vector<8x8xf32> to vector<8x8xbf16>
    %cst_75 = arith.constant dense<0.000000e+00> : vector<8x8xf32>
    %118 = tpu.matmul %116, %117, %cst_75 {dimension_numbers = #tpu.dot_dimension_numbers<[1], [0], [0], [1], [0, 0, 1, 1], [], []>} : vector<8x8xbf16>, vector<8x8xbf16>, vector<8x8xf32> -> vector<8x8xf32>
    %c0_76 = arith.constant 0 : index
    %c24 = arith.constant 24 : index
    %119 = vector.load %arg11[%c0_76, %c24] : memref<8x32xf32, #tpu.memory_space<vmem>>, vector<8x8xf32>
    tpu.vector_store %arg11[%c0_76, %c24], %118 {strides = array<i32>} : memref<8x32xf32, #tpu.memory_space<vmem>>, vector<8x8xf32>,
    %c0_77 = arith.constant 0 : index
    %c0_78 = arith.constant 0 : index
    %120 = vector.load %arg11[%c0_77, %c0_78] : memref<8x32xf32, #tpu.memory_space<vmem>>, vector<8x32xf32>
    %121 = arith.truncf %120 : vector<8x32xf32> to vector<8x32xbf16>
    %c0_79 = arith.constant 0 : index
    %c0_80 = arith.constant 0 : index
    %122 = vector.load %arg7[%c0_79, %c0_80] : memref<32x128xbf16, #tpu.memory_space<vmem>>, vector<32x128xbf16>
    %cst_81 = arith.constant dense<0.000000e+00> : vector<8x128xf32>
    %123 = tpu.matmul %121, %122, %cst_81 {dimension_numbers = #tpu.dot_dimension_numbers<[1], [0], [0], [1], [0, 0, 1, 1], [], []>} : vector<8x32xbf16>, vector<32x128xbf16>, vector<8x128xf32> -> vector<8x128xf32>
    %124 = arith.addf %123, %1 : vector<8x128xf32>
    %c0_82 = arith.constant 0 : index
    %c0_83 = arith.constant 0 : index
    %125 = vector.load %arg8[%c0_82, %c0_83] : memref<1x128xf32, #tpu.memory_space<vmem>>, vector<1x128xf32>
    %c0_84 = arith.constant 0 : index
    %c0_85 = arith.constant 0 : index
    %126 = vector.load %arg9[%c0_84, %c0_85] : memref<1x128xf32, #tpu.memory_space<vmem>>, vector<1x128xf32>
    %cst_86 = arith.constant dense<0.000000e+00> : vector<8xf32>
    %127 = vector.multi_reduction <add>, %124, %cst_86 [1] : vector<8x128xf32> to vector<8xf32>
    %128 = vector.shape_cast %127 : vector<8xf32> to vector<8x1xf32>
    %cst_87 = arith.constant 3.125000e-02 : f32
    %129 = vector.broadcast %cst_87 : f32 to vector<8x1xf32>
    %130 = arith.mulf %128, %129 : vector<8x1xf32>
    %131 = vector.broadcast %130 : vector<8x1xf32> to vector<8x128xf32>
    %132 = arith.subf %124, %131 : vector<8x128xf32>
    %133 = tpu.iota {dimensions = array<i32: 1>} : vector<1x128xi32>
    %c32_i32 = arith.constant 32 : i32
    %134 = vector.broadcast %c32_i32 : i32 to vector<1x128xi32>
    %135 = arith.cmpi slt, %133, %134 : vector<1x128xi32>
    %cst_88 = arith.constant 0.000000e+00 : f32
    %136 = vector.shape_cast %135 : vector<1x128xi1> to vector<1x128xi1>
    %137 = vector.broadcast %136 : vector<1x128xi1> to vector<8x128xi1>
    %138 = vector.broadcast %cst_88 : f32 to vector<8x128xf32>
    %139 = arith.select %137, %132, %138 : vector<8x128xi1>, vector<8x128xf32>
    %140 = arith.mulf %139, %139 : vector<8x128xf32>
    %cst_89 = arith.constant dense<0.000000e+00> : vector<8xf32>
    %141 = vector.multi_reduction <add>, %140, %cst_89 [1] : vector<8x128xf32> to vector<8xf32>
    %142 = vector.shape_cast %141 : vector<8xf32> to vector<8x1xf32>
    %cst_90 = arith.constant 3.125000e-02 : f32
    %143 = vector.broadcast %cst_90 : f32 to vector<8x1xf32>
    %144 = arith.mulf %142, %143 : vector<8x1xf32>
    %cst_91 = arith.constant 9.99999974E-6 : f32
    %145 = vector.broadcast %cst_91 : f32 to vector<8x1xf32>
    %146 = arith.addf %144, %145 : vector<8x1xf32>
    %147 = math.rsqrt %146 : vector<8x1xf32>
    %148 = vector.broadcast %147 : vector<8x1xf32> to vector<8x128xf32>
    %149 = arith.mulf %139, %148 : vector<8x128xf32>
    %150 = vector.broadcast %125 : vector<1x128xf32> to vector<8x128xf32>
    %151 = arith.mulf %149, %150 : vector<8x128xf32>
    %152 = vector.broadcast %126 : vector<1x128xf32> to vector<8x128xf32>
    %153 = arith.addf %151, %152 : vector<8x128xf32>
    %c0_92 = arith.constant 0 : index
    %c0_93 = arith.constant 0 : index
    %c0_94 = arith.constant 0 : index
    %154 = vector.load %arg10[%c0_92, %c0_93, %c0_94] : memref<1x8x128xf32, #tpu.memory_space<vmem>>, vector<1x8x128xf32>
    %155 = vector.shape_cast %154 : vector<1x8x128xf32> to vector<8x128xf32>
    %156 = vector.shape_cast %153 : vector<8x128xf32> to vector<1x8x128xf32>
    tpu.vector_store %arg10[%c0_92, %c0_93, %c0_94], %156 {strides = array<i32>} : memref<1x8x128xf32, #tpu.memory_space<vmem>>, vector<1x8x128xf32>,
    return
  }
  func.func @transform_0(%arg0: i32, %arg1: i32) -> (i32, i32, i32) {
    %c0_i32 = arith.constant 0 : i32
    %c0_i32_0 = arith.constant 0 : i32
    return %arg0, %arg1, %c0_i32 : i32, i32, i32
  }
  func.func @transform_1(%arg0: i32, %arg1: i32) -> (i32, i32, i32) {
    %c0_i32 = arith.constant 0 : i32
    %c0_i32_0 = arith.constant 0 : i32
    %c0_i32_1 = arith.constant 0 : i32
    return %arg0, %c0_i32, %c0_i32_0 : i32, i32, i32
  }
  func.func @transform_2(%arg0: i32, %arg1: i32) -> (i32, i32, i32) {
    %c0_i32 = arith.constant 0 : i32
    %c0_i32_0 = arith.constant 0 : i32
    %c0_i32_1 = arith.constant 0 : i32
    %c0_i32_2 = arith.constant 0 : i32
    return %c0_i32, %c0_i32_0, %c0_i32_1 : i32, i32, i32
  }
  func.func @transform_3(%arg0: i32, %arg1: i32) -> (i32, i32, i32) {
    %c0_i32 = arith.constant 0 : i32
    %c0_i32_0 = arith.constant 0 : i32
    %c0_i32_1 = arith.constant 0 : i32
    %c0_i32_2 = arith.constant 0 : i32
    return %c0_i32, %c0_i32_0, %c0_i32_1 : i32, i32, i32
  }
  func.func @transform_4(%arg0: i32, %arg1: i32) -> (i32, i32, i32) {
    %c0_i32 = arith.constant 0 : i32
    %c0_i32_0 = arith.constant 0 : i32
    %c0_i32_1 = arith.constant 0 : i32
    %c0_i32_2 = arith.constant 0 : i32
    return %c0_i32, %c0_i32_0, %c0_i32_1 : i32, i32, i32
  }
  func.func @transform_5(%arg0: i32, %arg1: i32) -> (i32, i32) {
    %c0_i32 = arith.constant 0 : i32
    %c0_i32_0 = arith.constant 0 : i32
    %c0_i32_1 = arith.constant 0 : i32
    return %c0_i32, %c0_i32_0 : i32, i32
  }
  func.func @transform_6(%arg0: i32, %arg1: i32) -> (i32, i32) {
    %c0_i32 = arith.constant 0 : i32
    %c0_i32_0 = arith.constant 0 : i32
    %c0_i32_1 = arith.constant 0 : i32
    return %c0_i32, %c0_i32_0 : i32, i32
  }
  func.func @transform_7(%arg0: i32, %arg1: i32) -> (i32, i32) {
    %c0_i32 = arith.constant 0 : i32
    %c0_i32_0 = arith.constant 0 : i32
    %c0_i32_1 = arith.constant 0 : i32
    return %c0_i32, %c0_i32_0 : i32, i32
  }
  func.func @transform_8(%arg0: i32, %arg1: i32) -> (i32, i32, i32) {
    %c0_i32 = arith.constant 0 : i32
    %c0_i32_0 = arith.constant 0 : i32
    return %arg0, %arg1, %c0_i32 : i32, i32, i32
  }
}

module attributes {stable_mosaic.version = 11 : i64} {
  func.func @_ffn_res_ln_proj_kernel(%arg0: i32, %arg1: memref<16x128xf32, #tpu.memory_space<vmem>>, %arg2: memref<128x64xbf16, #tpu.memory_space<vmem>>, %arg3: memref<1x64xf32, #tpu.memory_space<vmem>>, %arg4: memref<64x128xbf16, #tpu.memory_space<vmem>>, %arg5: memref<1x128xf32, #tpu.memory_space<vmem>>, %arg6: memref<1x128xf32, #tpu.memory_space<vmem>>, %arg7: memref<1x128xf32, #tpu.memory_space<vmem>>, %arg8: memref<128x128xf32, #tpu.memory_space<vmem>>, %arg9: memref<16x128xf32, #tpu.memory_space<vmem>>) attributes {dimension_semantics = [#tpu.dimension_semantics<parallel>], iteration_bounds = array<i64: 1>, scalar_prefetch = 0 : i64, scratch_operands = 0 : i64, tpu.core_type = #tpu.core_type<tc>, window_params = [{transform_indices = @transform_0, window_bounds = array<i64: 16, 128>}, {pipeline_mode = #tpu.pipeline_mode<synchronous>, transform_indices = @transform_1, window_bounds = array<i64: 128, 64>}, {pipeline_mode = #tpu.pipeline_mode<synchronous>, transform_indices = @transform_2, window_bounds = array<i64: 1, 64>}, {pipeline_mode = #tpu.pipeline_mode<synchronous>, transform_indices = @transform_3, window_bounds = array<i64: 64, 128>}, {pipeline_mode = #tpu.pipeline_mode<synchronous>, transform_indices = @transform_4, window_bounds = array<i64: 1, 128>}, {pipeline_mode = #tpu.pipeline_mode<synchronous>, transform_indices = @transform_5, window_bounds = array<i64: 1, 128>}, {pipeline_mode = #tpu.pipeline_mode<synchronous>, transform_indices = @transform_6, window_bounds = array<i64: 1, 128>}, {pipeline_mode = #tpu.pipeline_mode<synchronous>, transform_indices = @transform_7, window_bounds = array<i64: 128, 128>}, {transform_indices = @transform_8, window_bounds = array<i64: 16, 128>}]} {
    %c0 = arith.constant 0 : index
    %c0_0 = arith.constant 0 : index
    %0 = vector.load %arg1[%c0, %c0_0] : memref<16x128xf32, #tpu.memory_space<vmem>>, vector<16x128xf32>
    %c0_1 = arith.constant 0 : index
    %c0_2 = arith.constant 0 : index
    %1 = vector.load %arg1[%c0_1, %c0_2] : memref<16x128xf32, #tpu.memory_space<vmem>>, vector<16x128xf32>
    %2 = arith.truncf %1 : vector<16x128xf32> to vector<16x128xbf16>
    %c0_3 = arith.constant 0 : index
    %c0_4 = arith.constant 0 : index
    %3 = vector.load %arg2[%c0_3, %c0_4] : memref<128x64xbf16, #tpu.memory_space<vmem>>, vector<128x64xbf16>
    %cst = arith.constant dense<0.000000e+00> : vector<16x64xf32>
    %4 = tpu.matmul %2, %3, %cst {dimension_numbers = #tpu.dot_dimension_numbers<[1], [0], [0], [1], [0, 0, 1, 1], [], []>} : vector<16x128xbf16>, vector<128x64xbf16>, vector<16x64xf32> -> vector<16x64xf32>
    %c0_5 = arith.constant 0 : index
    %c0_6 = arith.constant 0 : index
    %5 = vector.load %arg3[%c0_5, %c0_6] : memref<1x64xf32, #tpu.memory_space<vmem>>, vector<1x64xf32>
    %6 = vector.broadcast %5 : vector<1x64xf32> to vector<16x64xf32>
    %7 = arith.addf %4, %6 : vector<16x64xf32>
    %cst_7 = arith.constant 0.000000e+00 : f32
    %8 = vector.broadcast %cst_7 : f32 to vector<16x64xf32>
    %9 = arith.maximumf %7, %8 : vector<16x64xf32>
    %10 = arith.truncf %9 : vector<16x64xf32> to vector<16x64xbf16>
    %c0_8 = arith.constant 0 : index
    %c0_9 = arith.constant 0 : index
    %11 = vector.load %arg4[%c0_8, %c0_9] : memref<64x128xbf16, #tpu.memory_space<vmem>>, vector<64x128xbf16>
    %cst_10 = arith.constant dense<0.000000e+00> : vector<16x128xf32>
    %12 = tpu.matmul %10, %11, %cst_10 {dimension_numbers = #tpu.dot_dimension_numbers<[1], [0], [0], [1], [0, 0, 1, 1], [], []>} : vector<16x64xbf16>, vector<64x128xbf16>, vector<16x128xf32> -> vector<16x128xf32>
    %c0_11 = arith.constant 0 : index
    %c0_12 = arith.constant 0 : index
    %13 = vector.load %arg5[%c0_11, %c0_12] : memref<1x128xf32, #tpu.memory_space<vmem>>, vector<1x128xf32>
    %14 = vector.broadcast %13 : vector<1x128xf32> to vector<16x128xf32>
    %15 = arith.addf %12, %14 : vector<16x128xf32>
    %16 = arith.addf %15, %0 : vector<16x128xf32>
    %c0_13 = arith.constant 0 : index
    %c0_14 = arith.constant 0 : index
    %17 = vector.load %arg6[%c0_13, %c0_14] : memref<1x128xf32, #tpu.memory_space<vmem>>, vector<1x128xf32>
    %c0_15 = arith.constant 0 : index
    %c0_16 = arith.constant 0 : index
    %18 = vector.load %arg7[%c0_15, %c0_16] : memref<1x128xf32, #tpu.memory_space<vmem>>, vector<1x128xf32>
    %cst_17 = arith.constant dense<0.000000e+00> : vector<16xf32>
    %19 = vector.multi_reduction <add>, %16, %cst_17 [1] : vector<16x128xf32> to vector<16xf32>
    %20 = vector.shape_cast %19 : vector<16xf32> to vector<16x1xf32>
    %cst_18 = arith.constant 3.125000e-02 : f32
    %21 = vector.broadcast %cst_18 : f32 to vector<16x1xf32>
    %22 = arith.mulf %20, %21 : vector<16x1xf32>
    %23 = vector.broadcast %22 : vector<16x1xf32> to vector<16x128xf32>
    %24 = arith.subf %16, %23 : vector<16x128xf32>
    %25 = tpu.iota {dimensions = array<i32: 1>} : vector<1x128xi32>
    %c32_i32 = arith.constant 32 : i32
    %26 = vector.broadcast %c32_i32 : i32 to vector<1x128xi32>
    %27 = arith.cmpi slt, %25, %26 : vector<1x128xi32>
    %cst_19 = arith.constant 0.000000e+00 : f32
    %28 = vector.shape_cast %27 : vector<1x128xi1> to vector<1x128xi1>
    %29 = vector.broadcast %28 : vector<1x128xi1> to vector<16x128xi1>
    %30 = vector.broadcast %cst_19 : f32 to vector<16x128xf32>
    %31 = arith.select %29, %24, %30 : vector<16x128xi1>, vector<16x128xf32>
    %32 = arith.mulf %31, %31 : vector<16x128xf32>
    %cst_20 = arith.constant dense<0.000000e+00> : vector<16xf32>
    %33 = vector.multi_reduction <add>, %32, %cst_20 [1] : vector<16x128xf32> to vector<16xf32>
    %34 = vector.shape_cast %33 : vector<16xf32> to vector<16x1xf32>
    %cst_21 = arith.constant 3.125000e-02 : f32
    %35 = vector.broadcast %cst_21 : f32 to vector<16x1xf32>
    %36 = arith.mulf %34, %35 : vector<16x1xf32>
    %cst_22 = arith.constant 9.99999974E-6 : f32
    %37 = vector.broadcast %cst_22 : f32 to vector<16x1xf32>
    %38 = arith.addf %36, %37 : vector<16x1xf32>
    %39 = math.rsqrt %38 : vector<16x1xf32>
    %40 = vector.broadcast %39 : vector<16x1xf32> to vector<16x128xf32>
    %41 = arith.mulf %31, %40 : vector<16x128xf32>
    %42 = vector.broadcast %17 : vector<1x128xf32> to vector<16x128xf32>
    %43 = arith.mulf %41, %42 : vector<16x128xf32>
    %44 = vector.broadcast %18 : vector<1x128xf32> to vector<16x128xf32>
    %45 = arith.addf %43, %44 : vector<16x128xf32>
    %c0_23 = arith.constant 0 : index
    %c0_24 = arith.constant 0 : index
    %46 = vector.load %arg8[%c0_23, %c0_24] : memref<128x128xf32, #tpu.memory_space<vmem>>, vector<128x128xf32>
    %cst_25 = arith.constant dense<0.000000e+00> : vector<16x128xf32>
    %47 = tpu.matmul %45, %46, %cst_25 {dimension_numbers = #tpu.dot_dimension_numbers<[1], [0], [0], [1], [0, 0, 1, 1], [], []>} : vector<16x128xf32>, vector<128x128xf32>, vector<16x128xf32> -> vector<16x128xf32>
    %c0_26 = arith.constant 0 : index
    %c0_27 = arith.constant 0 : index
    %48 = vector.load %arg9[%c0_26, %c0_27] : memref<16x128xf32, #tpu.memory_space<vmem>>, vector<16x128xf32>
    tpu.vector_store %arg9[%c0_26, %c0_27], %47 {strides = array<i32>} : memref<16x128xf32, #tpu.memory_space<vmem>>, vector<16x128xf32>,
    return
  }
  func.func @transform_0(%arg0: i32) -> (i32, i32) {
    %c0_i32 = arith.constant 0 : i32
    %c0_i32_0 = arith.constant 0 : i32
    return %arg0, %c0_i32 : i32, i32
  }
  func.func @transform_1(%arg0: i32) -> (i32, i32) {
    %c0_i32 = arith.constant 0 : i32
    %c0_i32_0 = arith.constant 0 : i32
    %c0_i32_1 = arith.constant 0 : i32
    return %c0_i32, %c0_i32_0 : i32, i32
  }
  func.func @transform_2(%arg0: i32) -> (i32, i32) {
    %c0_i32 = arith.constant 0 : i32
    %c0_i32_0 = arith.constant 0 : i32
    %c0_i32_1 = arith.constant 0 : i32
    return %c0_i32, %c0_i32_0 : i32, i32
  }
  func.func @transform_3(%arg0: i32) -> (i32, i32) {
    %c0_i32 = arith.constant 0 : i32
    %c0_i32_0 = arith.constant 0 : i32
    %c0_i32_1 = arith.constant 0 : i32
    return %c0_i32, %c0_i32_0 : i32, i32
  }
  func.func @transform_4(%arg0: i32) -> (i32, i32) {
    %c0_i32 = arith.constant 0 : i32
    %c0_i32_0 = arith.constant 0 : i32
    %c0_i32_1 = arith.constant 0 : i32
    return %c0_i32, %c0_i32_0 : i32, i32
  }
  func.func @transform_5(%arg0: i32) -> (i32, i32) {
    %c0_i32 = arith.constant 0 : i32
    %c0_i32_0 = arith.constant 0 : i32
    %c0_i32_1 = arith.constant 0 : i32
    return %c0_i32, %c0_i32_0 : i32, i32
  }
  func.func @transform_6(%arg0: i32) -> (i32, i32) {
    %c0_i32 = arith.constant 0 : i32
    %c0_i32_0 = arith.constant 0 : i32
    %c0_i32_1 = arith.constant 0 : i32
    return %c0_i32, %c0_i32_0 : i32, i32
  }
  func.func @transform_7(%arg0: i32) -> (i32, i32) {
    %c0_i32 = arith.constant 0 : i32
    %c0_i32_0 = arith.constant 0 : i32
    %c0_i32_1 = arith.constant 0 : i32
    return %c0_i32, %c0_i32_0 : i32, i32
  }
  func.func @transform_8(%arg0: i32) -> (i32, i32) {
    %c0_i32 = arith.constant 0 : i32
    %c0_i32_0 = arith.constant 0 : i32
    return %arg0, %c0_i32 : i32, i32
  }
}

</mosaic_0001>

<llo_original>
// kernel: decoder_forward.11
$region0: #{decoder_forward.11}
  #allocation0 [shape = 'u32[]', space=smem, size = 0x4, offset = 0x4, fixed_abs, tag = 'smem constant byte address 0x4 - core index']
  #allocation1 [shape = 'u32[144,128]{1,0:T(1,128)}', space=vmem, size = 0x12000, scoped, tag = 'internal scratch']
  %s0 = inlined_call_operand.vmem [shape: f32[16,128], index: 0, kind: input, shape index: {}]
  %s1 = inlined_call_operand.vmem [shape: bf16[128,64], index: 1, kind: input, shape index: {}]
  %s2 = inlined_call_operand.vmem [shape: f32[1,64], index: 2, kind: input, shape index: {}]
  %s3 = inlined_call_operand.vmem [shape: bf16[64,128], index: 3, kind: input, shape index: {}]
  %s4 = inlined_call_operand.vmem [shape: f32[1,128], index: 4, kind: input, shape index: {}]
  %s5 = inlined_call_operand.vmem [shape: f32[1,128], index: 5, kind: input, shape index: {}]
  %s6 = inlined_call_operand.vmem [shape: f32[1,128], index: 6, kind: input, shape index: {}]
  %s7 = inlined_call_operand.vmem [shape: f32[128,128], index: 7, kind: input, shape index: {}]
  %s8 = inlined_call_operand.vmem [shape: f32[16,128], index: 8, kind: output, shape index: {}]
  %s9 = sld [smem:[#allocation0]]
  $region42: #{decoder_forward.11} parent=0
    _
  %s11 = ssub.s32 1, %s9
  %s12 = scalar_select 0, %s11, %s9
  // Predicated region
  $region2: #{decoder_forward.11} parent=0 // pred_check
    _
  $region3: #{decoder_forward.11} parent=0 // pred_check_branch
    %14 = sbr.rel (0) target = $region5
  $region4: #{decoder_forward.11} parent=0 // pred_region
    _
  $region5: #{decoder_forward.11} parent=0 // pred_fallthru
    _
  // Predicated region
  $region6: #{decoder_forward.11} parent=0 // pred_check
    _
  $region7: #{decoder_forward.11} parent=0 // pred_check_branch
    %16 = sbr.rel (0) target = $region9
  $region8: #{decoder_forward.11} parent=0 // pred_region
    _
  $region9: #{decoder_forward.11} parent=0 // pred_fallthru
    _
  // Predicated region
  $region10: #{decoder_forward.11} parent=0 // pred_check
    _
  $region11: #{decoder_forward.11} parent=0 // pred_check_branch
    %18 = sbr.rel (0) target = $region13
  $region12: #{decoder_forward.11} parent=0 // pred_region
    _
  $region13: #{decoder_forward.11} parent=0 // pred_fallthru
    _
  // Predicated region
  $region14: #{decoder_forward.11} parent=0 // pred_check
    _
  $region15: #{decoder_forward.11} parent=0 // pred_check_branch
    %20 = sbr.rel (0) target = $region17
  $region16: #{decoder_forward.11} parent=0 // pred_region
    _
  $region17: #{decoder_forward.11} parent=0 // pred_fallthru
    _
  // Predicated region
  $region18: #{decoder_forward.11} parent=0 // pred_check
    _
  $region19: #{decoder_forward.11} parent=0 // pred_check_branch
    %22 = sbr.rel (0) target = $region21
  $region20: #{decoder_forward.11} parent=0 // pred_region
    _
  $region21: #{decoder_forward.11} parent=0 // pred_fallthru
    _
  // Predicated region
  $region22: #{decoder_forward.11} parent=0 // pred_check
    _
  $region23: #{decoder_forward.11} parent=0 // pred_check_branch
    %24 = sbr.rel (0) target = $region25
  $region24: #{decoder_forward.11} parent=0 // pred_region
    _
  $region25: #{decoder_forward.11} parent=0 // pred_fallthru
    _
  // Predicated region
  $region26: #{decoder_forward.11} parent=0 // pred_check
    _
  $region27: #{decoder_forward.11} parent=0 // pred_check_branch
    %26 = sbr.rel (0) target = $region29
  $region28: #{decoder_forward.11} parent=0 // pred_region
    _
  $region29: #{decoder_forward.11} parent=0 // pred_fallthru
    _
  // Predicated region
  $region30: #{decoder_forward.11} parent=0 // pred_check
    _
  $region31: #{decoder_forward.11} parent=0 // pred_check_branch
    %28 = sbr.rel (0) target = $region33
  $region32: #{decoder_forward.11} parent=0 // pred_region
    _
  $region33: #{decoder_forward.11} parent=0 // pred_fallthru
    _
  %v30 = vld [vmem:[%s0] sm:$0xff]
  %v31 = vld [vmem:[%s0 + $0x8] sm:$0xff]
  %v32 = vpack.c.bf16 %v31, %v30
  %v33 = vld [vmem:[%s1] sm:$0xf]
  %v34 = vld [vmem:[%s1 + $0x4] sm:$0xf]
  %v35 = vld [vmem:[%s1 + $0x8] sm:$0xf]
  %v36 = vld [vmem:[%s1 + $0xc] sm:$0xf]
  %v37 = vld [vmem:[%s1 + $0x10] sm:$0xf]
  %v38 = vld [vmem:[%s1 + $0x14] sm:$0xf]
  %v39 = vld [vmem:[%s1 + $0x18] sm:$0xf]
  %v40 = vld [vmem:[%s1 + $0x1c] sm:$0xf]
  %v41 = vld [vmem:[%s1 + $0x20] sm:$0xf]
  %v42 = vld [vmem:[%s1 + $0x24] sm:$0xf]
  %v43 = vld [vmem:[%s1 + $0x28] sm:$0xf]
  %v44 = vld [vmem:[%s1 + $0x2c] sm:$0xf]
  %v45 = vld [vmem:[%s1 + $0x30] sm:$0xf]
  %v46 = vld [vmem:[%s1 + $0x34] sm:$0xf]
  %v47 = vld [vmem:[%s1 + $0x38] sm:$0xf]
  %v48 = vld [vmem:[%s1 + $0x3c] sm:$0xf]
  %v49 = vld [vmem:[%s2] sm:$0x1]
  %v51 = vlaneseq
  %v52 = vshrl.u32 %v51, 7
  %v53 = vsub.s32 0, %v52
  %v54 = vrot.slane %v49, %v53
  %v72 = vunpack.c.l.b16 %v33
  %v73 = vunpack.c.l.b16 %v34
  %v74 = vunpack.c.l.b16 %v35
  %v75 = vunpack.c.l.b16 %v36
  %v76 = vunpack.c.l.b16 %v37
  %v77 = vunpack.c.l.b16 %v38
  %v78 = vunpack.c.l.b16 %v39
  %v79 = vunpack.c.l.b16 %v40
  %v80 = vunpack.c.l.b16 %v41
  %v81 = vunpack.c.l.b16 %v42
  %v82 = vunpack.c.l.b16 %v43
  %v83 = vunpack.c.l.b16 %v44
  %v84 = vunpack.c.l.b16 %v45
  %v85 = vunpack.c.l.b16 %v46
  %v86 = vunpack.c.l.b16 %v47
  %v87 = vunpack.c.l.b16 %v48
  %v88 = vpack.c.b16 %v73, %v72
  %v89 = vpack.c.b16 %v75, %v74
  %v90 = vpack.c.b16 %v77, %v76
  %v91 = vpack.c.b16 %v79, %v78
  %v92 = vpack.c.b16 %v81, %v80
  %v93 = vpack.c.b16 %v83, %v82
  %v94 = vpack.c.b16 %v85, %v84
  %v95 = vpack.c.b16 %v87, %v86
  %104 = vmatprep.subr.bf16.mxu0 0
  %105 = vmatpush1.bf16.msra.mxu0 %v88
  %106 = vmatprep.subr.bf16.mxu0 0
  %107 = vmatpush1.bf16.msra.mxu0 %v89
  %108 = vmatprep.subr.bf16.mxu0 0
  %109 = vmatpush1.bf16.msra.mxu0 %v90
  %110 = vmatprep.subr.bf16.mxu0 0
  %111 = vmatpush1.bf16.msra.mxu0 %v91
  %112 = vmatprep.subr.bf16.mxu0 0
  %113 = vmatpush1.bf16.msra.mxu0 %v92
  %114 = vmatprep.subr.bf16.mxu0 0
  %115 = vmatpush1.bf16.msra.mxu0 %v93
  %116 = vmatprep.subr.bf16.mxu0 0
  %117 = vmatpush1.bf16.msra.mxu0 %v94
  %118 = vmatprep.subr.bf16.mxu0 0
  %119 = vmatpush1.bf16.msra.mxu0 %v95
  %120 = vmatprep.subr.bf16.mxu0 0
  %121 = vmatpush1.bf16.msra.mxu0 0
  %122 = vmatprep.subr.bf16.mxu0 0
  %123 = vmatpush1.bf16.msra.mxu0 0
  %124 = vmatprep.subr.bf16.mxu0 0
  %125 = vmatpush1.bf16.msra.mxu0 0
  %126 = vmatprep.subr.bf16.mxu0 0
  %127 = vmatpush1.bf16.msra.mxu0 0
  %128 = vmatprep.subr.bf16.mxu0 0
  %129 = vmatpush1.bf16.msra.mxu0 0
  %130 = vmatprep.subr.bf16.mxu0 0
  %131 = vmatpush1.bf16.msra.mxu0 0
  %132 = vmatprep.subr.bf16.mxu0 0
  %133 = vmatpush1.bf16.msra.mxu0 0
  %134 = vmatprep.subr.bf16.mxu0 0
  %135 = vmatpush1.bf16.msra.mxu0 0
  %136 = vmatprep.mubr.bf16.mxu0 0
  %137 = vmatmul.mubr.bf16.gmra.mrb[0].mxu0 %v32
  %v138 = vpop.f32.mrb[0].mxu0
  %v139 = vadd.f32 %v54, %v138
  %v140 = vpop.f32.mrb[0].mxu0
  %v141 = vpop.f32.mrb[0].mxu0
  %v142 = vadd.f32 %v54, %v141
  %v143 = vpop.f32.mrb[0].mxu0
  %144 = vdwg.mxu0
  %v145 = vmax.f32 %v139, 0.0
  %v146 = vmax.f32 %v142, 0.0
  %v147 = vpack.c.bf16 %v146, %v145
  %v148 = vld [vmem:[%s3] sm:$0xf]
  %v149 = vld [vmem:[%s3 + $0x4] sm:$0xf]
  %v150 = vld [vmem:[%s3 + $0x8] sm:$0xf]
  %v151 = vld [vmem:[%s3 + $0xc] sm:$0xf]
  %v152 = vld [vmem:[%s3 + $0x10] sm:$0xf]
  %v153 = vld [vmem:[%s3 + $0x14] sm:$0xf]
  %v154 = vld [vmem:[%s3 + $0x18] sm:$0xf]
  %v155 = vld [vmem:[%s3 + $0x1c] sm:$0xf]
  %v156 = vld [vmem:[%s4] sm:$0x1]
  %v158 = vlaneseq
  %v159 = vshrl.u32 %v158, 7
  %v160 = vsub.s32 0, %v159
  %v161 = vrot.slane %v156, %v160
  %v171 = vunpack.c.l.b16 %v148
  %v172 = vunpack.c.l.b16 %v149
  %v173 = vunpack.c.l.b16 %v150
  %v174 = vunpack.c.l.b16 %v151
  %v175 = vunpack.c.l.b16 %v152
  %v176 = vunpack.c.l.b16 %v153
  %v177 = vunpack.c.l.b16 %v154
  %v178 = vunpack.c.l.b16 %v155
  %v179 = vpack.c.b16 %v172, %v171
  %v180 = vpack.c.b16 %v174, %v173
  %v181 = vpack.c.b16 %v176, %v175
  %v182 = vpack.c.b16 %v178, %v177
  %vm187 = vcmask 523264
  %v189 = vsel %vm187, %v147, 0
  %191 = vmatprep.subr.bf16.mxu0 0
  %192 = vmatpush1.bf16.msra.mxu0 %v179
  %193 = vmatprep.subr.bf16.mxu0 0
  %194 = vmatpush1.bf16.msra.mxu0 %v180
  %195 = vmatprep.subr.bf16.mxu0 0
  %196 = vmatpush1.bf16.msra.mxu0 %v181
  %197 = vmatprep.subr.bf16.mxu0 0
  %198 = vmatpush1.bf16.msra.mxu0 %v182
  %199 = vmatprep.subr.bf16.mxu0 0
  %200 = vmatpush1.bf16.msra.mxu0 0
  %201 = vmatprep.subr.bf16.mxu0 0
  %202 = vmatpush1.bf16.msra.mxu0 0
  %203 = vmatprep.subr.bf16.mxu0 0
  %204 = vmatpush1.bf16.msra.mxu0 0
  %205 = vmatprep.subr.bf16.mxu0 0
  %206 = vmatpush1.bf16.msra.mxu0 0
  %207 = vmatprep.subr.bf16.mxu0 0
  %208 = vmatpush1.bf16.msra.mxu0 0
  %209 = vmatprep.subr.bf16.mxu0 0
  %210 = vmatpush1.bf16.msra.mxu0 0
  %211 = vmatprep.subr.bf16.mxu0 0
  %212 = vmatpush1.bf16.msra.mxu0 0
  %213 = vmatprep.subr.bf16.mxu0 0
  %214 = vmatpush1.bf16.msra.mxu0 0
  %215 = vmatprep.subr.bf16.mxu0 0
  %216 = vmatpush1.bf16.msra.mxu0 0
  %217 = vmatprep.subr.bf16.mxu0 0
  %218 = vmatpush1.bf16.msra.mxu0 0
  %219 = vmatprep.subr.bf16.mxu0 0
  %220 = vmatpush1.bf16.msra.mxu0 0
  %221 = vmatprep.subr.bf16.mxu0 0
  %222 = vmatpush1.bf16.msra.mxu0 0
  %223 = vmatprep.mubr.bf16.mxu0 0
  %224 = vmatmul.mubr.bf16.gmra.mrb[0].mxu0 %v189
  %v225 = vpop.f32.mrb[0].mxu0
  %v226 = vadd.f32 %v161, %v225
  %v227 = vpop.f32.mrb[0].mxu0
  %v228 = vpop.f32.mrb[0].mxu0
  %v229 = vadd.f32 %v161, %v228
  %v230 = vpop.f32.mrb[0].mxu0
  %231 = vdwg.mxu0
  %v232 = vadd.f32 %v226, %v30
  %v233 = vadd.f32 %v229, %v31
  %v234 = vld [vmem:[%s5] sm:$0x1]
  %v235 = vld [vmem:[%s6] sm:$0x1]
  %236 = vadd.xlane.f32.xlu0 %v232
  %v237 = vpop.xlane.xlu0 %236
  %238 = vadd.xlane.f32.xlu0 %v233
  %v239 = vpop.xlane.xlu0 %238
  %v240 = vmul.f32 %v237, 0.03125
  %v241 = vmul.f32 %v239, 0.03125
  %v242 = vsub.f32 %v232, %v240
  %v243 = vsub.f32 %v233, %v241
  %v244 = vlaneseq
  %v245 = vand.u32 %v244, 127
  %vm246 = vcmp.lt.s32.totalorder %v245, 32
  %v247 = vsel %vm246, 1, 0
  %vm248 = vcmp.eq.s32.totalorder %v247, 1
  %v249 = vsel %vm248, %v242, 0.0
  %v250 = vsel %vm248, %v243, 0.0
  %v251 = vmul.f32 %v249, %v249
  %v252 = vmul.f32 %v250, %v250
  %253 = vadd.xlane.f32.xlu0 %v251
  %v254 = vpop.xlane.xlu0 %253
  %255 = vadd.xlane.f32.xlu0 %v252
  %v256 = vpop.xlane.xlu0 %255
  %v257 = vmul.f32 %v254, 0.03125
  %v258 = vmul.f32 %v256, 0.03125
  %v259 = vadd.f32 %v257, 1e-05
  %v260 = vadd.f32 %v258, 1e-05
  %v261 = vrsqrt.pop %v259
  %v262 = vrsqrt.pop %v260
  %v263 = vmul.f32 %v249, %v261
  %v264 = vmul.f32 %v250, %v262
  %v266 = vlaneseq
  %v267 = vshrl.u32 %v266, 7
  %v268 = vsub.s32 0, %v267
  %v269 = vrot.slane %v234, %v268
  %v271 = vmul.f32 %v263, %v269
  %v272 = vmul.f32 %v264, %v269
  %v274 = vlaneseq
  %v275 = vshrl.u32 %v274, 7
  %v276 = vsub.s32 0, %v275
  %v277 = vrot.slane %v235, %v276
  %v279 = vadd.f32 %v271, %v277
  %v280 = vadd.f32 %v272, %v277
  %v281 = vld [vmem:[%s7] sm:$0xff]
  %v282 = vld [vmem:[%s7 + $0x8] sm:$0xff]
  %v283 = vld [vmem:[%s7 + $0x10] sm:$0xff]
  %v284 = vld [vmem:[%s7 + $0x18] sm:$0xff]
  %v285 = vld [vmem:[%s7 + $0x20] sm:$0xff]
  %v286 = vld [vmem:[%s7 + $0x28] sm:$0xff]
  %v287 = vld [vmem:[%s7 + $0x30] sm:$0xff]
  %v288 = vld [vmem:[%s7 + $0x38] sm:$0xff]
  %v289 = vld [vmem:[%s7 + $0x40] sm:$0xff]
  %v290 = vld [vmem:[%s7 + $0x48] sm:$0xff]
  %v291 = vld [vmem:[%s7 + $0x50] sm:$0xff]
  %v292 = vld [vmem:[%s7 + $0x58] sm:$0xff]
  %v293 = vld [vmem:[%s7 + $0x60] sm:$0xff]
  %v294 = vld [vmem:[%s7 + $0x68] sm:$0xff]
  %v295 = vld [vmem:[%s7 + $0x70] sm:$0xff]
  %v296 = vld [vmem:[%s7 + $0x78] sm:$0xff]
  %297 = vmatprep.subr.mxu0 0.0
  %298 = vmatpush1.msra.mxu0 %v281
  %299 = vmatprep.subr.mxu0 0.0
  %300 = vmatpush1.msra.mxu0 %v282
  %301 = vmatprep.subr.mxu0 0.0
  %302 = vmatpush1.msra.mxu0 %v283
  %303 = vmatprep.subr.mxu0 0.0
  %304 = vmatpush1.msra.mxu0 %v284
  %305 = vmatprep.subr.mxu0 0.0
  %306 = vmatpush1.msra.mxu0 %v285
  %307 = vmatprep.subr.mxu0 0.0
  %308 = vmatpush1.msra.mxu0 %v286
  %309 = vmatprep.subr.mxu0 0.0
  %310 = vmatpush1.msra.mxu0 %v287
  %311 = vmatprep.subr.mxu0 0.0
  %312 = vmatpush1.msra.mxu0 %v288
  %313 = vmatprep.subr.mxu0 0.0
  %314 = vmatpush1.msra.mxu0 %v289
  %315 = vmatprep.subr.mxu0 0.0
  %316 = vmatpush1.msra.mxu0 %v290
  %317 = vmatprep.subr.mxu0 0.0
  %318 = vmatpush1.msra.mxu0 %v291
  %319 = vmatprep.subr.mxu0 0.0
  %320 = vmatpush1.msra.mxu0 %v292
  %321 = vmatprep.subr.mxu0 0.0
  %322 = vmatpush1.msra.mxu0 %v293
  %323 = vmatprep.subr.mxu0 0.0
  %324 = vmatpush1.msra.mxu0 %v294
  %325 = vmatprep.subr.mxu0 0.0
  %326 = vmatpush1.msra.mxu0 %v295
  %327 = vmatprep.subr.mxu0 0.0
  %328 = vmatpush1.msra.mxu0 %v296
  %329 = vmatprep.subr.mxu0 0.0
  %330 = vmatpush1.msra.mxu0 0.0
  %331 = vmatprep.subr.mxu0 0.0
  %332 = vmatpush1.msra.mxu0 0.0
  %333 = vmatprep.subr.mxu0 0.0
  %334 = vmatpush1.msra.mxu0 0.0
  %335 = vmatprep.subr.mxu0 0.0
  %336 = vmatpush1.msra.mxu0 0.0
  %337 = vmatprep.subr.mxu0 0.0
  %338 = vmatpush1.msra.mxu0 0.0
  %339 = vmatprep.subr.mxu0 0.0
  %340 = vmatpush1.msra.mxu0 0.0
  %341 = vmatprep.subr.mxu0 0.0
  %342 = vmatpush1.msra.mxu0 0.0
  %343 = vmatprep.subr.mxu0 0.0
  %344 = vmatpush1.msra.mxu0 0.0
  %345 = vmatprep.subr.mxu0 0.0
  %346 = vmatpush1.msra.mxu0 0.0
  %347 = vmatprep.subr.mxu0 0.0
  %348 = vmatpush1.msra.mxu0 0.0
  %349 = vmatprep.subr.mxu0 0.0
  %350 = vmatpush1.msra.mxu0 0.0
  %351 = vmatprep.subr.mxu0 0.0
  %352 = vmatpush1.msra.mxu0 0.0
  %353 = vmatprep.subr.mxu0 0.0
  %354 = vmatpush1.msra.mxu0 0.0
  %355 = vmatprep.subr.mxu0 0.0
  %356 = vmatpush1.msra.mxu0 0.0
  %357 = vmatprep.subr.mxu0 0.0
  %358 = vmatpush1.msra.mxu0 0.0
  %359 = vmatprep.subr.mxu0 0.0
  %360 = vmatpush1.msra.mxu0 0.0
  %361 = vmatprep.mubr.f32.mxu0 0.0
  %362 = vmatmul.mubr.f32.gmra.mrb[0].mxu0 %v279
  %v363 = vpop.f32.mrb[0].mxu0
  %v364 = vadd.f32 0.0, %v363
  %v365 = vpop.f32.mrb[0].mxu0
  %366 = vmatprep.mubr.f32.mxu0 0.0
  %367 = vmatmul.mubr.f32.gmra.mrb[0].mxu0 %v280
  %v368 = vpop.f32.mrb[0].mxu0
  %v369 = vadd.f32 0.0, %v368
  %v370 = vpop.f32.mrb[0].mxu0
  %371 = vdwg.mxu0
  %372 = vst [vmem:[%s8] sm:$0xff] %v364
  %373 = vst [vmem:[%s8 + $0x8] sm:$0xff] %v369
  // Predicated region
  $region34: #{decoder_forward.11} parent=0 // pred_check
    _
  $region35: #{decoder_forward.11} parent=0 // pred_check_branch
    %375 = sbr.rel (0) target = $region37
  $region36: #{decoder_forward.11} parent=0 // pred_region
    _
  $region37: #{decoder_forward.11} parent=0 // pred_fallthru
    _
  // Predicated region
  $region38: #{decoder_forward.11} parent=0 // pred_check
    _
  $region39: #{decoder_forward.11} parent=0 // pred_check_branch
    %377 = sbr.rel (0) target = $region41
  $region40: #{decoder_forward.11} parent=0 // pred_region
    _
  $region41: #{decoder_forward.11} parent=0 // pred_fallthru
    _

// kernel: decoder_forward.8
$region0: #{decoder_forward.8}
  #allocation0 [shape = 'u32[]', space=smem, size = 0x4, offset = 0x4, fixed_abs, tag = 'smem constant byte address 0x4 - core index']
  #allocation1 [shape = 'u32[144,128]{1,0:T(1,128)}', space=vmem, size = 0x12000, scoped, tag = 'internal scratch']
  %s0 = inlined_call_operand.vmem [shape: f32[16,128], index: 0, kind: input, shape index: {}]
  %s1 = inlined_call_operand.vmem [shape: bf16[128,64], index: 1, kind: input, shape index: {}]
  %s2 = inlined_call_operand.vmem [shape: f32[1,64], index: 2, kind: input, shape index: {}]
  %s3 = inlined_call_operand.vmem [shape: bf16[64,128], index: 3, kind: input, shape index: {}]
  %s4 = inlined_call_operand.vmem [shape: f32[1,128], index: 4, kind: input, shape index: {}]
  %s5 = inlined_call_operand.vmem [shape: f32[1,128], index: 5, kind: input, shape index: {}]
  %s6 = inlined_call_operand.vmem [shape: f32[1,128], index: 6, kind: input, shape index: {}]
  %s7 = inlined_call_operand.vmem [shape: f32[16,128], index: 7, kind: output, shape index: {}]
  %s8 = sld [smem:[#allocation0]]
  $region38: #{decoder_forward.8} parent=0
    _
  %s10 = ssub.s32 1, %s8
  %s11 = scalar_select 0, %s10, %s8
  // Predicated region
  $region2: #{decoder_forward.8} parent=0 // pred_check
    _
  $region3: #{decoder_forward.8} parent=0 // pred_check_branch
    %13 = sbr.rel (0) target = $region5
  $region4: #{decoder_forward.8} parent=0 // pred_region
    _
  $region5: #{decoder_forward.8} parent=0 // pred_fallthru
    _
  // Predicated region
  $region6: #{decoder_forward.8} parent=0 // pred_check
    _
  $region7: #{decoder_forward.8} parent=0 // pred_check_branch
    %15 = sbr.rel (0) target = $region9
  $region8: #{decoder_forward.8} parent=0 // pred_region
    _
  $region9: #{decoder_forward.8} parent=0 // pred_fallthru
    _
  // Predicated region
  $region10: #{decoder_forward.8} parent=0 // pred_check
    _
  $region11: #{decoder_forward.8} parent=0 // pred_check_branch
    %17 = sbr.rel (0) target = $region13
  $region12: #{decoder_forward.8} parent=0 // pred_region
    _
  $region13: #{decoder_forward.8} parent=0 // pred_fallthru
    _
  // Predicated region
  $region14: #{decoder_forward.8} parent=0 // pred_check
    _
  $region15: #{decoder_forward.8} parent=0 // pred_check_branch
    %19 = sbr.rel (0) target = $region17
  $region16: #{decoder_forward.8} parent=0 // pred_region
    _
  $region17: #{decoder_forward.8} parent=0 // pred_fallthru
    _
  // Predicated region
  $region18: #{decoder_forward.8} parent=0 // pred_check
    _
  $region19: #{decoder_forward.8} parent=0 // pred_check_branch
    %21 = sbr.rel (0) target = $region21
  $region20: #{decoder_forward.8} parent=0 // pred_region
    _
  $region21: #{decoder_forward.8} parent=0 // pred_fallthru
    _
  // Predicated region
  $region22: #{decoder_forward.8} parent=0 // pred_check
    _
  $region23: #{decoder_forward.8} parent=0 // pred_check_branch
    %23 = sbr.rel (0) target = $region25
  $region24: #{decoder_forward.8} parent=0 // pred_region
    _
  $region25: #{decoder_forward.8} parent=0 // pred_fallthru
    _
  // Predicated region
  $region26: #{decoder_forward.8} parent=0 // pred_check
    _
  $region27: #{decoder_forward.8} parent=0 // pred_check_branch
    %25 = sbr.rel (0) target = $region29
  $region28: #{decoder_forward.8} parent=0 // pred_region
    _
  $region29: #{decoder_forward.8} parent=0 // pred_fallthru
    _
  %v27 = vld [vmem:[%s0] sm:$0xff]
  %v28 = vld [vmem:[%s0 + $0x8] sm:$0xff]
  %v29 = vpack.c.bf16 %v28, %v27
  %v30 = vld [vmem:[%s1] sm:$0xf]
  %v31 = vld [vmem:[%s1 + $0x4] sm:$0xf]
  %v32 = vld [vmem:[%s1 + $0x8] sm:$0xf]
  %v33 = vld [vmem:[%s1 + $0xc] sm:$0xf]
  %v34 = vld [vmem:[%s1 + $0x10] sm:$0xf]
  %v35 = vld [vmem:[%s1 + $0x14] sm:$0xf]
  %v36 = vld [vmem:[%s1 + $0x18] sm:$0xf]
  %v37 = vld [vmem:[%s1 + $0x1c] sm:$0xf]
  %v38 = vld [vmem:[%s1 + $0x20] sm:$0xf]
  %v39 = vld [vmem:[%s1 + $0x24] sm:$0xf]
  %v40 = vld [vmem:[%s1 + $0x28] sm:$0xf]
  %v41 = vld [vmem:[%s1 + $0x2c] sm:$0xf]
  %v42 = vld [vmem:[%s1 + $0x30] sm:$0xf]
  %v43 = vld [vmem:[%s1 + $0x34] sm:$0xf]
  %v44 = vld [vmem:[%s1 + $0x38] sm:$0xf]
  %v45 = vld [vmem:[%s1 + $0x3c] sm:$0xf]
  %v46 = vld [vmem:[%s2] sm:$0x1]
  %v48 = vlaneseq
  %v49 = vshrl.u32 %v48, 7
  %v50 = vsub.s32 0, %v49
  %v51 = vrot.slane %v46, %v50
  %v69 = vunpack.c.l.b16 %v30
  %v70 = vunpack.c.l.b16 %v31
  %v71 = vunpack.c.l.b16 %v32
  %v72 = vunpack.c.l.b16 %v33
  %v73 = vunpack.c.l.b16 %v34
  %v74 = vunpack.c.l.b16 %v35
  %v75 = vunpack.c.l.b16 %v36
  %v76 = vunpack.c.l.b16 %v37
  %v77 = vunpack.c.l.b16 %v38
  %v78 = vunpack.c.l.b16 %v39
  %v79 = vunpack.c.l.b16 %v40
  %v80 = vunpack.c.l.b16 %v41
  %v81 = vunpack.c.l.b16 %v42
  %v82 = vunpack.c.l.b16 %v43
  %v83 = vunpack.c.l.b16 %v44
  %v84 = vunpack.c.l.b16 %v45
  %v85 = vpack.c.b16 %v70, %v69
  %v86 = vpack.c.b16 %v72, %v71
  %v87 = vpack.c.b16 %v74, %v73
  %v88 = vpack.c.b16 %v76, %v75
  %v89 = vpack.c.b16 %v78, %v77
  %v90 = vpack.c.b16 %v80, %v79
  %v91 = vpack.c.b16 %v82, %v81
  %v92 = vpack.c.b16 %v84, %v83
  %101 = vmatprep.subr.bf16.mxu0 0
  %102 = vmatpush1.bf16.msra.mxu0 %v85
  %103 = vmatprep.subr.bf16.mxu0 0
  %104 = vmatpush1.bf16.msra.mxu0 %v86
  %105 = vmatprep.subr.bf16.mxu0 0
  %106 = vmatpush1.bf16.msra.mxu0 %v87
  %107 = vmatprep.subr.bf16.mxu0 0
  %108 = vmatpush1.bf16.msra.mxu0 %v88
  %109 = vmatprep.subr.bf16.mxu0 0
  %110 = vmatpush1.bf16.msra.mxu0 %v89
  %111 = vmatprep.subr.bf16.mxu0 0
  %112 = vmatpush1.bf16.msra.mxu0 %v90
  %113 = vmatprep.subr.bf16.mxu0 0
  %114 = vmatpush1.bf16.msra.mxu0 %v91
  %115 = vmatprep.subr.bf16.mxu0 0
  %116 = vmatpush1.bf16.msra.mxu0 %v92
  %117 = vmatprep.subr.bf16.mxu0 0
  %118 = vmatpush1.bf16.msra.mxu0 0
  %119 = vmatprep.subr.bf16.mxu0 0
  %120 = vmatpush1.bf16.msra.mxu0 0
  %121 = vmatprep.subr.bf16.mxu0 0
  %122 = vmatpush1.bf16.msra.mxu0 0
  %123 = vmatprep.subr.bf16.mxu0 0
  %124 = vmatpush1.bf16.msra.mxu0 0
  %125 = vmatprep.subr.bf16.mxu0 0
  %126 = vmatpush1.bf16.msra.mxu0 0
  %127 = vmatprep.subr.bf16.mxu0 0
  %128 = vmatpush1.bf16.msra.mxu0 0
  %129 = vmatprep.subr.bf16.mxu0 0
  %130 = vmatpush1.bf16.msra.mxu0 0
  %131 = vmatprep.subr.bf16.mxu0 0
  %132 = vmatpush1.bf16.msra.mxu0 0
  %133 = vmatprep.mubr.bf16.mxu0 0
  %134 = vmatmul.mubr.bf16.gmra.mrb[0].mxu0 %v29
  %v135 = vpop.f32.mrb[0].mxu0
  %v136 = vadd.f32 %v51, %v135
  %v137 = vpop.f32.mrb[0].mxu0
  %v138 = vpop.f32.mrb[0].mxu0
  %v139 = vadd.f32 %v51, %v138
  %v140 = vpop.f32.mrb[0].mxu0
  %141 = vdwg.mxu0
  %v142 = vmax.f32 %v136, 0.0
  %v143 = vmax.f32 %v139, 0.0
  %v144 = vpack.c.bf16 %v143, %v142
  %v145 = vld [vmem:[%s3] sm:$0xf]
  %v146 = vld [vmem:[%s3 + $0x4] sm:$0xf]
  %v147 = vld [vmem:[%s3 + $0x8] sm:$0xf]
  %v148 = vld [vmem:[%s3 + $0xc] sm:$0xf]
  %v149 = vld [vmem:[%s3 + $0x10] sm:$0xf]
  %v150 = vld [vmem:[%s3 + $0x14] sm:$0xf]
  %v151 = vld [vmem:[%s3 + $0x18] sm:$0xf]
  %v152 = vld [vmem:[%s3 + $0x1c] sm:$0xf]
  %v153 = vld [vmem:[%s4] sm:$0x1]
  %v155 = vlaneseq
  %v156 = vshrl.u32 %v155, 7
  %v157 = vsub.s32 0, %v156
  %v158 = vrot.slane %v153, %v157
  %v168 = vunpack.c.l.b16 %v145
  %v169 = vunpack.c.l.b16 %v146
  %v170 = vunpack.c.l.b16 %v147
  %v171 = vunpack.c.l.b16 %v148
  %v172 = vunpack.c.l.b16 %v149
  %v173 = vunpack.c.l.b16 %v150
  %v174 = vunpack.c.l.b16 %v151
  %v175 = vunpack.c.l.b16 %v152
  %v176 = vpack.c.b16 %v169, %v168
  %v177 = vpack.c.b16 %v171, %v170
  %v178 = vpack.c.b16 %v173, %v172
  %v179 = vpack.c.b16 %v175, %v174
  %vm184 = vcmask 523264
  %v186 = vsel %vm184, %v144, 0
  %188 = vmatprep.subr.bf16.mxu0 0
  %189 = vmatpush1.bf16.msra.mxu0 %v176
  %190 = vmatprep.subr.bf16.mxu0 0
  %191 = vmatpush1.bf16.msra.mxu0 %v177
  %192 = vmatprep.subr.bf16.mxu0 0
  %193 = vmatpush1.bf16.msra.mxu0 %v178
  %194 = vmatprep.subr.bf16.mxu0 0
  %195 = vmatpush1.bf16.msra.mxu0 %v179
  %196 = vmatprep.subr.bf16.mxu0 0
  %197 = vmatpush1.bf16.msra.mxu0 0
  %198 = vmatprep.subr.bf16.mxu0 0
  %199 = vmatpush1.bf16.msra.mxu0 0
  %200 = vmatprep.subr.bf16.mxu0 0
  %201 = vmatpush1.bf16.msra.mxu0 0
  %202 = vmatprep.subr.bf16.mxu0 0
  %203 = vmatpush1.bf16.msra.mxu0 0
  %204 = vmatprep.subr.bf16.mxu0 0
  %205 = vmatpush1.bf16.msra.mxu0 0
  %206 = vmatprep.subr.bf16.mxu0 0
  %207 = vmatpush1.bf16.msra.mxu0 0
  %208 = vmatprep.subr.bf16.mxu0 0
  %209 = vmatpush1.bf16.msra.mxu0 0
  %210 = vmatprep.subr.bf16.mxu0 0
  %211 = vmatpush1.bf16.msra.mxu0 0
  %212 = vmatprep.subr.bf16.mxu0 0
  %213 = vmatpush1.bf16.msra.mxu0 0
  %214 = vmatprep.subr.bf16.mxu0 0
  %215 = vmatpush1.bf16.msra.mxu0 0
  %216 = vmatprep.subr.bf16.mxu0 0
  %217 = vmatpush1.bf16.msra.mxu0 0
  %218 = vmatprep.subr.bf16.mxu0 0
  %219 = vmatpush1.bf16.msra.mxu0 0
  %220 = vmatprep.mubr.bf16.mxu0 0
  %221 = vmatmul.mubr.bf16.gmra.mrb[0].mxu0 %v186
  %v222 = vpop.f32.mrb[0].mxu0
  %v223 = vadd.f32 %v158, %v222
  %v224 = vpop.f32.mrb[0].mxu0
  %v225 = vpop.f32.mrb[0].mxu0
  %v226 = vadd.f32 %v158, %v225
  %v227 = vpop.f32.mrb[0].mxu0
  %228 = vdwg.mxu0
  %v229 = vadd.f32 %v223, %v27
  %v230 = vadd.f32 %v226, %v28
  %v231 = vld [vmem:[%s5] sm:$0x1]
  %v232 = vld [vmem:[%s6] sm:$0x1]
  %233 = vadd.xlane.f32.xlu0 %v229
  %v234 = vpop.xlane.xlu0 %233
  %235 = vadd.xlane.f32.xlu0 %v230
  %v236 = vpop.xlane.xlu0 %235
  %v237 = vmul.f32 %v234, 0.03125
  %v238 = vmul.f32 %v236, 0.03125
  %v239 = vsub.f32 %v229, %v237
  %v240 = vsub.f32 %v230, %v238
  %v241 = vlaneseq
  %v242 = vand.u32 %v241, 127
  %vm243 = vcmp.lt.s32.totalorder %v242, 32
  %v244 = vsel %vm243, 1, 0
  %vm245 = vcmp.eq.s32.totalorder %v244, 1
  %v246 = vsel %vm245, %v239, 0.0
  %v247 = vsel %vm245, %v240, 0.0
  %v248 = vmul.f32 %v246, %v246
  %v249 = vmul.f32 %v247, %v247
  %250 = vadd.xlane.f32.xlu0 %v248
  %v251 = vpop.xlane.xlu0 %250
  %252 = vadd.xlane.f32.xlu0 %v249
  %v253 = vpop.xlane.xlu0 %252
  %v254 = vmul.f32 %v251, 0.03125
  %v255 = vmul.f32 %v253, 0.03125
  %v256 = vadd.f32 %v254, 1e-05
  %v257 = vadd.f32 %v255, 1e-05
  %v258 = vrsqrt.pop %v256
  %v259 = vrsqrt.pop %v257
  %v260 = vmul.f32 %v246, %v258
  %v261 = vmul.f32 %v247, %v259
  %v263 = vlaneseq
  %v264 = vshrl.u32 %v263, 7
  %v265 = vsub.s32 0, %v264
  %v266 = vrot.slane %v231, %v265
  %v268 = vmul.f32 %v260, %v266
  %v269 = vmul.f32 %v261, %v266
  %v271 = vlaneseq
  %v272 = vshrl.u32 %v271, 7
  %v273 = vsub.s32 0, %v272
  %v274 = vrot.slane %v232, %v273
  %v276 = vadd.f32 %v268, %v274
  %v277 = vadd.f32 %v269, %v274
  %278 = vst [vmem:[%s7] sm:$0xff] %v276
  %279 = vst [vmem:[%s7 + $0x8] sm:$0xff] %v277
  // Predicated region
  $region30: #{decoder_forward.8} parent=0 // pred_check
    _
  $region31: #{decoder_forward.8} parent=0 // pred_check_branch
    %281 = sbr.rel (0) target = $region33
  $region32: #{decoder_forward.8} parent=0 // pred_region
    _
  $region33: #{decoder_forward.8} parent=0 // pred_fallthru
    _
  // Predicated region
  $region34: #{decoder_forward.8} parent=0 // pred_check
    _
  $region35: #{decoder_forward.8} parent=0 // pred_check_branch
    %283 = sbr.rel (0) target = $region37
  $region36: #{decoder_forward.8} parent=0 // pred_region
    _
  $region37: #{decoder_forward.8} parent=0 // pred_fallthru
    _

// kernel: squeeze.1
$region0: #{squeeze.1}
  %s0 = inlined_call_operand.vmem [shape: f32[16], index: 0, kind: input, shape index: {}]
  %s1 = inlined_call_operand.hbm [shape: f32[2,8], index: 1, kind: output, shape index: {}]
  $region1: #{squeeze.1} parent=0
    #allocation0 [shape = 'u8[1024]{0}', space=vmem, size = 0x400, scoped, tag = 'operand span for operand 1']
    #allocation1 [shape = 's32[1]{0}', space=sflag, size = 0x4, scoped, tag = 'scoped memory for squeeze.1']
    #allocation2 [shape = 'u8[4096]{0}', space=vmem, size = 0x1000, scoped, tag = 'scoped mem for output reshape']
    #allocation3 [shape = 'u8[4096]{0}', space=vmem, size = 0x1000, scoped, tag = 'scoped mem for input reshape']
    %2 = vsyncpa [#allocation1], 0
    %s4 = sshllo.u32 0, 1
    %v5 = vld [vmem:[%s0] sm:%s4]
    %6 = vst [vmem:[#allocation3] sm:%s4] %v5
    %v7 = vld [vmem:[#allocation3] sm:$0x1]
    %vm8 = vcmask 64512
    %9 = vst.msk [vmem:[#allocation2] sm:$0x1] %vm8, %v7
    %v10 = vld [vmem:[#allocation3] sm:$0x1]
    %11 = vrot.lane.b32.xlu0 %v10, 120
    %v12 = vpop.permute.xlu0 %11
    %vm13 = vcmask 64512
    %s14 = scalar_lea.vmem [#allocation2], 1
    %15 = vst.msk [vmem:[%s14] sm:$0x1] %vm13, %v12
    %s17 = sshllo.u32 0, 2
    %v19 = vld [vmem:[#allocation2] sm:%s17]
    %s20 = sshllo.u32 0, 2
    %21 = vst [vmem:[#allocation0] sm:%s20] %v19
    %s23 = ssub.s32 32, 32
    %24 = vsyncadd [#allocation1], %s23
    %s26 = sshll.u32 [#allocation0], 4
    %s27 = int_to_ptr.vmem [resolvable:$true] %s26
    %29 = dma.vmem_to_hbm [thread:$0]  %s27, 32, %s1, [#allocation1]
    %30 = dma.done [#allocation1], 32
    %31 = vsyncpa [#allocation1], 1

// kernel: decoder_forward.7
$region0: #{decoder_forward.7}
  #allocation0 [shape = 'u32[]', space=smem, size = 0x4, offset = 0x4, fixed_abs, tag = 'smem constant byte address 0x4 - core index']
  #allocation1 [shape = 'u32[144,128]{1,0:T(1,128)}', space=vmem, size = 0x12000, scoped, tag = 'internal scratch']
  #allocation2 [shape = 'f32[8,32]{1,0:T(8,128)}', space=vmem, size = 0x1000, scoped, tag = 'scratch operand']
  %s0 = inlined_call_operand.vmem [shape: f32[2,8,128], index: 0, kind: input, shape index: {}]
  %s1 = inlined_call_operand.vmem [shape: f32[2,9,128], index: 1, kind: input, shape index: {}]
  %s2 = inlined_call_operand.vmem [shape: bf16[4,128,8], index: 2, kind: input, shape index: {}]
  %s3 = inlined_call_operand.vmem [shape: bf16[4,128,8], index: 3, kind: input, shape index: {}]
  %s4 = inlined_call_operand.vmem [shape: bf16[4,128,8], index: 4, kind: input, shape index: {}]
  %s5 = inlined_call_operand.vmem [shape: bf16[32,128], index: 5, kind: input, shape index: {}]
  %s6 = inlined_call_operand.vmem [shape: f32[1,128], index: 6, kind: input, shape index: {}]
  %s7 = inlined_call_operand.vmem [shape: f32[1,128], index: 7, kind: input, shape index: {}]
  %s8 = inlined_call_operand.vmem [shape: f32[2,8,128], index: 8, kind: output, shape index: {}]
  %s9 = sld [smem:[#allocation0]]
  $region65: #{decoder_forward.7} parent=0
    _
  %s11 = ssub.s32 1, %s9
  %s12 = scalar_select 0, %s11, %s9
  loop: start=0, step=1, limit=4
  $region2: #{decoder_forward.7} parent=0 // loop_pre_header
    _
  $region3: #{decoder_forward.7} parent=0 // loop_header
    %s14 = sphi 0, %s18
    %p15 = scmp.ge.s32.totalorder %s14, 4
    %s21 = sphi 0, %s33
    %s22 = sphi 0, %s29
    %s23 = sphi 0, %s21
    %s24 = sphi 0, %s22
    %s25 = sphi 0, %s23
    %s26 = sphi 0, %s24
    %s38 = sphi 0, %s40
    %s41 = sphi 0, %s38
    %s42 = sphi 0, %s41
    %s58 = sphi 0, %s42
    %s64 = sphi 0, %s66
    %s67 = sphi 0, %s64
    %s68 = sphi 0, %s67
    %s84 = sphi 0, %s68
    %s88 = sphi 0, %s88
    %s90 = sphi 0, %s88
    %s91 = sphi 0, %s90
    %s105 = sphi 0, %s91
    %s109 = sphi 0, %s109
    %s111 = sphi 0, %s109
    %s112 = sphi 0, %s111
    %s126 = sphi 0, %s112
    %s130 = sphi 0, %s130
    %s132 = sphi 0, %s130
    %s133 = sphi 0, %s132
    %s147 = sphi 0, %s133
    %s151 = sphi 0, %s151
    %s153 = sphi 0, %s151
    %s154 = sphi 0, %s153
    %s168 = sphi 0, %s154
    %s172 = sphi 0, %s172
    %s174 = sphi 0, %s172
    %s175 = sphi 0, %s174
    %s189 = sphi 0, %s175
    %s193 = sphi 0, %s193
    %s195 = sphi 0, %s193
    %s196 = sphi 0, %s195
    %s210 = sphi 0, %s196
    %s218 = sphi 0, %s220
    %s221 = sphi 0, %s218
    %s222 = sphi 0, %s221
    %s238 = sphi 0, %s222
  $region4: #{decoder_forward.7} parent=0 // loop_header_branch
    %17 = sbr.rel (%p15) target = $region8
  $region5: #{decoder_forward.7} parent=0 // loop_body
    %s19 = ssub.s32 %s14, 1
    %s20 = ssub.s32 %s14, 2
    %s27 = sadd.s32 1, %s22
    %p28 = scmp.ge.s32.totalorder %s27, 1
    %s29 = scalar_select %p28, 0, %s27
    %s30 = sadd.s32 1, %s21
    %s31 = scalar_select %p28, %s30, %s21
    %p32 = scmp.ge.s32.totalorder %s31, 2
    %s33 = scalar_select %p32, 0, %s31
    %s34 = ssub.s32 %s21, %s33
    %s35 = ssub.s32 %s22, %s29
    %s36 = sor.u32 %s34, %s35
    %p37 = scmp.eq.s32.totalorder %s36, 0
    %s39 = sadd.s32 %s38, 1
    %s40 = scalar_select %p37, %s38, %s39
    %p43 = pneg %p37
    %p44 = scmp.eq.s32.totalorder %s14, 1
    %p45 = por %p43, %p44
    %p46 = scmp.ne.s32.totalorder %s38, %s41
    %p47 = scmp.eq.s32.totalorder %s14, 0
    %p48 = por %p46, %p47
    %p49 = scmp.ne.s32.totalorder %s38, %s41
    %p50 = scmp.eq.s32.totalorder %s19, 1
    %p51 = por %p49, %p50
    %p52 = scmp.ne.s32.totalorder %s41, %s42
    %p53 = scmp.eq.s32.totalorder %s19, 0
    %p54 = por %p52, %p53
    %p55 = scmp.ne.s32.totalorder %s41, %s42
    %p56 = scmp.eq.s32.totalorder %s20, 1
    %p57 = por %p55, %p56
    %p59 = scmp.ne.s32.totalorder %s42, %s58
    %p60 = scmp.eq.s32.totalorder %s20, 0
    %p61 = por %p59, %p60
    %s62 = ssub.s32 %s21, %s33
    %p63 = scmp.eq.s32.totalorder %s62, 0
    %s65 = sadd.s32 %s64, 1
    %s66 = scalar_select %p63, %s64, %s65
    %p69 = pneg %p63
    %p70 = scmp.eq.s32.totalorder %s14, 1
    %p71 = por %p69, %p70
    %p72 = scmp.ne.s32.totalorder %s64, %s67
    %p73 = scmp.eq.s32.totalorder %s14, 0
    %p74 = por %p72, %p73
    %p75 = scmp.ne.s32.totalorder %s64, %s67
    %p76 = scmp.eq.s32.totalorder %s19, 1
    %p77 = por %p75, %p76
    %p78 = scmp.ne.s32.totalorder %s67, %s68
    %p79 = scmp.eq.s32.totalorder %s19, 0
    %p80 = por %p78, %p79
    %p81 = scmp.ne.s32.totalorder %s67, %s68
    %p82 = scmp.eq.s32.totalorder %s20, 1
    %p83 = por %p81, %p82
    %p85 = scmp.ne.s32.totalorder %s68, %s84
    %p86 = scmp.eq.s32.totalorder %s20, 0
    %p87 = por %p85, %p86
    %s89 = sadd.s32 %s88, 1
    %p92 = scmp.eq.s32.totalorder %s14, 1
    %p93 = scmp.ne.s32.totalorder %s88, %s90
    %p94 = scmp.eq.s32.totalorder %s14, 0
    %p95 = por %p93, %p94
    %p96 = scmp.ne.s32.totalorder %s88, %s90
    %p97 = scmp.eq.s32.totalorder %s19, 1
    %p98 = por %p96, %p97
    %p99 = scmp.ne.s32.totalorder %s90, %s91
    %p100 = scmp.eq.s32.totalorder %s19, 0
    %p101 = por %p99, %p100
    %p102 = scmp.ne.s32.totalorder %s90, %s91
    %p103 = scmp.eq.s32.totalorder %s20, 1
    %p104 = por %p102, %p103
    %p106 = scmp.ne.s32.totalorder %s91, %s105
    %p107 = scmp.eq.s32.totalorder %s20, 0
    %p108 = por %p106, %p107
    %s110 = sadd.s32 %s109, 1
    %p113 = scmp.eq.s32.totalorder %s14, 1
    %p114 = scmp.ne.s32.totalorder %s109, %s111
    %p115 = scmp.eq.s32.totalorder %s14, 0
    %p116 = por %p114, %p115
    %p117 = scmp.ne.s32.totalorder %s109, %s111
    %p118 = scmp.eq.s32.totalorder %s19, 1
    %p119 = por %p117, %p118
    %p120 = scmp.ne.s32.totalorder %s111, %s112
    %p121 = scmp.eq.s32.totalorder %s19, 0
    %p122 = por %p120, %p121
    %p123 = scmp.ne.s32.totalorder %s111, %s112
    %p124 = scmp.eq.s32.totalorder %s20, 1
    %p125 = por %p123, %p124
    %p127 = scmp.ne.s32.totalorder %s112, %s126
    %p128 = scmp.eq.s32.totalorder %s20, 0
    %p129 = por %p127, %p128
    %s131 = sadd.s32 %s130, 1
    %p134 = scmp.eq.s32.totalorder %s14, 1
    %p135 = scmp.ne.s32.totalorder %s130, %s132
    %p136 = scmp.eq.s32.totalorder %s14, 0
    %p137 = por %p135, %p136
    %p138 = scmp.ne.s32.totalorder %s130, %s132
    %p139 = scmp.eq.s32.totalorder %s19, 1
    %p140 = por %p138, %p139
    %p141 = scmp.ne.s32.totalorder %s132, %s133
    %p142 = scmp.eq.s32.totalorder %s19, 0
    %p143 = por %p141, %p142
    %p144 = scmp.ne.s32.totalorder %s132, %s133
    %p145 = scmp.eq.s32.totalorder %s20, 1
    %p146 = por %p144, %p145
    %p148 = scmp.ne.s32.totalorder %s133, %s147
    %p149 = scmp.eq.s32.totalorder %s20, 0
    %p150 = por %p148, %p149
    %s152 = sadd.s32 %s151, 1
    %p155 = scmp.eq.s32.totalorder %s14, 1
    %p156 = scmp.ne.s32.totalorder %s151, %s153
    %p157 = scmp.eq.s32.totalorder %s14, 0
    %p158 = por %p156, %p157
    %p159 = scmp.ne.s32.totalorder %s151, %s153
    %p160 = scmp.eq.s32.totalorder %s19, 1
    %p161 = por %p159, %p160
    %p162 = scmp.ne.s32.totalorder %s153, %s154
    %p163 = scmp.eq.s32.totalorder %s19, 0
    %p164 = por %p162, %p163
    %p165 = scmp.ne.s32.totalorder %s153, %s154
    %p166 = scmp.eq.s32.totalorder %s20, 1
    %p167 = por %p165, %p166
    %p169 = scmp.ne.s32.totalorder %s154, %s168
    %p170 = scmp.eq.s32.totalorder %s20, 0
    %p171 = por %p169, %p170
    %s173 = sadd.s32 %s172, 1
    %p176 = scmp.eq.s32.totalorder %s14, 1
    %p177 = scmp.ne.s32.totalorder %s172, %s174
    %p178 = scmp.eq.s32.totalorder %s14, 0
    %p179 = por %p177, %p178
    %p180 = scmp.ne.s32.totalorder %s172, %s174
    %p181 = scmp.eq.s32.totalorder %s19, 1
    %p182 = por %p180, %p181
    %p183 = scmp.ne.s32.totalorder %s174, %s175
    %p184 = scmp.eq.s32.totalorder %s19, 0
    %p185 = por %p183, %p184
    %p186 = scmp.ne.s32.totalorder %s174, %s175
    %p187 = scmp.eq.s32.totalorder %s20, 1
    %p188 = por %p186, %p187
    %p190 = scmp.ne.s32.totalorder %s175, %s189
    %p191 = scmp.eq.s32.totalorder %s20, 0
    %p192 = por %p190, %p191
    %s194 = sadd.s32 %s193, 1
    %p197 = scmp.eq.s32.totalorder %s14, 1
    %p198 = scmp.ne.s32.totalorder %s193, %s195
    %p199 = scmp.eq.s32.totalorder %s14, 0
    %p200 = por %p198, %p199
    %p201 = scmp.ne.s32.totalorder %s193, %s195
    %p202 = scmp.eq.s32.totalorder %s19, 1
    %p203 = por %p201, %p202
    %p204 = scmp.ne.s32.totalorder %s195, %s196
    %p205 = scmp.eq.s32.totalorder %s19, 0
    %p206 = por %p204, %p205
    %p207 = scmp.ne.s32.totalorder %s195, %s196
    %p208 = scmp.eq.s32.totalorder %s20, 1
    %p209 = por %p207, %p208
    %p211 = scmp.ne.s32.totalorder %s196, %s210
    %p212 = scmp.eq.s32.totalorder %s20, 0
    %p213 = por %p211, %p212
    %s214 = ssub.s32 %s21, %s33
    %s215 = ssub.s32 %s22, %s29
    %s216 = sor.u32 %s214, %s215
    %p217 = scmp.eq.s32.totalorder %s216, 0
    %s219 = sadd.s32 %s218, 1
    %s220 = scalar_select %p217, %s218, %s219
    %p223 = pneg %p217
    %p224 = scmp.eq.s32.totalorder %s14, 1
    %p225 = por %p223, %p224
    %p226 = scmp.ne.s32.totalorder %s218, %s221
    %p227 = scmp.eq.s32.totalorder %s14, 0
    %p228 = por %p226, %p227
    %p229 = scmp.ne.s32.totalorder %s218, %s221
    %p230 = scmp.eq.s32.totalorder %s19, 1
    %p231 = por %p229, %p230
    %p232 = scmp.ne.s32.totalorder %s221, %s222
    %p233 = scmp.eq.s32.totalorder %s19, 0
    %p234 = por %p232, %p233
    %p235 = scmp.ne.s32.totalorder %s221, %s222
    %p236 = scmp.eq.s32.totalorder %s20, 1
    %p237 = por %p235, %p236
    %p239 = scmp.ne.s32.totalorder %s222, %s238
    %p240 = scmp.eq.s32.totalorder %s20, 0
    %p241 = por %p239, %p240
    %p242 = scmp.le.s32.totalorder 1, %s14
    %p243 = scmp.lt.s32.totalorder %s14, 3
    %p244 = pnand %p242, %p243
    %p245 = pneg %p244
    // Predicated region
    $region9: #{decoder_forward.7} parent=5 // pred_check
      _
    $region10: #{decoder_forward.7} parent=5 // pred_check_branch
      %247 = sbr.rel (%p244) target = $region12
    $region11: #{decoder_forward.7} parent=5 // pred_region
      %s248 = ssub.s32 %s14, 1
      // Predicated region
      $region13: #{decoder_forward.7} parent=11 // pred_check
        %p249 = pneg %p101
      $region14: #{decoder_forward.7} parent=11 // pred_check_branch
        %251 = sbr.rel (%p249) target = $region16
      $region15: #{decoder_forward.7} parent=11 // pred_region
        _
      $region16: #{decoder_forward.7} parent=11 // pred_fallthru
        _
      // Predicated region
      $region17: #{decoder_forward.7} parent=11 // pred_check
        %p252 = pneg %p122
      $region18: #{decoder_forward.7} parent=11 // pred_check_branch
        %254 = sbr.rel (%p252) target = $region20
      $region19: #{decoder_forward.7} parent=11 // pred_region
        _
      $region20: #{decoder_forward.7} parent=11 // pred_fallthru
        _
      // Predicated region
      $region21: #{decoder_forward.7} parent=11 // pred_check
        %p255 = pneg %p143
      $region22: #{decoder_forward.7} parent=11 // pred_check_branch
        %257 = sbr.rel (%p255) target = $region24
      $region23: #{decoder_forward.7} parent=11 // pred_region
        _
      $region24: #{decoder_forward.7} parent=11 // pred_fallthru
        _
      // Predicated region
      $region25: #{decoder_forward.7} parent=11 // pred_check
        %p258 = pneg %p164
      $region26: #{decoder_forward.7} parent=11 // pred_check_branch
        %260 = sbr.rel (%p258) target = $region28
      $region27: #{decoder_forward.7} parent=11 // pred_region
        _
      $region28: #{decoder_forward.7} parent=11 // pred_fallthru
        _
      // Predicated region
      $region29: #{decoder_forward.7} parent=11 // pred_check
        %p261 = pneg %p185
      $region30: #{decoder_forward.7} parent=11 // pred_check_branch
        %263 = sbr.rel (%p261) target = $region32
      $region31: #{decoder_forward.7} parent=11 // pred_region
        _
      $region32: #{decoder_forward.7} parent=11 // pred_fallthru
        _
      // Predicated region
      $region33: #{decoder_forward.7} parent=11 // pred_check
        %p264 = pneg %p206
      $region34: #{decoder_forward.7} parent=11 // pred_check_branch
        %266 = sbr.rel (%p264) target = $region36
      $region35: #{decoder_forward.7} parent=11 // pred_region
        _
      $region36: #{decoder_forward.7} parent=11 // pred_fallthru
        _
    $region12: #{decoder_forward.7} parent=5 // pred_fallthru
      _
    %p267 = scmp.lt.s32.totalorder %s14, 2
    // Predicated region
    $region37: #{decoder_forward.7} parent=5 // pred_check
      %p268 = pneg %p267
    $region38: #{decoder_forward.7} parent=5 // pred_check_branch
      %270 = sbr.rel (%p268) target = $region40
    $region39: #{decoder_forward.7} parent=5 // pred_region
      // Predicated region
      $region41: #{decoder_forward.7} parent=39 // pred_check
        %p271 = pneg %p48
      $region42: #{decoder_forward.7} parent=39 // pred_check_branch
        %273 = sbr.rel (%p271) target = $region44
      $region43: #{decoder_forward.7} parent=39 // pred_region
        %p274 = scmp.lt.s32.totalorder %s21, 1
        %s275 = scalar_select %p274, %s21, 1
        %p276 = scmp.lt.s32.totalorder %s22, 0
        %s277 = scalar_select %p276, %s22, 0
        %s278 = sadd.s32 %s277, %s275
        %s279 = smul.addr %s278, 8
        %s280 = scalar_lea.vmem %s0, %s279
      $region44: #{decoder_forward.7} parent=39 // pred_fallthru
        _
      // Predicated region
      $region45: #{decoder_forward.7} parent=39 // pred_check
        %p281 = pneg %p74
      $region46: #{decoder_forward.7} parent=39 // pred_check_branch
        %283 = sbr.rel (%p281) target = $region48
      $region47: #{decoder_forward.7} parent=39 // pred_region
        %p284 = scmp.lt.s32.totalorder %s21, 1
        %s285 = scalar_select %p284, %s21, 1
        %s286 = smul.addr %s285, 2
        %s287 = smul.addr %s286, 8
        %s288 = scalar_lea.vmem %s1, %s287
      $region48: #{decoder_forward.7} parent=39 // pred_fallthru
        _
    $region40: #{decoder_forward.7} parent=5 // pred_fallthru
      _
    %p289 = scmp.le.s32.totalorder 1, %s14
    %p290 = scmp.lt.s32.totalorder %s14, 3
    %p291 = pnand %p289, %p290
    %p292 = pneg %p291
    // Predicated region
    $region49: #{decoder_forward.7} parent=5 // pred_check
      _
    $region50: #{decoder_forward.7} parent=5 // pred_check_branch
      %294 = sbr.rel (%p291) target = $region52
    $region51: #{decoder_forward.7} parent=5 // pred_region
      %s295 = ssub.s32 %s14, 1
      %p296 = scmp.lt.s32.totalorder %s23, 1
      %s297 = scalar_select %p296, %s23, 1
      %p298 = scmp.lt.s32.totalorder %s24, 0
      %s299 = scalar_select %p298, %s24, 0
      %s300 = sadd.s32 %s299, %s297
      %s301 = smul.addr %s300, 8
      %s302 = scalar_lea.vmem %s0, %s301
      %p303 = pneg %p54
      %p304 = pneg %p51
      %p305 = scmp.lt.s32.totalorder %s23, 1
      %s306 = scalar_select %p305, %s23, 1
      %s307 = smul.addr %s306, 2
      %s308 = smul.addr %s307, 8
      %s309 = scalar_lea.vmem %s1, %s308
      %p310 = pneg %p80
      %p311 = pneg %p77
      %p312 = pneg %p101
      %p313 = pneg %p98
      %p314 = pneg %p122
      %p315 = pneg %p119
      %p316 = pneg %p143
      %p317 = pneg %p140
      %p318 = pneg %p164
      %p319 = pneg %p161
      %p320 = pneg %p185
      %p321 = pneg %p182
      %p322 = pneg %p206
      %p323 = pneg %p203
      %p324 = pneg %p234
      %p325 = pneg %p231
      %p326 = scmp.lt.s32.totalorder %s23, 1
      %s327 = scalar_select %p326, %s23, 1
      %p328 = scmp.lt.s32.totalorder %s24, 0
      %s329 = scalar_select %p328, %s24, 0
      %s330 = sadd.s32 %s329, %s327
      %s331 = smul.addr %s330, 8
      %s332 = scalar_lea.vmem %s8, %s331
      %p333 = scmp.lt.s32.totalorder %s23, 1
      %s334 = scalar_select %p333, %s23, 1
      %p335 = scmp.lt.s32.totalorder %s24, 0
      %s336 = scalar_select %p335, %s24, 0
      %s337 = sadd.s32 %s336, %s334
      %s338 = smul.addr %s337, 8
      %s339 = scalar_lea.vmem %s0, %s338
      %p340 = scmp.lt.s32.totalorder %s23, 1
      %s341 = scalar_select %p340, %s23, 1
      %s342 = smul.addr %s341, 2
      %s343 = smul.addr %s342, 8
      %s344 = scalar_lea.vmem %s1, %s343
      %p345 = scmp.lt.s32.totalorder %s23, 1
      %s346 = scalar_select %p345, %s23, 1
      %p347 = scmp.lt.s32.totalorder %s24, 0
      %s348 = scalar_select %p347, %s24, 0
      %s349 = sadd.s32 %s348, %s346
      %s350 = smul.addr %s349, 8
      %s351 = scalar_lea.vmem %s8, %s350
      %v353 = vld [vmem:[%s339] sm:$0xff]
      %v354 = vpack.c.bf16 %v353, %v353
      %v355 = vld [vmem:[%s344] sm:$0xff]
      %v356 = vld [vmem:[%s344 + $0x8] sm:$0x1]
      %v357 = vpack.c.bf16 %v356, %v355
      %v358 = vld [vmem:[%s2] sm:$0xf]
      %v359 = vld [vmem:[%s2 + $0x4] sm:$0xf]
      %v360 = vld [vmem:[%s2 + $0x8] sm:$0xf]
      %v361 = vld [vmem:[%s2 + $0xc] sm:$0xf]
      %v362 = vld [vmem:[%s2 + $0x10] sm:$0xf]
      %v363 = vld [vmem:[%s2 + $0x14] sm:$0xf]
      %v364 = vld [vmem:[%s2 + $0x18] sm:$0xf]
      %v365 = vld [vmem:[%s2 + $0x1c] sm:$0xf]
      %v366 = vld [vmem:[%s2 + $0x20] sm:$0xf]
      %v367 = vld [vmem:[%s2 + $0x24] sm:$0xf]
      %v368 = vld [vmem:[%s2 + $0x28] sm:$0xf]
      %v369 = vld [vmem:[%s2 + $0x2c] sm:$0xf]
      %v370 = vld [vmem:[%s2 + $0x30] sm:$0xf]
      %v371 = vld [vmem:[%s2 + $0x34] sm:$0xf]
      %v372 = vld [vmem:[%s2 + $0x38] sm:$0xf]
      %v373 = vld [vmem:[%s2 + $0x3c] sm:$0xf]
      %v390 = vunpack.c.l.b16 %v358
      %v391 = vunpack.c.l.b16 %v359
      %v392 = vunpack.c.l.b16 %v360
      %v393 = vunpack.c.l.b16 %v361
      %v394 = vunpack.c.l.b16 %v362
      %v395 = vunpack.c.l.b16 %v363
      %v396 = vunpack.c.l.b16 %v364
      %v397 = vunpack.c.l.b16 %v365
      %v398 = vunpack.c.l.b16 %v366
      %v399 = vunpack.c.l.b16 %v367
      %v400 = vunpack.c.l.b16 %v368
      %v401 = vunpack.c.l.b16 %v369
      %v402 = vunpack.c.l.b16 %v370
      %v403 = vunpack.c.l.b16 %v371
      %v404 = vunpack.c.l.b16 %v372
      %v405 = vunpack.c.l.b16 %v373
      %v406 = vpack.c.b16 %v391, %v390
      %v407 = vpack.c.b16 %v393, %v392
      %v408 = vpack.c.b16 %v395, %v394
      %v409 = vpack.c.b16 %v397, %v396
      %v410 = vpack.c.b16 %v399, %v398
      %v411 = vpack.c.b16 %v401, %v400
      %v412 = vpack.c.b16 %v403, %v402
      %v413 = vpack.c.b16 %v405, %v404
      %422 = vmatprep.subr.bf16.mxu0 0
      %423 = vmatpush1.bf16.msra.mxu0 %v406
      %424 = vmatprep.subr.bf16.mxu0 0
      %425 = vmatpush1.bf16.msra.mxu0 %v407
      %426 = vmatprep.subr.bf16.mxu0 0
      %427 = vmatpush1.bf16.msra.mxu0 %v408
      %428 = vmatprep.subr.bf16.mxu0 0
      %429 = vmatpush1.bf16.msra.mxu0 %v409
      %430 = vmatprep.subr.bf16.mxu0 0
      %431 = vmatpush1.bf16.msra.mxu0 %v410
      %432 = vmatprep.subr.bf16.mxu0 0
      %433 = vmatpush1.bf16.msra.mxu0 %v411
      %434 = vmatprep.subr.bf16.mxu0 0
      %435 = vmatpush1.bf16.msra.mxu0 %v412
      %436 = vmatprep.subr.bf16.mxu0 0
      %437 = vmatpush1.bf16.msra.mxu0 %v413
      %438 = vmatprep.subr.bf16.mxu0 0
      %439 = vmatpush1.bf16.msra.mxu0 0
      %440 = vmatprep.subr.bf16.mxu0 0
      %441 = vmatpush1.bf16.msra.mxu0 0
      %442 = vmatprep.subr.bf16.mxu0 0
      %443 = vmatpush1.bf16.msra.mxu0 0
      %444 = vmatprep.subr.bf16.mxu0 0
      %445 = vmatpush1.bf16.msra.mxu0 0
      %446 = vmatprep.subr.bf16.mxu0 0
      %447 = vmatpush1.bf16.msra.mxu0 0
      %448 = vmatprep.subr.bf16.mxu0 0
      %449 = vmatpush1.bf16.msra.mxu0 0
      %450 = vmatprep.subr.bf16.mxu0 0
      %451 = vmatpush1.bf16.msra.mxu0 0
      %452 = vmatprep.subr.bf16.mxu0 0
      %453 = vmatpush1.bf16.msra.mxu0 0
      %454 = vmatprep.mubr.bf16.mxu0 0
      %455 = vmatmul.mubr.bf16.gmra.mrb[0].mxu0 %v354
      %v456 = vpop.f32.mrb[0].mxu0
      %v457 = vadd.f32 0.0, %v456
      %v458 = vpop.f32.mrb[0].mxu0
      %v459 = vpop.f32.mrb[0].mxu0
      %v460 = vpop.f32.mrb[0].mxu0
      %461 = vdwg.mxu0
      %v462 = vmul.f32 %v457, 0.35355338
      %v463 = vld [vmem:[%s3] sm:$0xf]
      %v464 = vld [vmem:[%s3 + $0x4] sm:$0xf]
      %v465 = vld [vmem:[%s3 + $0x8] sm:$0xf]
      %v466 = vld [vmem:[%s3 + $0xc] sm:$0xf]
      %v467 = vld [vmem:[%s3 + $0x10] sm:$0xf]
      %v468 = vld [vmem:[%s3 + $0x14] sm:$0xf]
      %v469 = vld [vmem:[%s3 + $0x18] sm:$0xf]
      %v470 = vld [vmem:[%s3 + $0x1c] sm:$0xf]
      %v471 = vld [vmem:[%s3 + $0x20] sm:$0xf]
      %v472 = vld [vmem:[%s3 + $0x24] sm:$0xf]
      %v473 = vld [vmem:[%s3 + $0x28] sm:$0xf]
      %v474 = vld [vmem:[%s3 + $0x2c] sm:$0xf]
      %v475 = vld [vmem:[%s3 + $0x30] sm:$0xf]
      %v476 = vld [vmem:[%s3 + $0x34] sm:$0xf]
      %v477 = vld [vmem:[%s3 + $0x38] sm:$0xf]
      %v478 = vld [vmem:[%s3 + $0x3c] sm:$0xf]
      %v495 = vunpack.c.l.b16 %v463
      %v496 = vunpack.c.l.b16 %v464
      %v497 = vunpack.c.l.b16 %v465
      %v498 = vunpack.c.l.b16 %v466
      %v499 = vunpack.c.l.b16 %v467
      %v500 = vunpack.c.l.b16 %v468
      %v501 = vunpack.c.l.b16 %v469
      %v502 = vunpack.c.l.b16 %v470
      %v503 = vunpack.c.l.b16 %v471
      %v504 = vunpack.c.l.b16 %v472
      %v505 = vunpack.c.l.b16 %v473
      %v506 = vunpack.c.l.b16 %v474
      %v507 = vunpack.c.l.b16 %v475
      %v508 = vunpack.c.l.b16 %v476
      %v509 = vunpack.c.l.b16 %v477
      %v510 = vunpack.c.l.b16 %v478
      %v511 = vpack.c.b16 %v496, %v495
      %v512 = vpack.c.b16 %v498, %v497
      %v513 = vpack.c.b16 %v500, %v499
      %v514 = vpack.c.b16 %v502, %v501
      %v515 = vpack.c.b16 %v504, %v503
      %v516 = vpack.c.b16 %v506, %v505
      %v517 = vpack.c.b16 %v508, %v507
      %v518 = vpack.c.b16 %v510, %v509
      %527 = vmatprep.subr.bf16.mxu0 0
      %528 = vmatpush1.bf16.msra.mxu0 %v511
      %529 = vmatprep.subr.bf16.mxu0 0
      %530 = vmatpush1.bf16.msra.mxu0 %v512
      %531 = vmatprep.subr.bf16.mxu0 0
      %532 = vmatpush1.bf16.msra.mxu0 %v513
      %533 = vmatprep.subr.bf16.mxu0 0
      %534 = vmatpush1.bf16.msra.mxu0 %v514
      %535 = vmatprep.subr.bf16.mxu0 0
      %536 = vmatpush1.bf16.msra.mxu0 %v515
      %537 = vmatprep.subr.bf16.mxu0 0
      %538 = vmatpush1.bf16.msra.mxu0 %v516
      %539 = vmatprep.subr.bf16.mxu0 0
      %540 = vmatpush1.bf16.msra.mxu0 %v517
      %541 = vmatprep.subr.bf16.mxu0 0
      %542 = vmatpush1.bf16.msra.mxu0 %v518
      %543 = vmatprep.subr.bf16.mxu0 0
      %544 = vmatpush1.bf16.msra.mxu0 0
      %545 = vmatprep.subr.bf16.mxu0 0
      %546 = vmatpush1.bf16.msra.mxu0 0
      %547 = vmatprep.subr.bf16.mxu0 0
      %548 = vmatpush1.bf16.msra.mxu0 0
      %549 = vmatprep.subr.bf16.mxu0 0
      %550 = vmatpush1.bf16.msra.mxu0 0
      %551 = vmatprep.subr.bf16.mxu0 0
      %552 = vmatpush1.bf16.msra.mxu0 0
      %553 = vmatprep.subr.bf16.mxu0 0
      %554 = vmatpush1.bf16.msra.mxu0 0
      %555 = vmatprep.subr.bf16.mxu0 0
      %556 = vmatpush1.bf16.msra.mxu0 0
      %557 = vmatprep.subr.bf16.mxu0 0
      %558 = vmatpush1.bf16.msra.mxu0 0
      %559 = vmatprep.mubr.bf16.mxu0 0
      %560 = vmatmul.mubr.bf16.gmra.mrb[0].mxu0 %v357
      %v561 = vpop.f32.mrb[0].mxu0
      %v562 = vadd.f32 0.0, %v561
      %v563 = vpop.f32.mrb[0].mxu0
      %v564 = vpop.f32.mrb[0].mxu0
      %v565 = vadd.f32 0.0, %v564
      %v566 = vpop.f32.mrb[0].mxu0
      %567 = vdwg.mxu0
      %v568 = vld [vmem:[%s4] sm:$0xf]
      %v569 = vld [vmem:[%s4 + $0x4] sm:$0xf]
      %v570 = vld [vmem:[%s4 + $0x8] sm:$0xf]
      %v571 = vld [vmem:[%s4 + $0xc] sm:$0xf]
      %v572 = vld [vmem:[%s4 + $0x10] sm:$0xf]
      %v573 = vld [vmem:[%s4 + $0x14] sm:$0xf]
      %v574 = vld [vmem:[%s4 + $0x18] sm:$0xf]
      %v575 = vld [vmem:[%s4 + $0x1c] sm:$0xf]
      %v576 = vld [vmem:[%s4 + $0x20] sm:$0xf]
      %v577 = vld [vmem:[%s4 + $0x24] sm:$0xf]
      %v578 = vld [vmem:[%s4 + $0x28] sm:$0xf]
      %v579 = vld [vmem:[%s4 + $0x2c] sm:$0xf]
      %v580 = vld [vmem:[%s4 + $0x30] sm:$0xf]
      %v581 = vld [vmem:[%s4 + $0x34] sm:$0xf]
      %v582 = vld [vmem:[%s4 + $0x38] sm:$0xf]
      %v583 = vld [vmem:[%s4 + $0x3c] sm:$0xf]
      %v600 = vunpack.c.l.b16 %v568
      %v601 = vunpack.c.l.b16 %v569
      %v602 = vunpack.c.l.b16 %v570
      %v603 = vunpack.c.l.b16 %v571
      %v604 = vunpack.c.l.b16 %v572
      %v605 = vunpack.c.l.b16 %v573
      %v606 = vunpack.c.l.b16 %v574
      %v607 = vunpack.c.l.b16 %v575
      %v608 = vunpack.c.l.b16 %v576
      %v609 = vunpack.c.l.b16 %v577
      %v610 = vunpack.c.l.b16 %v578
      %v611 = vunpack.c.l.b16 %v579
      %v612 = vunpack.c.l.b16 %v580
      %v613 = vunpack.c.l.b16 %v581
      %v614 = vunpack.c.l.b16 %v582
      %v615 = vunpack.c.l.b16 %v583
      %v616 = vpack.c.b16 %v601, %v600
      %v617 = vpack.c.b16 %v603, %v602
      %v618 = vpack.c.b16 %v605, %v604
      %v619 = vpack.c.b16 %v607, %v606
      %v620 = vpack.c.b16 %v609, %v608
      %v621 = vpack.c.b16 %v611, %v610
      %v622 = vpack.c.b16 %v613, %v612
      %v623 = vpack.c.b16 %v615, %v614
      %632 = vmatprep.subr.bf16.mxu0 0
      %633 = vmatpush1.bf16.msra.mxu0 %v616
      %634 = vmatprep.subr.bf16.mxu0 0
      %635 = vmatpush1.bf16.msra.mxu0 %v617
      %636 = vmatprep.subr.bf16.mxu0 0
      %637 = vmatpush1.bf16.msra.mxu0 %v618
      %638 = vmatprep.subr.bf16.mxu0 0
      %639 = vmatpush1.bf16.msra.mxu0 %v619
      %640 = vmatprep.subr.bf16.mxu0 0
      %641 = vmatpush1.bf16.msra.mxu0 %v620
      %642 = vmatprep.subr.bf16.mxu0 0
      %643 = vmatpush1.bf16.msra.mxu0 %v621
      %644 = vmatprep.subr.bf16.mxu0 0
      %645 = vmatpush1.bf16.msra.mxu0 %v622
      %646 = vmatprep.subr.bf16.mxu0 0
      %647 = vmatpush1.bf16.msra.mxu0 %v623
      %648 = vmatprep.subr.bf16.mxu0 0
      %649 = vmatpush1.bf16.msra.mxu0 0
      %650 = vmatprep.subr.bf16.mxu0 0
      %651 = vmatpush1.bf16.msra.mxu0 0
      %652 = vmatprep.subr.bf16.mxu0 0
      %653 = vmatpush1.bf16.msra.mxu0 0
      %654 = vmatprep.subr.bf16.mxu0 0
      %655 = vmatpush1.bf16.msra.mxu0 0
      %656 = vmatprep.subr.bf16.mxu0 0
      %657 = vmatpush1.bf16.msra.mxu0 0
      %658 = vmatprep.subr.bf16.mxu0 0
      %659 = vmatpush1.bf16.msra.mxu0 0
      %660 = vmatprep.subr.bf16.mxu0 0
      %661 = vmatpush1.bf16.msra.mxu0 0
      %662 = vmatprep.subr.bf16.mxu0 0
      %663 = vmatpush1.bf16.msra.mxu0 0
      %664 = vmatprep.mubr.bf16.mxu0 0
      %665 = vmatmul.mubr.bf16.gmra.mrb[0].mxu0 %v357
      %v666 = vpop.f32.mrb[0].mxu0
      %v667 = vadd.f32 0.0, %v666
      %v668 = vpop.f32.mrb[0].mxu0
      %v669 = vpop.f32.mrb[0].mxu0
      %v670 = vadd.f32 0.0, %v669
      %v671 = vpop.f32.mrb[0].mxu0
      %672 = vdwg.mxu0
      %v673 = vpack.c.bf16 %v462, %v462
      %v674 = vpack.c.bf16 %v565, %v562
      %vm675 = vcmask 64512
      %v677 = vsel %vm675, %v673, 0
      %v680 = vsel %vm675, %v674, 0
      %682 = vmatprep.subr.bf16.mxu0 0
      %683 = vmatpush1.bf16.xpose.msra.mxu0 %v680
      %684 = vmatprep.subr.bf16.mxu0 0
      %685 = vmatpush1.bf16.xpose.msra.mxu0 0
      %686 = vmatprep.subr.bf16.mxu0 0
      %687 = vmatpush1.bf16.xpose.msra.mxu0 0
      %688 = vmatprep.subr.bf16.mxu0 0
      %689 = vmatpush1.bf16.xpose.msra.mxu0 0
      %690 = vmatprep.subr.bf16.mxu0 0
      %691 = vmatpush1.bf16.xpose.msra.mxu0 0
      %692 = vmatprep.subr.bf16.mxu0 0
      %693 = vmatpush1.bf16.xpose.msra.mxu0 0
      %694 = vmatprep.subr.bf16.mxu0 0
      %695 = vmatpush1.bf16.xpose.msra.mxu0 0
      %696 = vmatprep.subr.bf16.mxu0 0
      %697 = vmatpush1.bf16.xpose.msra.mxu0 0
      %698 = vmatprep.subr.bf16.mxu0 0
      %699 = vmatpush1.bf16.xpose.msra.mxu0 0
      %700 = vmatprep.subr.bf16.mxu0 0
      %701 = vmatpush1.bf16.xpose.msra.mxu0 0
      %702 = vmatprep.subr.bf16.mxu0 0
      %703 = vmatpush1.bf16.xpose.msra.mxu0 0
      %704 = vmatprep.subr.bf16.mxu0 0
      %705 = vmatpush1.bf16.xpose.msra.mxu0 0
      %706 = vmatprep.subr.bf16.mxu0 0
      %707 = vmatpush1.bf16.xpose.msra.mxu0 0
      %708 = vmatprep.subr.bf16.mxu0 0
      %709 = vmatpush1.bf16.xpose.msra.mxu0 0
      %710 = vmatprep.subr.bf16.mxu0 0
      %711 = vmatpush1.bf16.xpose.msra.mxu0 0
      %712 = vmatprep.subr.bf16.mxu0 0
      %713 = vmatpush1.bf16.xpose.msra.mxu0 0
      %714 = vmatprep.mubr.bf16.mxu0 0
      %715 = vmatmul.mubr.bf16.gmra.mrb[0].mxu0 %v677
      %v716 = vpop.f32.mrb[0].mxu0
      %v717 = vadd.f32 0.0, %v716
      %v718 = vpop.f32.mrb[0].mxu0
      %v719 = vpop.f32.mrb[0].mxu0
      %v720 = vpop.f32.mrb[0].mxu0
      %721 = vdwg.mxu0
      %vm722 = vcmask 72704
      %v723 = vsel %vm722, %v717, -inf
      %724 = vmax.xlane.f32.xlu0 %v723
      %v725 = vpop.xlane.xlu0 %724
      %v726 = vsub.f32 %v717, %v725
      %v727 = vmul.f32 %v726, 1.442695
      %v728 = vpow.pop %v727
      %v729 = vsel %vm722, %v728, 0.0
      %730 = vadd.xlane.f32.xlu0 %v729
      %v731 = vpop.xlane.xlu0 %730
      %v732 = vrcp.pop %v731
      %v733 = vmul.f32 %v728, %v732
      %v734 = vpack.c.bf16 %v733, %v733
      %v735 = vpack.c.bf16 %v670, %v667
      %v737 = vsel %vm722, %v734, 0
      %vm739 = vcmask 1043456
      %vm740 = vcmask 1044480
      %v741 = vsel %vm739, 4294967295, 65535
      %v742 = vsel %vm740, %v741, 0
      %v744 = vand.u32 %v735, %v742
      %746 = vmatprep.subr.bf16.mxu0 0
      %747 = vmatpush1.bf16.msra.mxu0 %v744
      %748 = vmatprep.subr.bf16.mxu0 0
      %749 = vmatpush1.bf16.msra.mxu0 0
      %750 = vmatprep.subr.bf16.mxu0 0
      %751 = vmatpush1.bf16.msra.mxu0 0
      %752 = vmatprep.subr.bf16.mxu0 0
      %753 = vmatpush1.bf16.msra.mxu0 0
      %754 = vmatprep.subr.bf16.mxu0 0
      %755 = vmatpush1.bf16.msra.mxu0 0
      %756 = vmatprep.subr.bf16.mxu0 0
      %757 = vmatpush1.bf16.msra.mxu0 0
      %758 = vmatprep.subr.bf16.mxu0 0
      %759 = vmatpush1.bf16.msra.mxu0 0
      %760 = vmatprep.subr.bf16.mxu0 0
      %761 = vmatpush1.bf16.msra.mxu0 0
      %762 = vmatprep.subr.bf16.mxu0 0
      %763 = vmatpush1.bf16.msra.mxu0 0
      %764 = vmatprep.subr.bf16.mxu0 0
      %765 = vmatpush1.bf16.msra.mxu0 0
      %766 = vmatprep.subr.bf16.mxu0 0
      %767 = vmatpush1.bf16.msra.mxu0 0
      %768 = vmatprep.subr.bf16.mxu0 0
      %769 = vmatpush1.bf16.msra.mxu0 0
      %770 = vmatprep.subr.bf16.mxu0 0
      %771 = vmatpush1.bf16.msra.mxu0 0
      %772 = vmatprep.subr.bf16.mxu0 0
      %773 = vmatpush1.bf16.msra.mxu0 0
      %774 = vmatprep.subr.bf16.mxu0 0
      %775 = vmatpush1.bf16.msra.mxu0 0
      %776 = vmatprep.subr.bf16.mxu0 0
      %777 = vmatpush1.bf16.msra.mxu0 0
      %778 = vmatprep.mubr.bf16.mxu0 0
      %779 = vmatmul.mubr.bf16.gmra.mrb[0].mxu0 %v737
      %v780 = vpop.f32.mrb[0].mxu0
      %v781 = vadd.f32 0.0, %v780
      %v782 = vpop.f32.mrb[0].mxu0
      %v783 = vpop.f32.mrb[0].mxu0
      %v784 = vpop.f32.mrb[0].mxu0
      %785 = vdwg.mxu0
      %786 = vst.msk [vmem:[#allocation2] sm:$0xff] %vm675, %v781
      %s787 = scalar_lea.vmem %s2, 64
      %v788 = vld [vmem:[%s787] sm:$0xf]
      %v789 = vld [vmem:[%s787 + $0x4] sm:$0xf]
      %v790 = vld [vmem:[%s787 + $0x8] sm:$0xf]
      %v791 = vld [vmem:[%s787 + $0xc] sm:$0xf]
      %v792 = vld [vmem:[%s787 + $0x10] sm:$0xf]
      %v793 = vld [vmem:[%s787 + $0x14] sm:$0xf]
      %v794 = vld [vmem:[%s787 + $0x18] sm:$0xf]
      %v795 = vld [vmem:[%s787 + $0x1c] sm:$0xf]
      %v796 = vld [vmem:[%s787 + $0x20] sm:$0xf]
      %v797 = vld [vmem:[%s787 + $0x24] sm:$0xf]
      %v798 = vld [vmem:[%s787 + $0x28] sm:$0xf]
      %v799 = vld [vmem:[%s787 + $0x2c] sm:$0xf]
      %v800 = vld [vmem:[%s787 + $0x30] sm:$0xf]
      %v801 = vld [vmem:[%s787 + $0x34] sm:$0xf]
      %v802 = vld [vmem:[%s787 + $0x38] sm:$0xf]
      %v803 = vld [vmem:[%s787 + $0x3c] sm:$0xf]
      %v820 = vunpack.c.l.b16 %v788
      %v821 = vunpack.c.l.b16 %v789
      %v822 = vunpack.c.l.b16 %v790
      %v823 = vunpack.c.l.b16 %v791
      %v824 = vunpack.c.l.b16 %v792
      %v825 = vunpack.c.l.b16 %v793
      %v826 = vunpack.c.l.b16 %v794
      %v827 = vunpack.c.l.b16 %v795
      %v828 = vunpack.c.l.b16 %v796
      %v829 = vunpack.c.l.b16 %v797
      %v830 = vunpack.c.l.b16 %v798
      %v831 = vunpack.c.l.b16 %v799
      %v832 = vunpack.c.l.b16 %v800
      %v833 = vunpack.c.l.b16 %v801
      %v834 = vunpack.c.l.b16 %v802
      %v835 = vunpack.c.l.b16 %v803
      %v836 = vpack.c.b16 %v821, %v820
      %v837 = vpack.c.b16 %v823, %v822
      %v838 = vpack.c.b16 %v825, %v824
      %v839 = vpack.c.b16 %v827, %v826
      %v840 = vpack.c.b16 %v829, %v828
      %v841 = vpack.c.b16 %v831, %v830
      %v842 = vpack.c.b16 %v833, %v832
      %v843 = vpack.c.b16 %v835, %v834
      %852 = vmatprep.subr.bf16.mxu0 0
      %853 = vmatpush1.bf16.msra.mxu0 %v836
      %854 = vmatprep.subr.bf16.mxu0 0
      %855 = vmatpush1.bf16.msra.mxu0 %v837
      %856 = vmatprep.subr.bf16.mxu0 0
      %857 = vmatpush1.bf16.msra.mxu0 %v838
      %858 = vmatprep.subr.bf16.mxu0 0
      %859 = vmatpush1.bf16.msra.mxu0 %v839
      %860 = vmatprep.subr.bf16.mxu0 0
      %861 = vmatpush1.bf16.msra.mxu0 %v840
      %862 = vmatprep.subr.bf16.mxu0 0
      %863 = vmatpush1.bf16.msra.mxu0 %v841
      %864 = vmatprep.subr.bf16.mxu0 0
      %865 = vmatpush1.bf16.msra.mxu0 %v842
      %866 = vmatprep.subr.bf16.mxu0 0
      %867 = vmatpush1.bf16.msra.mxu0 %v843
      %868 = vmatprep.subr.bf16.mxu0 0
      %869 = vmatpush1.bf16.msra.mxu0 0
      %870 = vmatprep.subr.bf16.mxu0 0
      %871 = vmatpush1.bf16.msra.mxu0 0
      %872 = vmatprep.subr.bf16.mxu0 0
      %873 = vmatpush1.bf16.msra.mxu0 0
      %874 = vmatprep.subr.bf16.mxu0 0
      %875 = vmatpush1.bf16.msra.mxu0 0
      %876 = vmatprep.subr.bf16.mxu0 0
      %877 = vmatpush1.bf16.msra.mxu0 0
      %878 = vmatprep.subr.bf16.mxu0 0
      %879 = vmatpush1.bf16.msra.mxu0 0
      %880 = vmatprep.subr.bf16.mxu0 0
      %881 = vmatpush1.bf16.msra.mxu0 0
      %882 = vmatprep.subr.bf16.mxu0 0
      %883 = vmatpush1.bf16.msra.mxu0 0
      %884 = vmatprep.mubr.bf16.mxu0 0
      %885 = vmatmul.mubr.bf16.gmra.mrb[0].mxu0 %v354
      %v886 = vpop.f32.mrb[0].mxu0
      %v887 = vadd.f32 0.0, %v886
      %v888 = vpop.f32.mrb[0].mxu0
      %v889 = vpop.f32.mrb[0].mxu0
      %v890 = vpop.f32.mrb[0].mxu0
      %891 = vdwg.mxu0
      %v892 = vmul.f32 %v887, 0.35355338
      %s893 = scalar_lea.vmem %s3, 64
      %v894 = vld [vmem:[%s893] sm:$0xf]
      %v895 = vld [vmem:[%s893 + $0x4] sm:$0xf]
      %v896 = vld [vmem:[%s893 + $0x8] sm:$0xf]
      %v897 = vld [vmem:[%s893 + $0xc] sm:$0xf]
      %v898 = vld [vmem:[%s893 + $0x10] sm:$0xf]
      %v899 = vld [vmem:[%s893 + $0x14] sm:$0xf]
      %v900 = vld [vmem:[%s893 + $0x18] sm:$0xf]
      %v901 = vld [vmem:[%s893 + $0x1c] sm:$0xf]
      %v902 = vld [vmem:[%s893 + $0x20] sm:$0xf]
      %v903 = vld [vmem:[%s893 + $0x24] sm:$0xf]
      %v904 = vld [vmem:[%s893 + $0x28] sm:$0xf]
      %v905 = vld [vmem:[%s893 + $0x2c] sm:$0xf]
      %v906 = vld [vmem:[%s893 + $0x30] sm:$0xf]
      %v907 = vld [vmem:[%s893 + $0x34] sm:$0xf]
      %v908 = vld [vmem:[%s893 + $0x38] sm:$0xf]
      %v909 = vld [vmem:[%s893 + $0x3c] sm:$0xf]
      %v926 = vunpack.c.l.b16 %v894
      %v927 = vunpack.c.l.b16 %v895
      %v928 = vunpack.c.l.b16 %v896
      %v929 = vunpack.c.l.b16 %v897
      %v930 = vunpack.c.l.b16 %v898
      %v931 = vunpack.c.l.b16 %v899
      %v932 = vunpack.c.l.b16 %v900
      %v933 = vunpack.c.l.b16 %v901
      %v934 = vunpack.c.l.b16 %v902
      %v935 = vunpack.c.l.b16 %v903
      %v936 = vunpack.c.l.b16 %v904
      %v937 = vunpack.c.l.b16 %v905
      %v938 = vunpack.c.l.b16 %v906
      %v939 = vunpack.c.l.b16 %v907
      %v940 = vunpack.c.l.b16 %v908
      %v941 = vunpack.c.l.b16 %v909
      %v942 = vpack.c.b16 %v927, %v926
      %v943 = vpack.c.b16 %v929, %v928
      %v944 = vpack.c.b16 %v931, %v930
      %v945 = vpack.c.b16 %v933, %v932
      %v946 = vpack.c.b16 %v935, %v934
      %v947 = vpack.c.b16 %v937, %v936
      %v948 = vpack.c.b16 %v939, %v938
      %v949 = vpack.c.b16 %v941, %v940
      %958 = vmatprep.subr.bf16.mxu0 0
      %959 = vmatpush1.bf16.msra.mxu0 %v942
      %960 = vmatprep.subr.bf16.mxu0 0
      %961 = vmatpush1.bf16.msra.mxu0 %v943
      %962 = vmatprep.subr.bf16.mxu0 0
      %963 = vmatpush1.bf16.msra.mxu0 %v944
      %964 = vmatprep.subr.bf16.mxu0 0
      %965 = vmatpush1.bf16.msra.mxu0 %v945
      %966 = vmatprep.subr.bf16.mxu0 0
      %967 = vmatpush1.bf16.msra.mxu0 %v946
      %968 = vmatprep.subr.bf16.mxu0 0
      %969 = vmatpush1.bf16.msra.mxu0 %v947
      %970 = vmatprep.subr.bf16.mxu0 0
      %971 = vmatpush1.bf16.msra.mxu0 %v948
      %972 = vmatprep.subr.bf16.mxu0 0
      %973 = vmatpush1.bf16.msra.mxu0 %v949
      %974 = vmatprep.subr.bf16.mxu0 0
      %975 = vmatpush1.bf16.msra.mxu0 0
      %976 = vmatprep.subr.bf16.mxu0 0
      %977 = vmatpush1.bf16.msra.mxu0 0
      %978 = vmatprep.subr.bf16.mxu0 0
      %979 = vmatpush1.bf16.msra.mxu0 0
      %980 = vmatprep.subr.bf16.mxu0 0
      %981 = vmatpush1.bf16.msra.mxu0 0
      %982 = vmatprep.subr.bf16.mxu0 0
      %983 = vmatpush1.bf16.msra.mxu0 0
      %984 = vmatprep.subr.bf16.mxu0 0
      %985 = vmatpush1.bf16.msra.mxu0 0
      %986 = vmatprep.subr.bf16.mxu0 0
      %987 = vmatpush1.bf16.msra.mxu0 0
      %988 = vmatprep.subr.bf16.mxu0 0
      %989 = vmatpush1.bf16.msra.mxu0 0
      %990 = vmatprep.mubr.bf16.mxu0 0
      %991 = vmatmul.mubr.bf16.gmra.mrb[0].mxu0 %v357
      %v992 = vpop.f32.mrb[0].mxu0
      %v993 = vadd.f32 0.0, %v992
      %v994 = vpop.f32.mrb[0].mxu0
      %v995 = vpop.f32.mrb[0].mxu0
      %v996 = vadd.f32 0.0, %v995
      %v997 = vpop.f32.mrb[0].mxu0
      %998 = vdwg.mxu0
      %s999 = scalar_lea.vmem %s4, 64
      %v1000 = vld [vmem:[%s999] sm:$0xf]
      %v1001 = vld [vmem:[%s999 + $0x4] sm:$0xf]
      %v1002 = vld [vmem:[%s999 + $0x8] sm:$0xf]
      %v1003 = vld [vmem:[%s999 + $0xc] sm:$0xf]
      %v1004 = vld [vmem:[%s999 + $0x10] sm:$0xf]
      %v1005 = vld [vmem:[%s999 + $0x14] sm:$0xf]
      %v1006 = vld [vmem:[%s999 + $0x18] sm:$0xf]
      %v1007 = vld [vmem:[%s999 + $0x1c] sm:$0xf]
      %v1008 = vld [vmem:[%s999 + $0x20] sm:$0xf]
      %v1009 = vld [vmem:[%s999 + $0x24] sm:$0xf]
      %v1010 = vld [vmem:[%s999 + $0x28] sm:$0xf]
      %v1011 = vld [vmem:[%s999 + $0x2c] sm:$0xf]
      %v1012 = vld [vmem:[%s999 + $0x30] sm:$0xf]
      %v1013 = vld [vmem:[%s999 + $0x34] sm:$0xf]
      %v1014 = vld [vmem:[%s999 + $0x38] sm:$0xf]
      %v1015 = vld [vmem:[%s999 + $0x3c] sm:$0xf]
      %v1032 = vunpack.c.l.b16 %v1000
      %v1033 = vunpack.c.l.b16 %v1001
      %v1034 = vunpack.c.l.b16 %v1002
      %v1035 = vunpack.c.l.b16 %v1003
      %v1036 = vunpack.c.l.b16 %v1004
      %v1037 = vunpack.c.l.b16 %v1005
      %v1038 = vunpack.c.l.b16 %v1006
      %v1039 = vunpack.c.l.b16 %v1007
      %v1040 = vunpack.c.l.b16 %v1008
      %v1041 = vunpack.c.l.b16 %v1009
      %v1042 = vunpack.c.l.b16 %v1010
      %v1043 = vunpack.c.l.b16 %v1011
      %v1044 = vunpack.c.l.b16 %v1012
      %v1045 = vunpack.c.l.b16 %v1013
      %v1046 = vunpack.c.l.b16 %v1014
      %v1047 = vunpack.c.l.b16 %v1015
      %v1048 = vpack.c.b16 %v1033, %v1032
      %v1049 = vpack.c.b16 %v1035, %v1034
      %v1050 = vpack.c.b16 %v1037, %v1036
      %v1051 = vpack.c.b16 %v1039, %v1038
      %v1052 = vpack.c.b16 %v1041, %v1040
      %v1053 = vpack.c.b16 %v1043, %v1042
      %v1054 = vpack.c.b16 %v1045, %v1044
      %v1055 = vpack.c.b16 %v1047, %v1046
      %1064 = vmatprep.subr.bf16.mxu0 0
      %1065 = vmatpush1.bf16.msra.mxu0 %v1048
      %1066 = vmatprep.subr.bf16.mxu0 0
      %1067 = vmatpush1.bf16.msra.mxu0 %v1049
      %1068 = vmatprep.subr.bf16.mxu0 0
      %1069 = vmatpush1.bf16.msra.mxu0 %v1050
      %1070 = vmatprep.subr.bf16.mxu0 0
      %1071 = vmatpush1.bf16.msra.mxu0 %v1051
      %1072 = vmatprep.subr.bf16.mxu0 0
      %1073 = vmatpush1.bf16.msra.mxu0 %v1052
      %1074 = vmatprep.subr.bf16.mxu0 0
      %1075 = vmatpush1.bf16.msra.mxu0 %v1053
      %1076 = vmatprep.subr.bf16.mxu0 0
      %1077 = vmatpush1.bf16.msra.mxu0 %v1054
      %1078 = vmatprep.subr.bf16.mxu0 0
      %1079 = vmatpush1.bf16.msra.mxu0 %v1055
      %1080 = vmatprep.subr.bf16.mxu0 0
      %1081 = vmatpush1.bf16.msra.mxu0 0
      %1082 = vmatprep.subr.bf16.mxu0 0
      %1083 = vmatpush1.bf16.msra.mxu0 0
      %1084 = vmatprep.subr.bf16.mxu0 0
      %1085 = vmatpush1.bf16.msra.mxu0 0
      %1086 = vmatprep.subr.bf16.mxu0 0
      %1087 = vmatpush1.bf16.msra.mxu0 0
      %1088 = vmatprep.subr.bf16.mxu0 0
      %1089 = vmatpush1.bf16.msra.mxu0 0
      %1090 = vmatprep.subr.bf16.mxu0 0
      %1091 = vmatpush1.bf16.msra.mxu0 0
      %1092 = vmatprep.subr.bf16.mxu0 0
      %1093 = vmatpush1.bf16.msra.mxu0 0
      %1094 = vmatprep.subr.bf16.mxu0 0
      %1095 = vmatpush1.bf16.msra.mxu0 0
      %1096 = vmatprep.mubr.bf16.mxu0 0
      %1097 = vmatmul.mubr.bf16.gmra.mrb[0].mxu0 %v357
      %v1098 = vpop.f32.mrb[0].mxu0
      %v1099 = vadd.f32 0.0, %v1098
      %v1100 = vpop.f32.mrb[0].mxu0
      %v1101 = vpop.f32.mrb[0].mxu0
      %v1102 = vadd.f32 0.0, %v1101
      %v1103 = vpop.f32.mrb[0].mxu0
      %1104 = vdwg.mxu0
      %v1105 = vpack.c.bf16 %v892, %v892
      %v1106 = vpack.c.bf16 %v996, %v993
      %v1108 = vsel %vm675, %v1105, 0
      %v1111 = vsel %vm675, %v1106, 0
      %1113 = vmatprep.subr.bf16.mxu0 0
      %1114 = vmatpush1.bf16.xpose.msra.mxu0 %v1111
      %1115 = vmatprep.subr.bf16.mxu0 0
      %1116 = vmatpush1.bf16.xpose.msra.mxu0 0
      %1117 = vmatprep.subr.bf16.mxu0 0
      %1118 = vmatpush1.bf16.xpose.msra.mxu0 0
      %1119 = vmatprep.subr.bf16.mxu0 0
      %1120 = vmatpush1.bf16.xpose.msra.mxu0 0
      %1121 = vmatprep.subr.bf16.mxu0 0
      %1122 = vmatpush1.bf16.xpose.msra.mxu0 0
      %1123 = vmatprep.subr.bf16.mxu0 0
      %1124 = vmatpush1.bf16.xpose.msra.mxu0 0
      %1125 = vmatprep.subr.bf16.mxu0 0
      %1126 = vmatpush1.bf16.xpose.msra.mxu0 0
      %1127 = vmatprep.subr.bf16.mxu0 0
      %1128 = vmatpush1.bf16.xpose.msra.mxu0 0
      %1129 = vmatprep.subr.bf16.mxu0 0
      %1130 = vmatpush1.bf16.xpose.msra.mxu0 0
      %1131 = vmatprep.subr.bf16.mxu0 0
      %1132 = vmatpush1.bf16.xpose.msra.mxu0 0
      %1133 = vmatprep.subr.bf16.mxu0 0
      %1134 = vmatpush1.bf16.xpose.msra.mxu0 0
      %1135 = vmatprep.subr.bf16.mxu0 0
      %1136 = vmatpush1.bf16.xpose.msra.mxu0 0
      %1137 = vmatprep.subr.bf16.mxu0 0
      %1138 = vmatpush1.bf16.xpose.msra.mxu0 0
      %1139 = vmatprep.subr.bf16.mxu0 0
      %1140 = vmatpush1.bf16.xpose.msra.mxu0 0
      %1141 = vmatprep.subr.bf16.mxu0 0
      %1142 = vmatpush1.bf16.xpose.msra.mxu0 0
      %1143 = vmatprep.subr.bf16.mxu0 0
      %1144 = vmatpush1.bf16.xpose.msra.mxu0 0
      %1145 = vmatprep.mubr.bf16.mxu0 0
      %1146 = vmatmul.mubr.bf16.gmra.mrb[0].mxu0 %v1108
      %v1147 = vpop.f32.mrb[0].mxu0
      %v1148 = vadd.f32 0.0, %v1147
      %v1149 = vpop.f32.mrb[0].mxu0
      %v1150 = vpop.f32.mrb[0].mxu0
      %v1151 = vpop.f32.mrb[0].mxu0
      %1152 = vdwg.mxu0
      %v1153 = vsel %vm722, %v1148, -inf
      %1154 = vmax.xlane.f32.xlu0 %v1153
      %v1155 = vpop.xlane.xlu0 %1154
      %v1156 = vsub.f32 %v1148, %v1155
      %v1157 = vmul.f32 %v1156, 1.442695
      %v1158 = vpow.pop %v1157
      %v1159 = vsel %vm722, %v1158, 0.0
      %1160 = vadd.xlane.f32.xlu0 %v1159
      %v1161 = vpop.xlane.xlu0 %1160
      %v1162 = vrcp.pop %v1161
      %v1163 = vmul.f32 %v1158, %v1162
      %v1164 = vpack.c.bf16 %v1163, %v1163
      %v1165 = vpack.c.bf16 %v1102, %v1099
      %v1167 = vsel %vm722, %v1164, 0
      %v1170 = vand.u32 %v1165, %v742
      %1172 = vmatprep.subr.bf16.mxu0 0
      %1173 = vmatpush1.bf16.msra.mxu0 %v1170
      %1174 = vmatprep.subr.bf16.mxu0 0
      %1175 = vmatpush1.bf16.msra.mxu0 0
      %1176 = vmatprep.subr.bf16.mxu0 0
      %1177 = vmatpush1.bf16.msra.mxu0 0
      %1178 = vmatprep.subr.bf16.mxu0 0
      %1179 = vmatpush1.bf16.msra.mxu0 0
      %1180 = vmatprep.subr.bf16.mxu0 0
      %1181 = vmatpush1.bf16.msra.mxu0 0
      %1182 = vmatprep.subr.bf16.mxu0 0
      %1183 = vmatpush1.bf16.msra.mxu0 0
      %1184 = vmatprep.subr.bf16.mxu0 0
      %1185 = vmatpush1.bf16.msra.mxu0 0
      %1186 = vmatprep.subr.bf16.mxu0 0
      %1187 = vmatpush1.bf16.msra.mxu0 0
      %1188 = vmatprep.subr.bf16.mxu0 0
      %1189 = vmatpush1.bf16.msra.mxu0 0
      %1190 = vmatprep.subr.bf16.mxu0 0
      %1191 = vmatpush1.bf16.msra.mxu0 0
      %1192 = vmatprep.subr.bf16.mxu0 0
      %1193 = vmatpush1.bf16.msra.mxu0 0
      %1194 = vmatprep.subr.bf16.mxu0 0
      %1195 = vmatpush1.bf16.msra.mxu0 0
      %1196 = vmatprep.subr.bf16.mxu0 0
      %1197 = vmatpush1.bf16.msra.mxu0 0
      %1198 = vmatprep.subr.bf16.mxu0 0
      %1199 = vmatpush1.bf16.msra.mxu0 0
      %1200 = vmatprep.subr.bf16.mxu0 0
      %1201 = vmatpush1.bf16.msra.mxu0 0
      %1202 = vmatprep.subr.bf16.mxu0 0
      %1203 = vmatpush1.bf16.msra.mxu0 0
      %1204 = vmatprep.mubr.bf16.mxu0 0
      %1205 = vmatmul.mubr.bf16.gmra.mrb[0].mxu0 %v1167
      %v1206 = vpop.f32.mrb[0].mxu0
      %v1207 = vadd.f32 0.0, %v1206
      %v1208 = vpop.f32.mrb[0].mxu0
      %v1209 = vpop.f32.mrb[0].mxu0
      %v1210 = vpop.f32.mrb[0].mxu0
      %1211 = vdwg.mxu0
      %1213 = vrot.lane.b32.xlu0 %v1207, 8
      %v1214 = vpop.permute.xlu0 %1213
      %vm1216 = vcmask 130112
      %1217 = vst.msk [vmem:[#allocation2] sm:$0xff] %vm1216, %v1214
      %s1218 = scalar_lea.vmem %s2, 128
      %v1219 = vld [vmem:[%s1218] sm:$0xf]
      %v1220 = vld [vmem:[%s1218 + $0x4] sm:$0xf]
      %v1221 = vld [vmem:[%s1218 + $0x8] sm:$0xf]
      %v1222 = vld [vmem:[%s1218 + $0xc] sm:$0xf]
      %v1223 = vld [vmem:[%s1218 + $0x10] sm:$0xf]
      %v1224 = vld [vmem:[%s1218 + $0x14] sm:$0xf]
      %v1225 = vld [vmem:[%s1218 + $0x18] sm:$0xf]
      %v1226 = vld [vmem:[%s1218 + $0x1c] sm:$0xf]
      %v1227 = vld [vmem:[%s1218 + $0x20] sm:$0xf]
      %v1228 = vld [vmem:[%s1218 + $0x24] sm:$0xf]
      %v1229 = vld [vmem:[%s1218 + $0x28] sm:$0xf]
      %v1230 = vld [vmem:[%s1218 + $0x2c] sm:$0xf]
      %v1231 = vld [vmem:[%s1218 + $0x30] sm:$0xf]
      %v1232 = vld [vmem:[%s1218 + $0x34] sm:$0xf]
      %v1233 = vld [vmem:[%s1218 + $0x38] sm:$0xf]
      %v1234 = vld [vmem:[%s1218 + $0x3c] sm:$0xf]
      %v1251 = vunpack.c.l.b16 %v1219
      %v1252 = vunpack.c.l.b16 %v1220
      %v1253 = vunpack.c.l.b16 %v1221
      %v1254 = vunpack.c.l.b16 %v1222
      %v1255 = vunpack.c.l.b16 %v1223
      %v1256 = vunpack.c.l.b16 %v1224
      %v1257 = vunpack.c.l.b16 %v1225
      %v1258 = vunpack.c.l.b16 %v1226
      %v1259 = vunpack.c.l.b16 %v1227
      %v1260 = vunpack.c.l.b16 %v1228
      %v1261 = vunpack.c.l.b16 %v1229
      %v1262 = vunpack.c.l.b16 %v1230
      %v1263 = vunpack.c.l.b16 %v1231
      %v1264 = vunpack.c.l.b16 %v1232
      %v1265 = vunpack.c.l.b16 %v1233
      %v1266 = vunpack.c.l.b16 %v1234
      %v1267 = vpack.c.b16 %v1252, %v1251
      %v1268 = vpack.c.b16 %v1254, %v1253
      %v1269 = vpack.c.b16 %v1256, %v1255
      %v1270 = vpack.c.b16 %v1258, %v1257
      %v1271 = vpack.c.b16 %v1260, %v1259
      %v1272 = vpack.c.b16 %v1262, %v1261
      %v1273 = vpack.c.b16 %v1264, %v1263
      %v1274 = vpack.c.b16 %v1266, %v1265
      %1283 = vmatprep.subr.bf16.mxu0 0
      %1284 = vmatpush1.bf16.msra.mxu0 %v1267
      %1285 = vmatprep.subr.bf16.mxu0 0
      %1286 = vmatpush1.bf16.msra.mxu0 %v1268
      %1287 = vmatprep.subr.bf16.mxu0 0
      %1288 = vmatpush1.bf16.msra.mxu0 %v1269
      %1289 = vmatprep.subr.bf16.mxu0 0
      %1290 = vmatpush1.bf16.msra.mxu0 %v1270
      %1291 = vmatprep.subr.bf16.mxu0 0
      %1292 = vmatpush1.bf16.msra.mxu0 %v1271
      %1293 = vmatprep.subr.bf16.mxu0 0
      %1294 = vmatpush1.bf16.msra.mxu0 %v1272
      %1295 = vmatprep.subr.bf16.mxu0 0
      %1296 = vmatpush1.bf16.msra.mxu0 %v1273
      %1297 = vmatprep.subr.bf16.mxu0 0
      %1298 = vmatpush1.bf16.msra.mxu0 %v1274
      %1299 = vmatprep.subr.bf16.mxu0 0
      %1300 = vmatpush1.bf16.msra.mxu0 0
      %1301 = vmatprep.subr.bf16.mxu0 0
      %1302 = vmatpush1.bf16.msra.mxu0 0
      %1303 = vmatprep.subr.bf16.mxu0 0
      %1304 = vmatpush1.bf16.msra.mxu0 0
      %1305 = vmatprep.subr.bf16.mxu0 0
      %1306 = vmatpush1.bf16.msra.mxu0 0
      %1307 = vmatprep.subr.bf16.mxu0 0
      %1308 = vmatpush1.bf16.msra.mxu0 0
      %1309 = vmatprep.subr.bf16.mxu0 0
      %1310 = vmatpush1.bf16.msra.mxu0 0
      %1311 = vmatprep.subr.bf16.mxu0 0
      %1312 = vmatpush1.bf16.msra.mxu0 0
      %1313 = vmatprep.subr.bf16.mxu0 0
      %1314 = vmatpush1.bf16.msra.mxu0 0
      %1315 = vmatprep.mubr.bf16.mxu0 0
      %1316 = vmatmul.mubr.bf16.gmra.mrb[0].mxu0 %v354
      %v1317 = vpop.f32.mrb[0].mxu0
      %v1318 = vadd.f32 0.0, %v1317
      %v1319 = vpop.f32.mrb[0].mxu0
      %v1320 = vpop.f32.mrb[0].mxu0
      %v1321 = vpop.f32.mrb[0].mxu0
      %1322 = vdwg.mxu0
      %v1323 = vmul.f32 %v1318, 0.35355338
      %s1324 = scalar_lea.vmem %s3, 128
      %v1325 = vld [vmem:[%s1324] sm:$0xf]
      %v1326 = vld [vmem:[%s1324 + $0x4] sm:$0xf]
      %v1327 = vld [vmem:[%s1324 + $0x8] sm:$0xf]
      %v1328 = vld [vmem:[%s1324 + $0xc] sm:$0xf]
      %v1329 = vld [vmem:[%s1324 + $0x10] sm:$0xf]
      %v1330 = vld [vmem:[%s1324 + $0x14] sm:$0xf]
      %v1331 = vld [vmem:[%s1324 + $0x18] sm:$0xf]
      %v1332 = vld [vmem:[%s1324 + $0x1c] sm:$0xf]
      %v1333 = vld [vmem:[%s1324 + $0x20] sm:$0xf]
      %v1334 = vld [vmem:[%s1324 + $0x24] sm:$0xf]
      %v1335 = vld [vmem:[%s1324 + $0x28] sm:$0xf]
      %v1336 = vld [vmem:[%s1324 + $0x2c] sm:$0xf]
      %v1337 = vld [vmem:[%s1324 + $0x30] sm:$0xf]
      %v1338 = vld [vmem:[%s1324 + $0x34] sm:$0xf]
      %v1339 = vld [vmem:[%s1324 + $0x38] sm:$0xf]
      %v1340 = vld [vmem:[%s1324 + $0x3c] sm:$0xf]
      %v1357 = vunpack.c.l.b16 %v1325
      %v1358 = vunpack.c.l.b16 %v1326
      %v1359 = vunpack.c.l.b16 %v1327
      %v1360 = vunpack.c.l.b16 %v1328
      %v1361 = vunpack.c.l.b16 %v1329
      %v1362 = vunpack.c.l.b16 %v1330
      %v1363 = vunpack.c.l.b16 %v1331
      %v1364 = vunpack.c.l.b16 %v1332
      %v1365 = vunpack.c.l.b16 %v1333
      %v1366 = vunpack.c.l.b16 %v1334
      %v1367 = vunpack.c.l.b16 %v1335
      %v1368 = vunpack.c.l.b16 %v1336
      %v1369 = vunpack.c.l.b16 %v1337
      %v1370 = vunpack.c.l.b16 %v1338
      %v1371 = vunpack.c.l.b16 %v1339
      %v1372 = vunpack.c.l.b16 %v1340
      %v1373 = vpack.c.b16 %v1358, %v1357
      %v1374 = vpack.c.b16 %v1360, %v1359
      %v1375 = vpack.c.b16 %v1362, %v1361
      %v1376 = vpack.c.b16 %v1364, %v1363
      %v1377 = vpack.c.b16 %v1366, %v1365
      %v1378 = vpack.c.b16 %v1368, %v1367
      %v1379 = vpack.c.b16 %v1370, %v1369
      %v1380 = vpack.c.b16 %v1372, %v1371
      %1389 = vmatprep.subr.bf16.mxu0 0
      %1390 = vmatpush1.bf16.msra.mxu0 %v1373
      %1391 = vmatprep.subr.bf16.mxu0 0
      %1392 = vmatpush1.bf16.msra.mxu0 %v1374
      %1393 = vmatprep.subr.bf16.mxu0 0
      %1394 = vmatpush1.bf16.msra.mxu0 %v1375
      %1395 = vmatprep.subr.bf16.mxu0 0
      %1396 = vmatpush1.bf16.msra.mxu0 %v1376
      %1397 = vmatprep.subr.bf16.mxu0 0
      %1398 = vmatpush1.bf16.msra.mxu0 %v1377
      %1399 = vmatprep.subr.bf16.mxu0 0
      %1400 = vmatpush1.bf16.msra.mxu0 %v1378
      %1401 = vmatprep.subr.bf16.mxu0 0
      %1402 = vmatpush1.bf16.msra.mxu0 %v1379
      %1403 = vmatprep.subr.bf16.mxu0 0
      %1404 = vmatpush1.bf16.msra.mxu0 %v1380
      %1405 = vmatprep.subr.bf16.mxu0 0
      %1406 = vmatpush1.bf16.msra.mxu0 0
      %1407 = vmatprep.subr.bf16.mxu0 0
      %1408 = vmatpush1.bf16.msra.mxu0 0
      %1409 = vmatprep.subr.bf16.mxu0 0
      %1410 = vmatpush1.bf16.msra.mxu0 0
      %1411 = vmatprep.subr.bf16.mxu0 0
      %1412 = vmatpush1.bf16.msra.mxu0 0
      %1413 = vmatprep.subr.bf16.mxu0 0
      %1414 = vmatpush1.bf16.msra.mxu0 0
      %1415 = vmatprep.subr.bf16.mxu0 0
      %1416 = vmatpush1.bf16.msra.mxu0 0
      %1417 = vmatprep.subr.bf16.mxu0 0
      %1418 = vmatpush1.bf16.msra.mxu0 0
      %1419 = vmatprep.subr.bf16.mxu0 0
      %1420 = vmatpush1.bf16.msra.mxu0 0
      %1421 = vmatprep.mubr.bf16.mxu0 0
      %1422 = vmatmul.mubr.bf16.gmra.mrb[0].mxu0 %v357
      %v1423 = vpop.f32.mrb[0].mxu0
      %v1424 = vadd.f32 0.0, %v1423
      %v1425 = vpop.f32.mrb[0].mxu0
      %v1426 = vpop.f32.mrb[0].mxu0
      %v1427 = vadd.f32 0.0, %v1426
      %v1428 = vpop.f32.mrb[0].mxu0
      %1429 = vdwg.mxu0
      %s1430 = scalar_lea.vmem %s4, 128
      %v1431 = vld [vmem:[%s1430] sm:$0xf]
      %v1432 = vld [vmem:[%s1430 + $0x4] sm:$0xf]
      %v1433 = vld [vmem:[%s1430 + $0x8] sm:$0xf]
      %v1434 = vld [vmem:[%s1430 + $0xc] sm:$0xf]
      %v1435 = vld [vmem:[%s1430 + $0x10] sm:$0xf]
      %v1436 = vld [vmem:[%s1430 + $0x14] sm:$0xf]
      %v1437 = vld [vmem:[%s1430 + $0x18] sm:$0xf]
      %v1438 = vld [vmem:[%s1430 + $0x1c] sm:$0xf]
      %v1439 = vld [vmem:[%s1430 + $0x20] sm:$0xf]
      %v1440 = vld [vmem:[%s1430 + $0x24] sm:$0xf]
      %v1441 = vld [vmem:[%s1430 + $0x28] sm:$0xf]
      %v1442 = vld [vmem:[%s1430 + $0x2c] sm:$0xf]
      %v1443 = vld [vmem:[%s1430 + $0x30] sm:$0xf]
      %v1444 = vld [vmem:[%s1430 + $0x34] sm:$0xf]
      %v1445 = vld [vmem:[%s1430 + $0x38] sm:$0xf]
      %v1446 = vld [vmem:[%s1430 + $0x3c] sm:$0xf]
      %v1463 = vunpack.c.l.b16 %v1431
      %v1464 = vunpack.c.l.b16 %v1432
      %v1465 = vunpack.c.l.b16 %v1433
      %v1466 = vunpack.c.l.b16 %v1434
      %v1467 = vunpack.c.l.b16 %v1435
      %v1468 = vunpack.c.l.b16 %v1436
      %v1469 = vunpack.c.l.b16 %v1437
      %v1470 = vunpack.c.l.b16 %v1438
      %v1471 = vunpack.c.l.b16 %v1439
      %v1472 = vunpack.c.l.b16 %v1440
      %v1473 = vunpack.c.l.b16 %v1441
      %v1474 = vunpack.c.l.b16 %v1442
      %v1475 = vunpack.c.l.b16 %v1443
      %v1476 = vunpack.c.l.b16 %v1444
      %v1477 = vunpack.c.l.b16 %v1445
      %v1478 = vunpack.c.l.b16 %v1446
      %v1479 = vpack.c.b16 %v1464, %v1463
      %v1480 = vpack.c.b16 %v1466, %v1465
      %v1481 = vpack.c.b16 %v1468, %v1467
      %v1482 = vpack.c.b16 %v1470, %v1469
      %v1483 = vpack.c.b16 %v1472, %v1471
      %v1484 = vpack.c.b16 %v1474, %v1473
      %v1485 = vpack.c.b16 %v1476, %v1475
      %v1486 = vpack.c.b16 %v1478, %v1477
      %1495 = vmatprep.subr.bf16.mxu0 0
      %1496 = vmatpush1.bf16.msra.mxu0 %v1479
      %1497 = vmatprep.subr.bf16.mxu0 0
      %1498 = vmatpush1.bf16.msra.mxu0 %v1480
      %1499 = vmatprep.subr.bf16.mxu0 0
      %1500 = vmatpush1.bf16.msra.mxu0 %v1481
      %1501 = vmatprep.subr.bf16.mxu0 0
      %1502 = vmatpush1.bf16.msra.mxu0 %v1482
      %1503 = vmatprep.subr.bf16.mxu0 0
      %1504 = vmatpush1.bf16.msra.mxu0 %v1483
      %1505 = vmatprep.subr.bf16.mxu0 0
      %1506 = vmatpush1.bf16.msra.mxu0 %v1484
      %1507 = vmatprep.subr.bf16.mxu0 0
      %1508 = vmatpush1.bf16.msra.mxu0 %v1485
      %1509 = vmatprep.subr.bf16.mxu0 0
      %1510 = vmatpush1.bf16.msra.mxu0 %v1486
      %1511 = vmatprep.subr.bf16.mxu0 0
      %1512 = vmatpush1.bf16.msra.mxu0 0
      %1513 = vmatprep.subr.bf16.mxu0 0
      %1514 = vmatpush1.bf16.msra.mxu0 0
      %1515 = vmatprep.subr.bf16.mxu0 0
      %1516 = vmatpush1.bf16.msra.mxu0 0
      %1517 = vmatprep.subr.bf16.mxu0 0
      %1518 = vmatpush1.bf16.msra.mxu0 0
      %1519 = vmatprep.subr.bf16.mxu0 0
      %1520 = vmatpush1.bf16.msra.mxu0 0
      %1521 = vmatprep.subr.bf16.mxu0 0
      %1522 = vmatpush1.bf16.msra.mxu0 0
      %1523 = vmatprep.subr.bf16.mxu0 0
      %1524 = vmatpush1.bf16.msra.mxu0 0
      %1525 = vmatprep.subr.bf16.mxu0 0
      %1526 = vmatpush1.bf16.msra.mxu0 0
      %1527 = vmatprep.mubr.bf16.mxu0 0
      %1528 = vmatmul.mubr.bf16.gmra.mrb[0].mxu0 %v357
      %v1529 = vpop.f32.mrb[0].mxu0
      %v1530 = vadd.f32 0.0, %v1529
      %v1531 = vpop.f32.mrb[0].mxu0
      %v1532 = vpop.f32.mrb[0].mxu0
      %v1533 = vadd.f32 0.0, %v1532
      %v1534 = vpop.f32.mrb[0].mxu0
      %1535 = vdwg.mxu0
      %v1536 = vpack.c.bf16 %v1323, %v1323
      %v1537 = vpack.c.bf16 %v1427, %v1424
      %v1539 = vsel %vm675, %v1536, 0
      %v1542 = vsel %vm675, %v1537, 0
      %1544 = vmatprep.subr.bf16.mxu0 0
      %1545 = vmatpush1.bf16.xpose.msra.mxu0 %v1542
      %1546 = vmatprep.subr.bf16.mxu0 0
      %1547 = vmatpush1.bf16.xpose.msra.mxu0 0
      %1548 = vmatprep.subr.bf16.mxu0 0
      %1549 = vmatpush1.bf16.xpose.msra.mxu0 0
      %1550 = vmatprep.subr.bf16.mxu0 0
      %1551 = vmatpush1.bf16.xpose.msra.mxu0 0
      %1552 = vmatprep.subr.bf16.mxu0 0
      %1553 = vmatpush1.bf16.xpose.msra.mxu0 0
      %1554 = vmatprep.subr.bf16.mxu0 0
      %1555 = vmatpush1.bf16.xpose.msra.mxu0 0
      %1556 = vmatprep.subr.bf16.mxu0 0
      %1557 = vmatpush1.bf16.xpose.msra.mxu0 0
      %1558 = vmatprep.subr.bf16.mxu0 0
      %1559 = vmatpush1.bf16.xpose.msra.mxu0 0
      %1560 = vmatprep.subr.bf16.mxu0 0
      %1561 = vmatpush1.bf16.xpose.msra.mxu0 0
      %1562 = vmatprep.subr.bf16.mxu0 0
      %1563 = vmatpush1.bf16.xpose.msra.mxu0 0
      %1564 = vmatprep.subr.bf16.mxu0 0
      %1565 = vmatpush1.bf16.xpose.msra.mxu0 0
      %1566 = vmatprep.subr.bf16.mxu0 0
      %1567 = vmatpush1.bf16.xpose.msra.mxu0 0
      %1568 = vmatprep.subr.bf16.mxu0 0
      %1569 = vmatpush1.bf16.xpose.msra.mxu0 0
      %1570 = vmatprep.subr.bf16.mxu0 0
      %1571 = vmatpush1.bf16.xpose.msra.mxu0 0
      %1572 = vmatprep.subr.bf16.mxu0 0
      %1573 = vmatpush1.bf16.xpose.msra.mxu0 0
      %1574 = vmatprep.subr.bf16.mxu0 0
      %1575 = vmatpush1.bf16.xpose.msra.mxu0 0
      %1576 = vmatprep.mubr.bf16.mxu0 0
      %1577 = vmatmul.mubr.bf16.gmra.mrb[0].mxu0 %v1539
      %v1578 = vpop.f32.mrb[0].mxu0
      %v1579 = vadd.f32 0.0, %v1578
      %v1580 = vpop.f32.mrb[0].mxu0
      %v1581 = vpop.f32.mrb[0].mxu0
      %v1582 = vpop.f32.mrb[0].mxu0
      %1583 = vdwg.mxu0
      %v1584 = vsel %vm722, %v1579, -inf
      %1585 = vmax.xlane.f32.xlu0 %v1584
      %v1586 = vpop.xlane.xlu0 %1585
      %v1587 = vsub.f32 %v1579, %v1586
      %v1588 = vmul.f32 %v1587, 1.442695
      %v1589 = vpow.pop %v1588
      %v1590 = vsel %vm722, %v1589, 0.0
      %1591 = vadd.xlane.f32.xlu0 %v1590
      %v1592 = vpop.xlane.xlu0 %1591
      %v1593 = vrcp.pop %v1592
      %v1594 = vmul.f32 %v1589, %v1593
      %v1595 = vpack.c.bf16 %v1594, %v1594
      %v1596 = vpack.c.bf16 %v1533, %v1530
      %v1598 = vsel %vm722, %v1595, 0
      %v1601 = vand.u32 %v1596, %v742
      %1603 = vmatprep.subr.bf16.mxu0 0
      %1604 = vmatpush1.bf16.msra.mxu0 %v1601
      %1605 = vmatprep.subr.bf16.mxu0 0
      %1606 = vmatpush1.bf16.msra.mxu0 0
      %1607 = vmatprep.subr.bf16.mxu0 0
      %1608 = vmatpush1.bf16.msra.mxu0 0
      %1609 = vmatprep.subr.bf16.mxu0 0
      %1610 = vmatpush1.bf16.msra.mxu0 0
      %1611 = vmatprep.subr.bf16.mxu0 0
      %1612 = vmatpush1.bf16.msra.mxu0 0
      %1613 = vmatprep.subr.bf16.mxu0 0
      %1614 = vmatpush1.bf16.msra.mxu0 0
      %1615 = vmatprep.subr.bf16.mxu0 0
      %1616 = vmatpush1.bf16.msra.mxu0 0
      %1617 = vmatprep.subr.bf16.mxu0 0
      %1618 = vmatpush1.bf16.msra.mxu0 0
      %1619 = vmatprep.subr.bf16.mxu0 0
      %1620 = vmatpush1.bf16.msra.mxu0 0
      %1621 = vmatprep.subr.bf16.mxu0 0
      %1622 = vmatpush1.bf16.msra.mxu0 0
      %1623 = vmatprep.subr.bf16.mxu0 0
      %1624 = vmatpush1.bf16.msra.mxu0 0
      %1625 = vmatprep.subr.bf16.mxu0 0
      %1626 = vmatpush1.bf16.msra.mxu0 0
      %1627 = vmatprep.subr.bf16.mxu0 0
      %1628 = vmatpush1.bf16.msra.mxu0 0
      %1629 = vmatprep.subr.bf16.mxu0 0
      %1630 = vmatpush1.bf16.msra.mxu0 0
      %1631 = vmatprep.subr.bf16.mxu0 0
      %1632 = vmatpush1.bf16.msra.mxu0 0
      %1633 = vmatprep.subr.bf16.mxu0 0
      %1634 = vmatpush1.bf16.msra.mxu0 0
      %1635 = vmatprep.mubr.bf16.mxu0 0
      %1636 = vmatmul.mubr.bf16.gmra.mrb[0].mxu0 %v1598
      %v1637 = vpop.f32.mrb[0].mxu0
      %v1638 = vadd.f32 0.0, %v1637
      %v1639 = vpop.f32.mrb[0].mxu0
      %v1640 = vpop.f32.mrb[0].mxu0
      %v1641 = vpop.f32.mrb[0].mxu0
      %1642 = vdwg.mxu0
      %1644 = vrot.lane.b32.xlu0 %v1638, 16
      %v1645 = vpop.permute.xlu0 %1644
      %vm1647 = vcmask 195712
      %1648 = vst.msk [vmem:[#allocation2] sm:$0xff] %vm1647, %v1645
      %s1649 = scalar_lea.vmem %s2, 192
      %v1650 = vld [vmem:[%s1649] sm:$0xf]
      %v1651 = vld [vmem:[%s1649 + $0x4] sm:$0xf]
      %v1652 = vld [vmem:[%s1649 + $0x8] sm:$0xf]
      %v1653 = vld [vmem:[%s1649 + $0xc] sm:$0xf]
      %v1654 = vld [vmem:[%s1649 + $0x10] sm:$0xf]
      %v1655 = vld [vmem:[%s1649 + $0x14] sm:$0xf]
      %v1656 = vld [vmem:[%s1649 + $0x18] sm:$0xf]
      %v1657 = vld [vmem:[%s1649 + $0x1c] sm:$0xf]
      %v1658 = vld [vmem:[%s1649 + $0x20] sm:$0xf]
      %v1659 = vld [vmem:[%s1649 + $0x24] sm:$0xf]
      %v1660 = vld [vmem:[%s1649 + $0x28] sm:$0xf]
      %v1661 = vld [vmem:[%s1649 + $0x2c] sm:$0xf]
      %v1662 = vld [vmem:[%s1649 + $0x30] sm:$0xf]
      %v1663 = vld [vmem:[%s1649 + $0x34] sm:$0xf]
      %v1664 = vld [vmem:[%s1649 + $0x38] sm:$0xf]
      %v1665 = vld [vmem:[%s1649 + $0x3c] sm:$0xf]
      %v1682 = vunpack.c.l.b16 %v1650
      %v1683 = vunpack.c.l.b16 %v1651
      %v1684 = vunpack.c.l.b16 %v1652
      %v1685 = vunpack.c.l.b16 %v1653
      %v1686 = vunpack.c.l.b16 %v1654
      %v1687 = vunpack.c.l.b16 %v1655
      %v1688 = vunpack.c.l.b16 %v1656
      %v1689 = vunpack.c.l.b16 %v1657
      %v1690 = vunpack.c.l.b16 %v1658
      %v1691 = vunpack.c.l.b16 %v1659
      %v1692 = vunpack.c.l.b16 %v1660
      %v1693 = vunpack.c.l.b16 %v1661
      %v1694 = vunpack.c.l.b16 %v1662
      %v1695 = vunpack.c.l.b16 %v1663
      %v1696 = vunpack.c.l.b16 %v1664
      %v1697 = vunpack.c.l.b16 %v1665
      %v1698 = vpack.c.b16 %v1683, %v1682
      %v1699 = vpack.c.b16 %v1685, %v1684
      %v1700 = vpack.c.b16 %v1687, %v1686
      %v1701 = vpack.c.b16 %v1689, %v1688
      %v1702 = vpack.c.b16 %v1691, %v1690
      %v1703 = vpack.c.b16 %v1693, %v1692
      %v1704 = vpack.c.b16 %v1695, %v1694
      %v1705 = vpack.c.b16 %v1697, %v1696
      %1714 = vmatprep.subr.bf16.mxu0 0
      %1715 = vmatpush1.bf16.msra.mxu0 %v1698
      %1716 = vmatprep.subr.bf16.mxu0 0
      %1717 = vmatpush1.bf16.msra.mxu0 %v1699
      %1718 = vmatprep.subr.bf16.mxu0 0
      %1719 = vmatpush1.bf16.msra.mxu0 %v1700
      %1720 = vmatprep.subr.bf16.mxu0 0
      %1721 = vmatpush1.bf16.msra.mxu0 %v1701
      %1722 = vmatprep.subr.bf16.mxu0 0
      %1723 = vmatpush1.bf16.msra.mxu0 %v1702
      %1724 = vmatprep.subr.bf16.mxu0 0
      %1725 = vmatpush1.bf16.msra.mxu0 %v1703
      %1726 = vmatprep.subr.bf16.mxu0 0
      %1727 = vmatpush1.bf16.msra.mxu0 %v1704
      %1728 = vmatprep.subr.bf16.mxu0 0
      %1729 = vmatpush1.bf16.msra.mxu0 %v1705
      %1730 = vmatprep.subr.bf16.mxu0 0
      %1731 = vmatpush1.bf16.msra.mxu0 0
      %1732 = vmatprep.subr.bf16.mxu0 0
      %1733 = vmatpush1.bf16.msra.mxu0 0
      %1734 = vmatprep.subr.bf16.mxu0 0
      %1735 = vmatpush1.bf16.msra.mxu0 0
      %1736 = vmatprep.subr.bf16.mxu0 0
      %1737 = vmatpush1.bf16.msra.mxu0 0
      %1738 = vmatprep.subr.bf16.mxu0 0
      %1739 = vmatpush1.bf16.msra.mxu0 0
      %1740 = vmatprep.subr.bf16.mxu0 0
      %1741 = vmatpush1.bf16.msra.mxu0 0
      %1742 = vmatprep.subr.bf16.mxu0 0
      %1743 = vmatpush1.bf16.msra.mxu0 0
      %1744 = vmatprep.subr.bf16.mxu0 0
      %1745 = vmatpush1.bf16.msra.mxu0 0
      %1746 = vmatprep.mubr.bf16.mxu0 0
      %1747 = vmatmul.mubr.bf16.gmra.mrb[0].mxu0 %v354
      %v1748 = vpop.f32.mrb[0].mxu0
      %v1749 = vadd.f32 0.0, %v1748
      %v1750 = vpop.f32.mrb[0].mxu0
      %v1751 = vpop.f32.mrb[0].mxu0
      %v1752 = vpop.f32.mrb[0].mxu0
      %1753 = vdwg.mxu0
      %v1754 = vmul.f32 %v1749, 0.35355338
      %s1755 = scalar_lea.vmem %s3, 192
      %v1756 = vld [vmem:[%s1755] sm:$0xf]
      %v1757 = vld [vmem:[%s1755 + $0x4] sm:$0xf]
      %v1758 = vld [vmem:[%s1755 + $0x8] sm:$0xf]
      %v1759 = vld [vmem:[%s1755 + $0xc] sm:$0xf]
      %v1760 = vld [vmem:[%s1755 + $0x10] sm:$0xf]
      %v1761 = vld [vmem:[%s1755 + $0x14] sm:$0xf]
      %v1762 = vld [vmem:[%s1755 + $0x18] sm:$0xf]
      %v1763 = vld [vmem:[%s1755 + $0x1c] sm:$0xf]
      %v1764 = vld [vmem:[%s1755 + $0x20] sm:$0xf]
      %v1765 = vld [vmem:[%s1755 + $0x24] sm:$0xf]
      %v1766 = vld [vmem:[%s1755 + $0x28] sm:$0xf]
      %v1767 = vld [vmem:[%s1755 + $0x2c] sm:$0xf]
      %v1768 = vld [vmem:[%s1755 + $0x30] sm:$0xf]
      %v1769 = vld [vmem:[%s1755 + $0x34] sm:$0xf]
      %v1770 = vld [vmem:[%s1755 + $0x38] sm:$0xf]
      %v1771 = vld [vmem:[%s1755 + $0x3c] sm:$0xf]
      %v1788 = vunpack.c.l.b16 %v1756
      %v1789 = vunpack.c.l.b16 %v1757
      %v1790 = vunpack.c.l.b16 %v1758
      %v1791 = vunpack.c.l.b16 %v1759
      %v1792 = vunpack.c.l.b16 %v1760
      %v1793 = vunpack.c.l.b16 %v1761
      %v1794 = vunpack.c.l.b16 %v1762
      %v1795 = vunpack.c.l.b16 %v1763
      %v1796 = vunpack.c.l.b16 %v1764
      %v1797 = vunpack.c.l.b16 %v1765
      %v1798 = vunpack.c.l.b16 %v1766
      %v1799 = vunpack.c.l.b16 %v1767
      %v1800 = vunpack.c.l.b16 %v1768
      %v1801 = vunpack.c.l.b16 %v1769
      %v1802 = vunpack.c.l.b16 %v1770
      %v1803 = vunpack.c.l.b16 %v1771
      %v1804 = vpack.c.b16 %v1789, %v1788
      %v1805 = vpack.c.b16 %v1791, %v1790
      %v1806 = vpack.c.b16 %v1793, %v1792
      %v1807 = vpack.c.b16 %v1795, %v1794
      %v1808 = vpack.c.b16 %v1797, %v1796
      %v1809 = vpack.c.b16 %v1799, %v1798
      %v1810 = vpack.c.b16 %v1801, %v1800
      %v1811 = vpack.c.b16 %v1803, %v1802
      %1820 = vmatprep.subr.bf16.mxu0 0
      %1821 = vmatpush1.bf16.msra.mxu0 %v1804
      %1822 = vmatprep.subr.bf16.mxu0 0
      %1823 = vmatpush1.bf16.msra.mxu0 %v1805
      %1824 = vmatprep.subr.bf16.mxu0 0
      %1825 = vmatpush1.bf16.msra.mxu0 %v1806
      %1826 = vmatprep.subr.bf16.mxu0 0
      %1827 = vmatpush1.bf16.msra.mxu0 %v1807
      %1828 = vmatprep.subr.bf16.mxu0 0
      %1829 = vmatpush1.bf16.msra.mxu0 %v1808
      %1830 = vmatprep.subr.bf16.mxu0 0
      %1831 = vmatpush1.bf16.msra.mxu0 %v1809
      %1832 = vmatprep.subr.bf16.mxu0 0
      %1833 = vmatpush1.bf16.msra.mxu0 %v1810
      %1834 = vmatprep.subr.bf16.mxu0 0
      %1835 = vmatpush1.bf16.msra.mxu0 %v1811
      %1836 = vmatprep.subr.bf16.mxu0 0
      %1837 = vmatpush1.bf16.msra.mxu0 0
      %1838 = vmatprep.subr.bf16.mxu0 0
      %1839 = vmatpush1.bf16.msra.mxu0 0
      %1840 = vmatprep.subr.bf16.mxu0 0
      %1841 = vmatpush1.bf16.msra.mxu0 0
      %1842 = vmatprep.subr.bf16.mxu0 0
      %1843 = vmatpush1.bf16.msra.mxu0 0
      %1844 = vmatprep.subr.bf16.mxu0 0
      %1845 = vmatpush1.bf16.msra.mxu0 0
      %1846 = vmatprep.subr.bf16.mxu0 0
      %1847 = vmatpush1.bf16.msra.mxu0 0
      %1848 = vmatprep.subr.bf16.mxu0 0
      %1849 = vmatpush1.bf16.msra.mxu0 0
      %1850 = vmatprep.subr.bf16.mxu0 0
      %1851 = vmatpush1.bf16.msra.mxu0 0
      %1852 = vmatprep.mubr.bf16.mxu0 0
      %1853 = vmatmul.mubr.bf16.gmra.mrb[0].mxu0 %v357
      %v1854 = vpop.f32.mrb[0].mxu0
      %v1855 = vadd.f32 0.0, %v1854
      %v1856 = vpop.f32.mrb[0].mxu0
      %v1857 = vpop.f32.mrb[0].mxu0
      %v1858 = vadd.f32 0.0, %v1857
      %v1859 = vpop.f32.mrb[0].mxu0
      %1860 = vdwg.mxu0
      %s1861 = scalar_lea.vmem %s4, 192
      %v1862 = vld [vmem:[%s1861] sm:$0xf]
      %v1863 = vld [vmem:[%s1861 + $0x4] sm:$0xf]
      %v1864 = vld [vmem:[%s1861 + $0x8] sm:$0xf]
      %v1865 = vld [vmem:[%s1861 + $0xc] sm:$0xf]
      %v1866 = vld [vmem:[%s1861 + $0x10] sm:$0xf]
      %v1867 = vld [vmem:[%s1861 + $0x14] sm:$0xf]
      %v1868 = vld [vmem:[%s1861 + $0x18] sm:$0xf]
      %v1869 = vld [vmem:[%s1861 + $0x1c] sm:$0xf]
      %v1870 = vld [vmem:[%s1861 + $0x20] sm:$0xf]
      %v1871 = vld [vmem:[%s1861 + $0x24] sm:$0xf]
      %v1872 = vld [vmem:[%s1861 + $0x28] sm:$0xf]
      %v1873 = vld [vmem:[%s1861 + $0x2c] sm:$0xf]
      %v1874 = vld [vmem:[%s1861 + $0x30] sm:$0xf]
      %v1875 = vld [vmem:[%s1861 + $0x34] sm:$0xf]
      %v1876 = vld [vmem:[%s1861 + $0x38] sm:$0xf]
      %v1877 = vld [vmem:[%s1861 + $0x3c] sm:$0xf]
      %v1894 = vunpack.c.l.b16 %v1862
      %v1895 = vunpack.c.l.b16 %v1863
      %v1896 = vunpack.c.l.b16 %v1864
      %v1897 = vunpack.c.l.b16 %v1865
      %v1898 = vunpack.c.l.b16 %v1866
      %v1899 = vunpack.c.l.b16 %v1867
      %v1900 = vunpack.c.l.b16 %v1868
      %v1901 = vunpack.c.l.b16 %v1869
      %v1902 = vunpack.c.l.b16 %v1870
      %v1903 = vunpack.c.l.b16 %v1871
      %v1904 = vunpack.c.l.b16 %v1872
      %v1905 = vunpack.c.l.b16 %v1873
      %v1906 = vunpack.c.l.b16 %v1874
      %v1907 = vunpack.c.l.b16 %v1875
      %v1908 = vunpack.c.l.b16 %v1876
      %v1909 = vunpack.c.l.b16 %v1877
      %v1910 = vpack.c.b16 %v1895, %v1894
      %v1911 = vpack.c.b16 %v1897, %v1896
      %v1912 = vpack.c.b16 %v1899, %v1898
      %v1913 = vpack.c.b16 %v1901, %v1900
      %v1914 = vpack.c.b16 %v1903, %v1902
      %v1915 = vpack.c.b16 %v1905, %v1904
      %v1916 = vpack.c.b16 %v1907, %v1906
      %v1917 = vpack.c.b16 %v1909, %v1908
      %1926 = vmatprep.subr.bf16.mxu0 0
      %1927 = vmatpush1.bf16.msra.mxu0 %v1910
      %1928 = vmatprep.subr.bf16.mxu0 0
      %1929 = vmatpush1.bf16.msra.mxu0 %v1911
      %1930 = vmatprep.subr.bf16.mxu0 0
      %1931 = vmatpush1.bf16.msra.mxu0 %v1912
      %1932 = vmatprep.subr.bf16.mxu0 0
      %1933 = vmatpush1.bf16.msra.mxu0 %v1913
      %1934 = vmatprep.subr.bf16.mxu0 0
      %1935 = vmatpush1.bf16.msra.mxu0 %v1914
      %1936 = vmatprep.subr.bf16.mxu0 0
      %1937 = vmatpush1.bf16.msra.mxu0 %v1915
      %1938 = vmatprep.subr.bf16.mxu0 0
      %1939 = vmatpush1.bf16.msra.mxu0 %v1916
      %1940 = vmatprep.subr.bf16.mxu0 0
      %1941 = vmatpush1.bf16.msra.mxu0 %v1917
      %1942 = vmatprep.subr.bf16.mxu0 0
      %1943 = vmatpush1.bf16.msra.mxu0 0
      %1944 = vmatprep.subr.bf16.mxu0 0
      %1945 = vmatpush1.bf16.msra.mxu0 0
      %1946 = vmatprep.subr.bf16.mxu0 0
      %1947 = vmatpush1.bf16.msra.mxu0 0
      %1948 = vmatprep.subr.bf16.mxu0 0
      %1949 = vmatpush1.bf16.msra.mxu0 0
      %1950 = vmatprep.subr.bf16.mxu0 0
      %1951 = vmatpush1.bf16.msra.mxu0 0
      %1952 = vmatprep.subr.bf16.mxu0 0
      %1953 = vmatpush1.bf16.msra.mxu0 0
      %1954 = vmatprep.subr.bf16.mxu0 0
      %1955 = vmatpush1.bf16.msra.mxu0 0
      %1956 = vmatprep.subr.bf16.mxu0 0
      %1957 = vmatpush1.bf16.msra.mxu0 0
      %1958 = vmatprep.mubr.bf16.mxu0 0
      %1959 = vmatmul.mubr.bf16.gmra.mrb[0].mxu0 %v357
      %v1960 = vpop.f32.mrb[0].mxu0
      %v1961 = vadd.f32 0.0, %v1960
      %v1962 = vpop.f32.mrb[0].mxu0
      %v1963 = vpop.f32.mrb[0].mxu0
      %v1964 = vadd.f32 0.0, %v1963
      %v1965 = vpop.f32.mrb[0].mxu0
      %1966 = vdwg.mxu0
      %v1967 = vpack.c.bf16 %v1754, %v1754
      %v1968 = vpack.c.bf16 %v1858, %v1855
      %v1970 = vsel %vm675, %v1967, 0
      %v1973 = vsel %vm675, %v1968, 0
      %1975 = vmatprep.subr.bf16.mxu0 0
      %1976 = vmatpush1.bf16.xpose.msra.mxu0 %v1973
      %1977 = vmatprep.subr.bf16.mxu0 0
      %1978 = vmatpush1.bf16.xpose.msra.mxu0 0
      %1979 = vmatprep.subr.bf16.mxu0 0
      %1980 = vmatpush1.bf16.xpose.msra.mxu0 0
      %1981 = vmatprep.subr.bf16.mxu0 0
      %1982 = vmatpush1.bf16.xpose.msra.mxu0 0
      %1983 = vmatprep.subr.bf16.mxu0 0
      %1984 = vmatpush1.bf16.xpose.msra.mxu0 0
      %1985 = vmatprep.subr.bf16.mxu0 0
      %1986 = vmatpush1.bf16.xpose.msra.mxu0 0
      %1987 = vmatprep.subr.bf16.mxu0 0
      %1988 = vmatpush1.bf16.xpose.msra.mxu0 0
      %1989 = vmatprep.subr.bf16.mxu0 0
      %1990 = vmatpush1.bf16.xpose.msra.mxu0 0
      %1991 = vmatprep.subr.bf16.mxu0 0
      %1992 = vmatpush1.bf16.xpose.msra.mxu0 0
      %1993 = vmatprep.subr.bf16.mxu0 0
      %1994 = vmatpush1.bf16.xpose.msra.mxu0 0
      %1995 = vmatprep.subr.bf16.mxu0 0
      %1996 = vmatpush1.bf16.xpose.msra.mxu0 0
      %1997 = vmatprep.subr.bf16.mxu0 0
      %1998 = vmatpush1.bf16.xpose.msra.mxu0 0
      %1999 = vmatprep.subr.bf16.mxu0 0
      %2000 = vmatpush1.bf16.xpose.msra.mxu0 0
      %2001 = vmatprep.subr.bf16.mxu0 0
      %2002 = vmatpush1.bf16.xpose.msra.mxu0 0
      %2003 = vmatprep.subr.bf16.mxu0 0
      %2004 = vmatpush1.bf16.xpose.msra.mxu0 0
      %2005 = vmatprep.subr.bf16.mxu0 0
      %2006 = vmatpush1.bf16.xpose.msra.mxu0 0
      %2007 = vmatprep.mubr.bf16.mxu0 0
      %2008 = vmatmul.mubr.bf16.gmra.mrb[0].mxu0 %v1970
      %v2009 = vpop.f32.mrb[0].mxu0
      %v2010 = vadd.f32 0.0, %v2009
      %v2011 = vpop.f32.mrb[0].mxu0
      %v2012 = vpop.f32.mrb[0].mxu0
      %v2013 = vpop.f32.mrb[0].mxu0
      %2014 = vdwg.mxu0
      %v2015 = vsel %vm722, %v2010, -inf
      %2016 = vmax.xlane.f32.xlu0 %v2015
      %v2017 = vpop.xlane.xlu0 %2016
      %v2018 = vsub.f32 %v2010, %v2017
      %v2019 = vmul.f32 %v2018, 1.442695
      %v2020 = vpow.pop %v2019
      %v2021 = vsel %vm722, %v2020, 0.0
      %2022 = vadd.xlane.f32.xlu0 %v2021
      %v2023 = vpop.xlane.xlu0 %2022
      %v2024 = vrcp.pop %v2023
      %v2025 = vmul.f32 %v2020, %v2024
      %v2026 = vpack.c.bf16 %v2025, %v2025
      %v2027 = vpack.c.bf16 %v1964, %v1961
      %v2029 = vsel %vm722, %v2026, 0
      %v2032 = vand.u32 %v2027, %v742
      %2034 = vmatprep.subr.bf16.mxu0 0
      %2035 = vmatpush1.bf16.msra.mxu0 %v2032
      %2036 = vmatprep.subr.bf16.mxu0 0
      %2037 = vmatpush1.bf16.msra.mxu0 0
      %2038 = vmatprep.subr.bf16.mxu0 0
      %2039 = vmatpush1.bf16.msra.mxu0 0
      %2040 = vmatprep.subr.bf16.mxu0 0
      %2041 = vmatpush1.bf16.msra.mxu0 0
      %2042 = vmatprep.subr.bf16.mxu0 0
      %2043 = vmatpush1.bf16.msra.mxu0 0
      %2044 = vmatprep.subr.bf16.mxu0 0
      %2045 = vmatpush1.bf16.msra.mxu0 0
      %2046 = vmatprep.subr.bf16.mxu0 0
      %2047 = vmatpush1.bf16.msra.mxu0 0
      %2048 = vmatprep.subr.bf16.mxu0 0
      %2049 = vmatpush1.bf16.msra.mxu0 0
      %2050 = vmatprep.subr.bf16.mxu0 0
      %2051 = vmatpush1.bf16.msra.mxu0 0
      %2052 = vmatprep.subr.bf16.mxu0 0
      %2053 = vmatpush1.bf16.msra.mxu0 0
      %2054 = vmatprep.subr.bf16.mxu0 0
      %2055 = vmatpush1.bf16.msra.mxu0 0
      %2056 = vmatprep.subr.bf16.mxu0 0
      %2057 = vmatpush1.bf16.msra.mxu0 0
      %2058 = vmatprep.subr.bf16.mxu0 0
      %2059 = vmatpush1.bf16.msra.mxu0 0
      %2060 = vmatprep.subr.bf16.mxu0 0
      %2061 = vmatpush1.bf16.msra.mxu0 0
      %2062 = vmatprep.subr.bf16.mxu0 0
      %2063 = vmatpush1.bf16.msra.mxu0 0
      %2064 = vmatprep.subr.bf16.mxu0 0
      %2065 = vmatpush1.bf16.msra.mxu0 0
      %2066 = vmatprep.mubr.bf16.mxu0 0
      %2067 = vmatmul.mubr.bf16.gmra.mrb[0].mxu0 %v2029
      %v2068 = vpop.f32.mrb[0].mxu0
      %v2069 = vadd.f32 0.0, %v2068
      %v2070 = vpop.f32.mrb[0].mxu0
      %v2071 = vpop.f32.mrb[0].mxu0
      %v2072 = vpop.f32.mrb[0].mxu0
      %2073 = vdwg.mxu0
      %2075 = vrot.lane.b32.xlu0 %v2069, 24
      %v2076 = vpop.permute.xlu0 %2075
      %vm2078 = vcmask 261312
      %2079 = vst.msk [vmem:[#allocation2] sm:$0xff] %vm2078, %v2076
      %v2080 = vld [vmem:[#allocation2] sm:$0xff]
      %v2081 = vpack.c.bf16 %v2080, %v2080
      %v2082 = vld [vmem:[%s5] sm:$0xf]
      %v2083 = vld [vmem:[%s5 + $0x4] sm:$0xf]
      %v2084 = vld [vmem:[%s5 + $0x8] sm:$0xf]
      %v2085 = vld [vmem:[%s5 + $0xc] sm:$0xf]
      %v2090 = vunpack.c.l.b16 %v2082
      %v2091 = vunpack.c.l.b16 %v2083
      %v2092 = vunpack.c.l.b16 %v2084
      %v2093 = vunpack.c.l.b16 %v2085
      %v2094 = vpack.c.b16 %v2091, %v2090
      %v2095 = vpack.c.b16 %v2093, %v2092
      %vm2098 = vcmask 261120
      %v2100 = vsel %vm2098, %v2081, 0
      %2102 = vmatprep.subr.bf16.mxu0 0
      %2103 = vmatpush1.bf16.msra.mxu0 %v2094
      %2104 = vmatprep.subr.bf16.mxu0 0
      %2105 = vmatpush1.bf16.msra.mxu0 %v2095
      %2106 = vmatprep.subr.bf16.mxu0 0
      %2107 = vmatpush1.bf16.msra.mxu0 0
      %2108 = vmatprep.subr.bf16.mxu0 0
      %2109 = vmatpush1.bf16.msra.mxu0 0
      %2110 = vmatprep.subr.bf16.mxu0 0
      %2111 = vmatpush1.bf16.msra.mxu0 0
      %2112 = vmatprep.subr.bf16.mxu0 0
      %2113 = vmatpush1.bf16.msra.mxu0 0
      %2114 = vmatprep.subr.bf16.mxu0 0
      %2115 = vmatpush1.bf16.msra.mxu0 0
      %2116 = vmatprep.subr.bf16.mxu0 0
      %2117 = vmatpush1.bf16.msra.mxu0 0
      %2118 = vmatprep.subr.bf16.mxu0 0
      %2119 = vmatpush1.bf16.msra.mxu0 0
      %2120 = vmatprep.subr.bf16.mxu0 0
      %2121 = vmatpush1.bf16.msra.mxu0 0
      %2122 = vmatprep.subr.bf16.mxu0 0
      %2123 = vmatpush1.bf16.msra.mxu0 0
      %2124 = vmatprep.subr.bf16.mxu0 0
      %2125 = vmatpush1.bf16.msra.mxu0 0
      %2126 = vmatprep.subr.bf16.mxu0 0
      %2127 = vmatpush1.bf16.msra.mxu0 0
      %2128 = vmatprep.subr.bf16.mxu0 0
      %2129 = vmatpush1.bf16.msra.mxu0 0
      %2130 = vmatprep.subr.bf16.mxu0 0
      %2131 = vmatpush1.bf16.msra.mxu0 0
      %2132 = vmatprep.subr.bf16.mxu0 0
      %2133 = vmatpush1.bf16.msra.mxu0 0
      %2134 = vmatprep.mubr.bf16.mxu0 0
      %2135 = vmatmul.mubr.bf16.gmra.mrb[0].mxu0 %v2100
      %v2136 = vpop.f32.mrb[0].mxu0
      %v2137 = vadd.f32 %v353, %v2136
      %v2138 = vpop.f32.mrb[0].mxu0
      %v2139 = vpop.f32.mrb[0].mxu0
      %v2140 = vpop.f32.mrb[0].mxu0
      %2141 = vdwg.mxu0
      %v2142 = vld [vmem:[%s6] sm:$0x1]
      %v2143 = vld [vmem:[%s7] sm:$0x1]
      %2144 = vadd.xlane.f32.xlu0 %v2137
      %v2145 = vpop.xlane.xlu0 %2144
      %v2146 = vmul.f32 %v2145, 0.03125
      %v2147 = vsub.f32 %v2137, %v2146
      %v2148 = vlaneseq
      %v2149 = vand.u32 %v2148, 127
      %vm2150 = vcmp.lt.s32.totalorder %v2149, 32
      %v2151 = vsel %vm2150, 1, 0
      %vm2152 = vcmp.eq.s32.totalorder %v2151, 1
      %v2153 = vsel %vm2152, %v2147, 0.0
      %v2154 = vmul.f32 %v2153, %v2153
      %2155 = vadd.xlane.f32.xlu0 %v2154
      %v2156 = vpop.xlane.xlu0 %2155
      %v2157 = vmul.f32 %v2156, 0.03125
      %v2158 = vadd.f32 %v2157, 1e-05
      %v2159 = vrsqrt.pop %v2158
      %v2160 = vmul.f32 %v2153, %v2159
      %v2162 = vlaneseq
      %v2163 = vshrl.u32 %v2162, 7
      %v2164 = vsub.s32 0, %v2163
      %v2165 = vrot.slane %v2142, %v2164
      %v2167 = vmul.f32 %v2160, %v2165
      %v2169 = vlaneseq
      %v2170 = vshrl.u32 %v2169, 7
      %v2171 = vsub.s32 0, %v2170
      %v2172 = vrot.slane %v2143, %v2171
      %v2174 = vadd.f32 %v2167, %v2172
      %2175 = vst [vmem:[%s351] sm:$0xff] %v2174
      %p2176 = scmp.lt.s32.totalorder %s23, 1
      %s2177 = scalar_select %p2176, %s23, 1
      %p2178 = scmp.lt.s32.totalorder %s24, 0
      %s2179 = scalar_select %p2178, %s24, 0
      %s2180 = sadd.s32 %s2179, %s2177
      %s2181 = smul.addr %s2180, 8
      %s2182 = scalar_lea.vmem %s8, %s2181
      // Predicated region
      $region53: #{decoder_forward.7} parent=51 // pred_check
        %p2183 = pneg %p231
      $region54: #{decoder_forward.7} parent=51 // pred_check_branch
        %2185 = sbr.rel (%p2183) target = $region56
      $region55: #{decoder_forward.7} parent=51 // pred_region
        _
      $region56: #{decoder_forward.7} parent=51 // pred_fallthru
        _
    $region52: #{decoder_forward.7} parent=5 // pred_fallthru
      _
    %p2186 = scmp.le.s32.totalorder 2, %s14
    // Predicated region
    $region57: #{decoder_forward.7} parent=5 // pred_check
      %p2187 = pneg %p2186
    $region58: #{decoder_forward.7} parent=5 // pred_check_branch
      %2189 = sbr.rel (%p2187) target = $region60
    $region59: #{decoder_forward.7} parent=5 // pred_region
      %s2190 = ssub.s32 %s14, 2
      // Predicated region
      $region61: #{decoder_forward.7} parent=59 // pred_check
        %p2191 = pneg %p237
      $region62: #{decoder_forward.7} parent=59 // pred_check_branch
        %2193 = sbr.rel (%p2191) target = $region64
      $region63: #{decoder_forward.7} parent=59 // pred_region
        %p2194 = scmp.lt.s32.totalorder %s25, 1
        %s2195 = scalar_select %p2194, %s25, 1
        %p2196 = scmp.lt.s32.totalorder %s26, 0
        %s2197 = scalar_select %p2196, %s26, 0
        %s2198 = sadd.s32 %s2197, %s2195
        %s2199 = smul.addr %s2198, 8
        %s2200 = scalar_lea.vmem %s8, %s2199
      $region64: #{decoder_forward.7} parent=59 // pred_fallthru
        _
    $region60: #{decoder_forward.7} parent=5 // pred_fallthru
      _
  $region6: #{decoder_forward.7} parent=0 // loop_footer
    %s18 = sadd.s32 1, %s14
  $region7: #{decoder_forward.7} parent=0 // loop_footer_branch
    %13 = sbr.rel target = $region3
  $region8: #{decoder_forward.7} parent=0 // loop_exit
    _

// kernel: decoder_forward.6
$region0: #{decoder_forward.6}
  #allocation0 [shape = 'u32[]', space=smem, size = 0x4, offset = 0x4, fixed_abs, tag = 'smem constant byte address 0x4 - core index']
  #allocation1 [shape = 'u32[144,128]{1,0:T(1,128)}', space=vmem, size = 0x12000, scoped, tag = 'internal scratch']
  #allocation2 [shape = 'f32[8,32]{1,0:T(8,128)}', space=vmem, size = 0x1000, scoped, tag = 'scratch operand']
  %s0 = inlined_call_operand.vmem [shape: f32[2,8,128], index: 0, kind: input, shape index: {}, may-alias: {0,1}]
  %s1 = inlined_call_operand.vmem [shape: f32[2,8,128], index: 1, kind: input, shape index: {}, may-alias: {0,1}]
  %s2 = inlined_call_operand.vmem [shape: bf16[4,128,8], index: 2, kind: input, shape index: {}]
  %s3 = inlined_call_operand.vmem [shape: bf16[4,128,8], index: 3, kind: input, shape index: {}]
  %s4 = inlined_call_operand.vmem [shape: bf16[4,128,8], index: 4, kind: input, shape index: {}]
  %s5 = inlined_call_operand.vmem [shape: bf16[32,128], index: 5, kind: input, shape index: {}]
  %s6 = inlined_call_operand.vmem [shape: f32[1,128], index: 6, kind: input, shape index: {}]
  %s7 = inlined_call_operand.vmem [shape: f32[1,128], index: 7, kind: input, shape index: {}]
  %s8 = inlined_call_operand.vmem [shape: f32[2,8,128], index: 8, kind: output, shape index: {}]
  %s9 = sld [smem:[#allocation0]]
  $region65: #{decoder_forward.6} parent=0
    _
  %s11 = ssub.s32 1, %s9
  %s12 = scalar_select 0, %s11, %s9
  loop: start=0, step=1, limit=4
  $region2: #{decoder_forward.6} parent=0 // loop_pre_header
    _
  $region3: #{decoder_forward.6} parent=0 // loop_header
    %s14 = sphi 0, %s18
    %p15 = scmp.ge.s32.totalorder %s14, 4
    %s21 = sphi 0, %s33
    %s22 = sphi 0, %s29
    %s23 = sphi 0, %s21
    %s24 = sphi 0, %s22
    %s25 = sphi 0, %s23
    %s26 = sphi 0, %s24
    %s38 = sphi 0, %s40
    %s41 = sphi 0, %s38
    %s42 = sphi 0, %s41
    %s58 = sphi 0, %s42
    %s64 = sphi 0, %s66
    %s67 = sphi 0, %s64
    %s68 = sphi 0, %s67
    %s84 = sphi 0, %s68
    %s88 = sphi 0, %s88
    %s90 = sphi 0, %s88
    %s91 = sphi 0, %s90
    %s105 = sphi 0, %s91
    %s109 = sphi 0, %s109
    %s111 = sphi 0, %s109
    %s112 = sphi 0, %s111
    %s126 = sphi 0, %s112
    %s130 = sphi 0, %s130
    %s132 = sphi 0, %s130
    %s133 = sphi 0, %s132
    %s147 = sphi 0, %s133
    %s151 = sphi 0, %s151
    %s153 = sphi 0, %s151
    %s154 = sphi 0, %s153
    %s168 = sphi 0, %s154
    %s172 = sphi 0, %s172
    %s174 = sphi 0, %s172
    %s175 = sphi 0, %s174
    %s189 = sphi 0, %s175
    %s193 = sphi 0, %s193
    %s195 = sphi 0, %s193
    %s196 = sphi 0, %s195
    %s210 = sphi 0, %s196
    %s218 = sphi 0, %s220
    %s221 = sphi 0, %s218
    %s222 = sphi 0, %s221
    %s238 = sphi 0, %s222
  $region4: #{decoder_forward.6} parent=0 // loop_header_branch
    %17 = sbr.rel (%p15) target = $region8
  $region5: #{decoder_forward.6} parent=0 // loop_body
    %s19 = ssub.s32 %s14, 1
    %s20 = ssub.s32 %s14, 2
    %s27 = sadd.s32 1, %s22
    %p28 = scmp.ge.s32.totalorder %s27, 1
    %s29 = scalar_select %p28, 0, %s27
    %s30 = sadd.s32 1, %s21
    %s31 = scalar_select %p28, %s30, %s21
    %p32 = scmp.ge.s32.totalorder %s31, 2
    %s33 = scalar_select %p32, 0, %s31
    %s34 = ssub.s32 %s21, %s33
    %s35 = ssub.s32 %s22, %s29
    %s36 = sor.u32 %s34, %s35
    %p37 = scmp.eq.s32.totalorder %s36, 0
    %s39 = sadd.s32 %s38, 1
    %s40 = scalar_select %p37, %s38, %s39
    %p43 = pneg %p37
    %p44 = scmp.eq.s32.totalorder %s14, 1
    %p45 = por %p43, %p44
    %p46 = scmp.ne.s32.totalorder %s38, %s41
    %p47 = scmp.eq.s32.totalorder %s14, 0
    %p48 = por %p46, %p47
    %p49 = scmp.ne.s32.totalorder %s38, %s41
    %p50 = scmp.eq.s32.totalorder %s19, 1
    %p51 = por %p49, %p50
    %p52 = scmp.ne.s32.totalorder %s41, %s42
    %p53 = scmp.eq.s32.totalorder %s19, 0
    %p54 = por %p52, %p53
    %p55 = scmp.ne.s32.totalorder %s41, %s42
    %p56 = scmp.eq.s32.totalorder %s20, 1
    %p57 = por %p55, %p56
    %p59 = scmp.ne.s32.totalorder %s42, %s58
    %p60 = scmp.eq.s32.totalorder %s20, 0
    %p61 = por %p59, %p60
    %s62 = ssub.s32 %s21, %s33
    %p63 = scmp.eq.s32.totalorder %s62, 0
    %s65 = sadd.s32 %s64, 1
    %s66 = scalar_select %p63, %s64, %s65
    %p69 = pneg %p63
    %p70 = scmp.eq.s32.totalorder %s14, 1
    %p71 = por %p69, %p70
    %p72 = scmp.ne.s32.totalorder %s64, %s67
    %p73 = scmp.eq.s32.totalorder %s14, 0
    %p74 = por %p72, %p73
    %p75 = scmp.ne.s32.totalorder %s64, %s67
    %p76 = scmp.eq.s32.totalorder %s19, 1
    %p77 = por %p75, %p76
    %p78 = scmp.ne.s32.totalorder %s67, %s68
    %p79 = scmp.eq.s32.totalorder %s19, 0
    %p80 = por %p78, %p79
    %p81 = scmp.ne.s32.totalorder %s67, %s68
    %p82 = scmp.eq.s32.totalorder %s20, 1
    %p83 = por %p81, %p82
    %p85 = scmp.ne.s32.totalorder %s68, %s84
    %p86 = scmp.eq.s32.totalorder %s20, 0
    %p87 = por %p85, %p86
    %s89 = sadd.s32 %s88, 1
    %p92 = scmp.eq.s32.totalorder %s14, 1
    %p93 = scmp.ne.s32.totalorder %s88, %s90
    %p94 = scmp.eq.s32.totalorder %s14, 0
    %p95 = por %p93, %p94
    %p96 = scmp.ne.s32.totalorder %s88, %s90
    %p97 = scmp.eq.s32.totalorder %s19, 1
    %p98 = por %p96, %p97
    %p99 = scmp.ne.s32.totalorder %s90, %s91
    %p100 = scmp.eq.s32.totalorder %s19, 0
    %p101 = por %p99, %p100
    %p102 = scmp.ne.s32.totalorder %s90, %s91
    %p103 = scmp.eq.s32.totalorder %s20, 1
    %p104 = por %p102, %p103
    %p106 = scmp.ne.s32.totalorder %s91, %s105
    %p107 = scmp.eq.s32.totalorder %s20, 0
    %p108 = por %p106, %p107
    %s110 = sadd.s32 %s109, 1
    %p113 = scmp.eq.s32.totalorder %s14, 1
    %p114 = scmp.ne.s32.totalorder %s109, %s111
    %p115 = scmp.eq.s32.totalorder %s14, 0
    %p116 = por %p114, %p115
    %p117 = scmp.ne.s32.totalorder %s109, %s111
    %p118 = scmp.eq.s32.totalorder %s19, 1
    %p119 = por %p117, %p118
    %p120 = scmp.ne.s32.totalorder %s111, %s112
    %p121 = scmp.eq.s32.totalorder %s19, 0
    %p122 = por %p120, %p121
    %p123 = scmp.ne.s32.totalorder %s111, %s112
    %p124 = scmp.eq.s32.totalorder %s20, 1
    %p125 = por %p123, %p124
    %p127 = scmp.ne.s32.totalorder %s112, %s126
    %p128 = scmp.eq.s32.totalorder %s20, 0
    %p129 = por %p127, %p128
    %s131 = sadd.s32 %s130, 1
    %p134 = scmp.eq.s32.totalorder %s14, 1
    %p135 = scmp.ne.s32.totalorder %s130, %s132
    %p136 = scmp.eq.s32.totalorder %s14, 0
    %p137 = por %p135, %p136
    %p138 = scmp.ne.s32.totalorder %s130, %s132
    %p139 = scmp.eq.s32.totalorder %s19, 1
    %p140 = por %p138, %p139
    %p141 = scmp.ne.s32.totalorder %s132, %s133
    %p142 = scmp.eq.s32.totalorder %s19, 0
    %p143 = por %p141, %p142
    %p144 = scmp.ne.s32.totalorder %s132, %s133
    %p145 = scmp.eq.s32.totalorder %s20, 1
    %p146 = por %p144, %p145
    %p148 = scmp.ne.s32.totalorder %s133, %s147
    %p149 = scmp.eq.s32.totalorder %s20, 0
    %p150 = por %p148, %p149
    %s152 = sadd.s32 %s151, 1
    %p155 = scmp.eq.s32.totalorder %s14, 1
    %p156 = scmp.ne.s32.totalorder %s151, %s153
    %p157 = scmp.eq.s32.totalorder %s14, 0
    %p158 = por %p156, %p157
    %p159 = scmp.ne.s32.totalorder %s151, %s153
    %p160 = scmp.eq.s32.totalorder %s19, 1
    %p161 = por %p159, %p160
    %p162 = scmp.ne.s32.totalorder %s153, %s154
    %p163 = scmp.eq.s32.totalorder %s19, 0
    %p164 = por %p162, %p163
    %p165 = scmp.ne.s32.totalorder %s153, %s154
    %p166 = scmp.eq.s32.totalorder %s20, 1
    %p167 = por %p165, %p166
    %p169 = scmp.ne.s32.totalorder %s154, %s168
    %p170 = scmp.eq.s32.totalorder %s20, 0
    %p171 = por %p169, %p170
    %s173 = sadd.s32 %s172, 1
    %p176 = scmp.eq.s32.totalorder %s14, 1
    %p177 = scmp.ne.s32.totalorder %s172, %s174
    %p178 = scmp.eq.s32.totalorder %s14, 0
    %p179 = por %p177, %p178
    %p180 = scmp.ne.s32.totalorder %s172, %s174
    %p181 = scmp.eq.s32.totalorder %s19, 1
    %p182 = por %p180, %p181
    %p183 = scmp.ne.s32.totalorder %s174, %s175
    %p184 = scmp.eq.s32.totalorder %s19, 0
    %p185 = por %p183, %p184
    %p186 = scmp.ne.s32.totalorder %s174, %s175
    %p187 = scmp.eq.s32.totalorder %s20, 1
    %p188 = por %p186, %p187
    %p190 = scmp.ne.s32.totalorder %s175, %s189
    %p191 = scmp.eq.s32.totalorder %s20, 0
    %p192 = por %p190, %p191
    %s194 = sadd.s32 %s193, 1
    %p197 = scmp.eq.s32.totalorder %s14, 1
    %p198 = scmp.ne.s32.totalorder %s193, %s195
    %p199 = scmp.eq.s32.totalorder %s14, 0
    %p200 = por %p198, %p199
    %p201 = scmp.ne.s32.totalorder %s193, %s195
    %p202 = scmp.eq.s32.totalorder %s19, 1
    %p203 = por %p201, %p202
    %p204 = scmp.ne.s32.totalorder %s195, %s196
    %p205 = scmp.eq.s32.totalorder %s19, 0
    %p206 = por %p204, %p205
    %p207 = scmp.ne.s32.totalorder %s195, %s196
    %p208 = scmp.eq.s32.totalorder %s20, 1
    %p209 = por %p207, %p208
    %p211 = scmp.ne.s32.totalorder %s196, %s210
    %p212 = scmp.eq.s32.totalorder %s20, 0
    %p213 = por %p211, %p212
    %s214 = ssub.s32 %s21, %s33
    %s215 = ssub.s32 %s22, %s29
    %s216 = sor.u32 %s214, %s215
    %p217 = scmp.eq.s32.totalorder %s216, 0
    %s219 = sadd.s32 %s218, 1
    %s220 = scalar_select %p217, %s218, %s219
    %p223 = pneg %p217
    %p224 = scmp.eq.s32.totalorder %s14, 1
    %p225 = por %p223, %p224
    %p226 = scmp.ne.s32.totalorder %s218, %s221
    %p227 = scmp.eq.s32.totalorder %s14, 0
    %p228 = por %p226, %p227
    %p229 = scmp.ne.s32.totalorder %s218, %s221
    %p230 = scmp.eq.s32.totalorder %s19, 1
    %p231 = por %p229, %p230
    %p232 = scmp.ne.s32.totalorder %s221, %s222
    %p233 = scmp.eq.s32.totalorder %s19, 0
    %p234 = por %p232, %p233
    %p235 = scmp.ne.s32.totalorder %s221, %s222
    %p236 = scmp.eq.s32.totalorder %s20, 1
    %p237 = por %p235, %p236
    %p239 = scmp.ne.s32.totalorder %s222, %s238
    %p240 = scmp.eq.s32.totalorder %s20, 0
    %p241 = por %p239, %p240
    %p242 = scmp.le.s32.totalorder 1, %s14
    %p243 = scmp.lt.s32.totalorder %s14, 3
    %p244 = pnand %p242, %p243
    %p245 = pneg %p244
    // Predicated region
    $region9: #{decoder_forward.6} parent=5 // pred_check
      _
    $region10: #{decoder_forward.6} parent=5 // pred_check_branch
      %247 = sbr.rel (%p244) target = $region12
    $region11: #{decoder_forward.6} parent=5 // pred_region
      %s248 = ssub.s32 %s14, 1
      // Predicated region
      $region13: #{decoder_forward.6} parent=11 // pred_check
        %p249 = pneg %p101
      $region14: #{decoder_forward.6} parent=11 // pred_check_branch
        %251 = sbr.rel (%p249) target = $region16
      $region15: #{decoder_forward.6} parent=11 // pred_region
        _
      $region16: #{decoder_forward.6} parent=11 // pred_fallthru
        _
      // Predicated region
      $region17: #{decoder_forward.6} parent=11 // pred_check
        %p252 = pneg %p122
      $region18: #{decoder_forward.6} parent=11 // pred_check_branch
        %254 = sbr.rel (%p252) target = $region20
      $region19: #{decoder_forward.6} parent=11 // pred_region
        _
      $region20: #{decoder_forward.6} parent=11 // pred_fallthru
        _
      // Predicated region
      $region21: #{decoder_forward.6} parent=11 // pred_check
        %p255 = pneg %p143
      $region22: #{decoder_forward.6} parent=11 // pred_check_branch
        %257 = sbr.rel (%p255) target = $region24
      $region23: #{decoder_forward.6} parent=11 // pred_region
        _
      $region24: #{decoder_forward.6} parent=11 // pred_fallthru
        _
      // Predicated region
      $region25: #{decoder_forward.6} parent=11 // pred_check
        %p258 = pneg %p164
      $region26: #{decoder_forward.6} parent=11 // pred_check_branch
        %260 = sbr.rel (%p258) target = $region28
      $region27: #{decoder_forward.6} parent=11 // pred_region
        _
      $region28: #{decoder_forward.6} parent=11 // pred_fallthru
        _
      // Predicated region
      $region29: #{decoder_forward.6} parent=11 // pred_check
        %p261 = pneg %p185
      $region30: #{decoder_forward.6} parent=11 // pred_check_branch
        %263 = sbr.rel (%p261) target = $region32
      $region31: #{decoder_forward.6} parent=11 // pred_region
        _
      $region32: #{decoder_forward.6} parent=11 // pred_fallthru
        _
      // Predicated region
      $region33: #{decoder_forward.6} parent=11 // pred_check
        %p264 = pneg %p206
      $region34: #{decoder_forward.6} parent=11 // pred_check_branch
        %266 = sbr.rel (%p264) target = $region36
      $region35: #{decoder_forward.6} parent=11 // pred_region
        _
      $region36: #{decoder_forward.6} parent=11 // pred_fallthru
        _
    $region12: #{decoder_forward.6} parent=5 // pred_fallthru
      _
    %p267 = scmp.lt.s32.totalorder %s14, 2
    // Predicated region
    $region37: #{decoder_forward.6} parent=5 // pred_check
      %p268 = pneg %p267
    $region38: #{decoder_forward.6} parent=5 // pred_check_branch
      %270 = sbr.rel (%p268) target = $region40
    $region39: #{decoder_forward.6} parent=5 // pred_region
      // Predicated region
      $region41: #{decoder_forward.6} parent=39 // pred_check
        %p271 = pneg %p48
      $region42: #{decoder_forward.6} parent=39 // pred_check_branch
        %273 = sbr.rel (%p271) target = $region44
      $region43: #{decoder_forward.6} parent=39 // pred_region
        %p274 = scmp.lt.s32.totalorder %s21, 1
        %s275 = scalar_select %p274, %s21, 1
        %p276 = scmp.lt.s32.totalorder %s22, 0
        %s277 = scalar_select %p276, %s22, 0
        %s278 = sadd.s32 %s277, %s275
        %s279 = smul.addr %s278, 8
        %s280 = scalar_lea.vmem %s0, %s279
      $region44: #{decoder_forward.6} parent=39 // pred_fallthru
        _
      // Predicated region
      $region45: #{decoder_forward.6} parent=39 // pred_check
        %p281 = pneg %p74
      $region46: #{decoder_forward.6} parent=39 // pred_check_branch
        %283 = sbr.rel (%p281) target = $region48
      $region47: #{decoder_forward.6} parent=39 // pred_region
        %p284 = scmp.lt.s32.totalorder %s21, 1
        %s285 = scalar_select %p284, %s21, 1
        %s286 = smul.addr %s285, 8
        %s287 = scalar_lea.vmem %s1, %s286
      $region48: #{decoder_forward.6} parent=39 // pred_fallthru
        _
    $region40: #{decoder_forward.6} parent=5 // pred_fallthru
      _
    %p288 = scmp.le.s32.totalorder 1, %s14
    %p289 = scmp.lt.s32.totalorder %s14, 3
    %p290 = pnand %p288, %p289
    %p291 = pneg %p290
    // Predicated region
    $region49: #{decoder_forward.6} parent=5 // pred_check
      _
    $region50: #{decoder_forward.6} parent=5 // pred_check_branch
      %293 = sbr.rel (%p290) target = $region52
    $region51: #{decoder_forward.6} parent=5 // pred_region
      %s294 = ssub.s32 %s14, 1
      %p295 = scmp.lt.s32.totalorder %s23, 1
      %s296 = scalar_select %p295, %s23, 1
      %p297 = scmp.lt.s32.totalorder %s24, 0
      %s298 = scalar_select %p297, %s24, 0
      %s299 = sadd.s32 %s298, %s296
      %s300 = smul.addr %s299, 8
      %s301 = scalar_lea.vmem %s0, %s300
      %p302 = pneg %p54
      %p303 = pneg %p51
      %p304 = scmp.lt.s32.totalorder %s23, 1
      %s305 = scalar_select %p304, %s23, 1
      %s306 = smul.addr %s305, 8
      %s307 = scalar_lea.vmem %s1, %s306
      %p308 = pneg %p80
      %p309 = pneg %p77
      %p310 = pneg %p101
      %p311 = pneg %p98
      %p312 = pneg %p122
      %p313 = pneg %p119
      %p314 = pneg %p143
      %p315 = pneg %p140
      %p316 = pneg %p164
      %p317 = pneg %p161
      %p318 = pneg %p185
      %p319 = pneg %p182
      %p320 = pneg %p206
      %p321 = pneg %p203
      %p322 = pneg %p234
      %p323 = pneg %p231
      %p324 = scmp.lt.s32.totalorder %s23, 1
      %s325 = scalar_select %p324, %s23, 1
      %p326 = scmp.lt.s32.totalorder %s24, 0
      %s327 = scalar_select %p326, %s24, 0
      %s328 = sadd.s32 %s327, %s325
      %s329 = smul.addr %s328, 8
      %s330 = scalar_lea.vmem %s8, %s329
      %p331 = scmp.lt.s32.totalorder %s23, 1
      %s332 = scalar_select %p331, %s23, 1
      %p333 = scmp.lt.s32.totalorder %s24, 0
      %s334 = scalar_select %p333, %s24, 0
      %s335 = sadd.s32 %s334, %s332
      %s336 = smul.addr %s335, 8
      %s337 = scalar_lea.vmem %s0, %s336
      %p338 = scmp.lt.s32.totalorder %s23, 1
      %s339 = scalar_select %p338, %s23, 1
      %s340 = smul.addr %s339, 8
      %s341 = scalar_lea.vmem %s1, %s340
      %p342 = scmp.lt.s32.totalorder %s23, 1
      %s343 = scalar_select %p342, %s23, 1
      %p344 = scmp.lt.s32.totalorder %s24, 0
      %s345 = scalar_select %p344, %s24, 0
      %s346 = sadd.s32 %s345, %s343
      %s347 = smul.addr %s346, 8
      %s348 = scalar_lea.vmem %s8, %s347
      %v350 = vld [vmem:[%s337] sm:$0xff]
      %v351 = vpack.c.bf16 %v350, %v350
      %v352 = vld [vmem:[%s341] sm:$0xff]
      %v353 = vpack.c.bf16 %v352, %v352
      %v354 = vld [vmem:[%s2] sm:$0xf]
      %v355 = vld [vmem:[%s2 + $0x4] sm:$0xf]
      %v356 = vld [vmem:[%s2 + $0x8] sm:$0xf]
      %v357 = vld [vmem:[%s2 + $0xc] sm:$0xf]
      %v358 = vld [vmem:[%s2 + $0x10] sm:$0xf]
      %v359 = vld [vmem:[%s2 + $0x14] sm:$0xf]
      %v360 = vld [vmem:[%s2 + $0x18] sm:$0xf]
      %v361 = vld [vmem:[%s2 + $0x1c] sm:$0xf]
      %v362 = vld [vmem:[%s2 + $0x20] sm:$0xf]
      %v363 = vld [vmem:[%s2 + $0x24] sm:$0xf]
      %v364 = vld [vmem:[%s2 + $0x28] sm:$0xf]
      %v365 = vld [vmem:[%s2 + $0x2c] sm:$0xf]
      %v366 = vld [vmem:[%s2 + $0x30] sm:$0xf]
      %v367 = vld [vmem:[%s2 + $0x34] sm:$0xf]
      %v368 = vld [vmem:[%s2 + $0x38] sm:$0xf]
      %v369 = vld [vmem:[%s2 + $0x3c] sm:$0xf]
      %v386 = vunpack.c.l.b16 %v354
      %v387 = vunpack.c.l.b16 %v355
      %v388 = vunpack.c.l.b16 %v356
      %v389 = vunpack.c.l.b16 %v357
      %v390 = vunpack.c.l.b16 %v358
      %v391 = vunpack.c.l.b16 %v359
      %v392 = vunpack.c.l.b16 %v360
      %v393 = vunpack.c.l.b16 %v361
      %v394 = vunpack.c.l.b16 %v362
      %v395 = vunpack.c.l.b16 %v363
      %v396 = vunpack.c.l.b16 %v364
      %v397 = vunpack.c.l.b16 %v365
      %v398 = vunpack.c.l.b16 %v366
      %v399 = vunpack.c.l.b16 %v367
      %v400 = vunpack.c.l.b16 %v368
      %v401 = vunpack.c.l.b16 %v369
      %v402 = vpack.c.b16 %v387, %v386
      %v403 = vpack.c.b16 %v389, %v388
      %v404 = vpack.c.b16 %v391, %v390
      %v405 = vpack.c.b16 %v393, %v392
      %v406 = vpack.c.b16 %v395, %v394
      %v407 = vpack.c.b16 %v397, %v396
      %v408 = vpack.c.b16 %v399, %v398
      %v409 = vpack.c.b16 %v401, %v400
      %418 = vmatprep.subr.bf16.mxu0 0
      %419 = vmatpush1.bf16.msra.mxu0 %v402
      %420 = vmatprep.subr.bf16.mxu0 0
      %421 = vmatpush1.bf16.msra.mxu0 %v403
      %422 = vmatprep.subr.bf16.mxu0 0
      %423 = vmatpush1.bf16.msra.mxu0 %v404
      %424 = vmatprep.subr.bf16.mxu0 0
      %425 = vmatpush1.bf16.msra.mxu0 %v405
      %426 = vmatprep.subr.bf16.mxu0 0
      %427 = vmatpush1.bf16.msra.mxu0 %v406
      %428 = vmatprep.subr.bf16.mxu0 0
      %429 = vmatpush1.bf16.msra.mxu0 %v407
      %430 = vmatprep.subr.bf16.mxu0 0
      %431 = vmatpush1.bf16.msra.mxu0 %v408
      %432 = vmatprep.subr.bf16.mxu0 0
      %433 = vmatpush1.bf16.msra.mxu0 %v409
      %434 = vmatprep.subr.bf16.mxu0 0
      %435 = vmatpush1.bf16.msra.mxu0 0
      %436 = vmatprep.subr.bf16.mxu0 0
      %437 = vmatpush1.bf16.msra.mxu0 0
      %438 = vmatprep.subr.bf16.mxu0 0
      %439 = vmatpush1.bf16.msra.mxu0 0
      %440 = vmatprep.subr.bf16.mxu0 0
      %441 = vmatpush1.bf16.msra.mxu0 0
      %442 = vmatprep.subr.bf16.mxu0 0
      %443 = vmatpush1.bf16.msra.mxu0 0
      %444 = vmatprep.subr.bf16.mxu0 0
      %445 = vmatpush1.bf16.msra.mxu0 0
      %446 = vmatprep.subr.bf16.mxu0 0
      %447 = vmatpush1.bf16.msra.mxu0 0
      %448 = vmatprep.subr.bf16.mxu0 0
      %449 = vmatpush1.bf16.msra.mxu0 0
      %450 = vmatprep.mubr.bf16.mxu0 0
      %451 = vmatmul.mubr.bf16.gmra.mrb[0].mxu0 %v351
      %v452 = vpop.f32.mrb[0].mxu0
      %v453 = vadd.f32 0.0, %v452
      %v454 = vpop.f32.mrb[0].mxu0
      %v455 = vpop.f32.mrb[0].mxu0
      %v456 = vpop.f32.mrb[0].mxu0
      %457 = vdwg.mxu0
      %v458 = vmul.f32 %v453, 0.35355338
      %v459 = vld [vmem:[%s3] sm:$0xf]
      %v460 = vld [vmem:[%s3 + $0x4] sm:$0xf]
      %v461 = vld [vmem:[%s3 + $0x8] sm:$0xf]
      %v462 = vld [vmem:[%s3 + $0xc] sm:$0xf]
      %v463 = vld [vmem:[%s3 + $0x10] sm:$0xf]
      %v464 = vld [vmem:[%s3 + $0x14] sm:$0xf]
      %v465 = vld [vmem:[%s3 + $0x18] sm:$0xf]
      %v466 = vld [vmem:[%s3 + $0x1c] sm:$0xf]
      %v467 = vld [vmem:[%s3 + $0x20] sm:$0xf]
      %v468 = vld [vmem:[%s3 + $0x24] sm:$0xf]
      %v469 = vld [vmem:[%s3 + $0x28] sm:$0xf]
      %v470 = vld [vmem:[%s3 + $0x2c] sm:$0xf]
      %v471 = vld [vmem:[%s3 + $0x30] sm:$0xf]
      %v472 = vld [vmem:[%s3 + $0x34] sm:$0xf]
      %v473 = vld [vmem:[%s3 + $0x38] sm:$0xf]
      %v474 = vld [vmem:[%s3 + $0x3c] sm:$0xf]
      %v491 = vunpack.c.l.b16 %v459
      %v492 = vunpack.c.l.b16 %v460
      %v493 = vunpack.c.l.b16 %v461
      %v494 = vunpack.c.l.b16 %v462
      %v495 = vunpack.c.l.b16 %v463
      %v496 = vunpack.c.l.b16 %v464
      %v497 = vunpack.c.l.b16 %v465
      %v498 = vunpack.c.l.b16 %v466
      %v499 = vunpack.c.l.b16 %v467
      %v500 = vunpack.c.l.b16 %v468
      %v501 = vunpack.c.l.b16 %v469
      %v502 = vunpack.c.l.b16 %v470
      %v503 = vunpack.c.l.b16 %v471
      %v504 = vunpack.c.l.b16 %v472
      %v505 = vunpack.c.l.b16 %v473
      %v506 = vunpack.c.l.b16 %v474
      %v507 = vpack.c.b16 %v492, %v491
      %v508 = vpack.c.b16 %v494, %v493
      %v509 = vpack.c.b16 %v496, %v495
      %v510 = vpack.c.b16 %v498, %v497
      %v511 = vpack.c.b16 %v500, %v499
      %v512 = vpack.c.b16 %v502, %v501
      %v513 = vpack.c.b16 %v504, %v503
      %v514 = vpack.c.b16 %v506, %v505
      %523 = vmatprep.subr.bf16.mxu0 0
      %524 = vmatpush1.bf16.msra.mxu0 %v507
      %525 = vmatprep.subr.bf16.mxu0 0
      %526 = vmatpush1.bf16.msra.mxu0 %v508
      %527 = vmatprep.subr.bf16.mxu0 0
      %528 = vmatpush1.bf16.msra.mxu0 %v509
      %529 = vmatprep.subr.bf16.mxu0 0
      %530 = vmatpush1.bf16.msra.mxu0 %v510
      %531 = vmatprep.subr.bf16.mxu0 0
      %532 = vmatpush1.bf16.msra.mxu0 %v511
      %533 = vmatprep.subr.bf16.mxu0 0
      %534 = vmatpush1.bf16.msra.mxu0 %v512
      %535 = vmatprep.subr.bf16.mxu0 0
      %536 = vmatpush1.bf16.msra.mxu0 %v513
      %537 = vmatprep.subr.bf16.mxu0 0
      %538 = vmatpush1.bf16.msra.mxu0 %v514
      %539 = vmatprep.subr.bf16.mxu0 0
      %540 = vmatpush1.bf16.msra.mxu0 0
      %541 = vmatprep.subr.bf16.mxu0 0
      %542 = vmatpush1.bf16.msra.mxu0 0
      %543 = vmatprep.subr.bf16.mxu0 0
      %544 = vmatpush1.bf16.msra.mxu0 0
      %545 = vmatprep.subr.bf16.mxu0 0
      %546 = vmatpush1.bf16.msra.mxu0 0
      %547 = vmatprep.subr.bf16.mxu0 0
      %548 = vmatpush1.bf16.msra.mxu0 0
      %549 = vmatprep.subr.bf16.mxu0 0
      %550 = vmatpush1.bf16.msra.mxu0 0
      %551 = vmatprep.subr.bf16.mxu0 0
      %552 = vmatpush1.bf16.msra.mxu0 0
      %553 = vmatprep.subr.bf16.mxu0 0
      %554 = vmatpush1.bf16.msra.mxu0 0
      %555 = vmatprep.mubr.bf16.mxu0 0
      %556 = vmatmul.mubr.bf16.gmra.mrb[0].mxu0 %v353
      %v557 = vpop.f32.mrb[0].mxu0
      %v558 = vadd.f32 0.0, %v557
      %v559 = vpop.f32.mrb[0].mxu0
      %v560 = vpop.f32.mrb[0].mxu0
      %v561 = vpop.f32.mrb[0].mxu0
      %562 = vdwg.mxu0
      %v563 = vld [vmem:[%s4] sm:$0xf]
      %v564 = vld [vmem:[%s4 + $0x4] sm:$0xf]
      %v565 = vld [vmem:[%s4 + $0x8] sm:$0xf]
      %v566 = vld [vmem:[%s4 + $0xc] sm:$0xf]
      %v567 = vld [vmem:[%s4 + $0x10] sm:$0xf]
      %v568 = vld [vmem:[%s4 + $0x14] sm:$0xf]
      %v569 = vld [vmem:[%s4 + $0x18] sm:$0xf]
      %v570 = vld [vmem:[%s4 + $0x1c] sm:$0xf]
      %v571 = vld [vmem:[%s4 + $0x20] sm:$0xf]
      %v572 = vld [vmem:[%s4 + $0x24] sm:$0xf]
      %v573 = vld [vmem:[%s4 + $0x28] sm:$0xf]
      %v574 = vld [vmem:[%s4 + $0x2c] sm:$0xf]
      %v575 = vld [vmem:[%s4 + $0x30] sm:$0xf]
      %v576 = vld [vmem:[%s4 + $0x34] sm:$0xf]
      %v577 = vld [vmem:[%s4 + $0x38] sm:$0xf]
      %v578 = vld [vmem:[%s4 + $0x3c] sm:$0xf]
      %v595 = vunpack.c.l.b16 %v563
      %v596 = vunpack.c.l.b16 %v564
      %v597 = vunpack.c.l.b16 %v565
      %v598 = vunpack.c.l.b16 %v566
      %v599 = vunpack.c.l.b16 %v567
      %v600 = vunpack.c.l.b16 %v568
      %v601 = vunpack.c.l.b16 %v569
      %v602 = vunpack.c.l.b16 %v570
      %v603 = vunpack.c.l.b16 %v571
      %v604 = vunpack.c.l.b16 %v572
      %v605 = vunpack.c.l.b16 %v573
      %v606 = vunpack.c.l.b16 %v574
      %v607 = vunpack.c.l.b16 %v575
      %v608 = vunpack.c.l.b16 %v576
      %v609 = vunpack.c.l.b16 %v577
      %v610 = vunpack.c.l.b16 %v578
      %v611 = vpack.c.b16 %v596, %v595
      %v612 = vpack.c.b16 %v598, %v597
      %v613 = vpack.c.b16 %v600, %v599
      %v614 = vpack.c.b16 %v602, %v601
      %v615 = vpack.c.b16 %v604, %v603
      %v616 = vpack.c.b16 %v606, %v605
      %v617 = vpack.c.b16 %v608, %v607
      %v618 = vpack.c.b16 %v610, %v609
      %627 = vmatprep.subr.bf16.mxu0 0
      %628 = vmatpush1.bf16.msra.mxu0 %v611
      %629 = vmatprep.subr.bf16.mxu0 0
      %630 = vmatpush1.bf16.msra.mxu0 %v612
      %631 = vmatprep.subr.bf16.mxu0 0
      %632 = vmatpush1.bf16.msra.mxu0 %v613
      %633 = vmatprep.subr.bf16.mxu0 0
      %634 = vmatpush1.bf16.msra.mxu0 %v614
      %635 = vmatprep.subr.bf16.mxu0 0
      %636 = vmatpush1.bf16.msra.mxu0 %v615
      %637 = vmatprep.subr.bf16.mxu0 0
      %638 = vmatpush1.bf16.msra.mxu0 %v616
      %639 = vmatprep.subr.bf16.mxu0 0
      %640 = vmatpush1.bf16.msra.mxu0 %v617
      %641 = vmatprep.subr.bf16.mxu0 0
      %642 = vmatpush1.bf16.msra.mxu0 %v618
      %643 = vmatprep.subr.bf16.mxu0 0
      %644 = vmatpush1.bf16.msra.mxu0 0
      %645 = vmatprep.subr.bf16.mxu0 0
      %646 = vmatpush1.bf16.msra.mxu0 0
      %647 = vmatprep.subr.bf16.mxu0 0
      %648 = vmatpush1.bf16.msra.mxu0 0
      %649 = vmatprep.subr.bf16.mxu0 0
      %650 = vmatpush1.bf16.msra.mxu0 0
      %651 = vmatprep.subr.bf16.mxu0 0
      %652 = vmatpush1.bf16.msra.mxu0 0
      %653 = vmatprep.subr.bf16.mxu0 0
      %654 = vmatpush1.bf16.msra.mxu0 0
      %655 = vmatprep.subr.bf16.mxu0 0
      %656 = vmatpush1.bf16.msra.mxu0 0
      %657 = vmatprep.subr.bf16.mxu0 0
      %658 = vmatpush1.bf16.msra.mxu0 0
      %659 = vmatprep.mubr.bf16.mxu0 0
      %660 = vmatmul.mubr.bf16.gmra.mrb[0].mxu0 %v353
      %v661 = vpop.f32.mrb[0].mxu0
      %v662 = vadd.f32 0.0, %v661
      %v663 = vpop.f32.mrb[0].mxu0
      %v664 = vpop.f32.mrb[0].mxu0
      %v665 = vpop.f32.mrb[0].mxu0
      %666 = vdwg.mxu0
      %v667 = vpack.c.bf16 %v458, %v458
      %v668 = vpack.c.bf16 %v558, %v558
      %vm669 = vcmask 64512
      %v671 = vsel %vm669, %v667, 0
      %v674 = vsel %vm669, %v668, 0
      %676 = vmatprep.subr.bf16.mxu0 0
      %677 = vmatpush1.bf16.xpose.msra.mxu0 %v674
      %678 = vmatprep.subr.bf16.mxu0 0
      %679 = vmatpush1.bf16.xpose.msra.mxu0 0
      %680 = vmatprep.subr.bf16.mxu0 0
      %681 = vmatpush1.bf16.xpose.msra.mxu0 0
      %682 = vmatprep.subr.bf16.mxu0 0
      %683 = vmatpush1.bf16.xpose.msra.mxu0 0
      %684 = vmatprep.subr.bf16.mxu0 0
      %685 = vmatpush1.bf16.xpose.msra.mxu0 0
      %686 = vmatprep.subr.bf16.mxu0 0
      %687 = vmatpush1.bf16.xpose.msra.mxu0 0
      %688 = vmatprep.subr.bf16.mxu0 0
      %689 = vmatpush1.bf16.xpose.msra.mxu0 0
      %690 = vmatprep.subr.bf16.mxu0 0
      %691 = vmatpush1.bf16.xpose.msra.mxu0 0
      %692 = vmatprep.subr.bf16.mxu0 0
      %693 = vmatpush1.bf16.xpose.msra.mxu0 0
      %694 = vmatprep.subr.bf16.mxu0 0
      %695 = vmatpush1.bf16.xpose.msra.mxu0 0
      %696 = vmatprep.subr.bf16.mxu0 0
      %697 = vmatpush1.bf16.xpose.msra.mxu0 0
      %698 = vmatprep.subr.bf16.mxu0 0
      %699 = vmatpush1.bf16.xpose.msra.mxu0 0
      %700 = vmatprep.subr.bf16.mxu0 0
      %701 = vmatpush1.bf16.xpose.msra.mxu0 0
      %702 = vmatprep.subr.bf16.mxu0 0
      %703 = vmatpush1.bf16.xpose.msra.mxu0 0
      %704 = vmatprep.subr.bf16.mxu0 0
      %705 = vmatpush1.bf16.xpose.msra.mxu0 0
      %706 = vmatprep.subr.bf16.mxu0 0
      %707 = vmatpush1.bf16.xpose.msra.mxu0 0
      %708 = vmatprep.mubr.bf16.mxu0 0
      %709 = vmatmul.mubr.bf16.gmra.mrb[0].mxu0 %v671
      %v710 = vpop.f32.mrb[0].mxu0
      %v711 = vadd.f32 0.0, %v710
      %v712 = vpop.f32.mrb[0].mxu0
      %v713 = vpop.f32.mrb[0].mxu0
      %v714 = vpop.f32.mrb[0].mxu0
      %715 = vdwg.mxu0
      %v716 = vsel %vm669, %v711, -inf
      %717 = vmax.xlane.f32.xlu0 %v716
      %v718 = vpop.xlane.xlu0 %717
      %v719 = vsub.f32 %v711, %v718
      %v720 = vmul.f32 %v719, 1.442695
      %v721 = vpow.pop %v720
      %v722 = vsel %vm669, %v721, 0.0
      %723 = vadd.xlane.f32.xlu0 %v722
      %v724 = vpop.xlane.xlu0 %723
      %v725 = vrcp.pop %v724
      %v726 = vmul.f32 %v721, %v725
      %v727 = vpack.c.bf16 %v726, %v726
      %v728 = vpack.c.bf16 %v662, %v662
      %v730 = vsel %vm669, %v727, 0
      %vm732 = vcmask 1043456
      %v734 = vsel %vm732, %v728, 0
      %736 = vmatprep.subr.bf16.mxu0 0
      %737 = vmatpush1.bf16.msra.mxu0 %v734
      %738 = vmatprep.subr.bf16.mxu0 0
      %739 = vmatpush1.bf16.msra.mxu0 0
      %740 = vmatprep.subr.bf16.mxu0 0
      %741 = vmatpush1.bf16.msra.mxu0 0
      %742 = vmatprep.subr.bf16.mxu0 0
      %743 = vmatpush1.bf16.msra.mxu0 0
      %744 = vmatprep.subr.bf16.mxu0 0
      %745 = vmatpush1.bf16.msra.mxu0 0
      %746 = vmatprep.subr.bf16.mxu0 0
      %747 = vmatpush1.bf16.msra.mxu0 0
      %748 = vmatprep.subr.bf16.mxu0 0
      %749 = vmatpush1.bf16.msra.mxu0 0
      %750 = vmatprep.subr.bf16.mxu0 0
      %751 = vmatpush1.bf16.msra.mxu0 0
      %752 = vmatprep.subr.bf16.mxu0 0
      %753 = vmatpush1.bf16.msra.mxu0 0
      %754 = vmatprep.subr.bf16.mxu0 0
      %755 = vmatpush1.bf16.msra.mxu0 0
      %756 = vmatprep.subr.bf16.mxu0 0
      %757 = vmatpush1.bf16.msra.mxu0 0
      %758 = vmatprep.subr.bf16.mxu0 0
      %759 = vmatpush1.bf16.msra.mxu0 0
      %760 = vmatprep.subr.bf16.mxu0 0
      %761 = vmatpush1.bf16.msra.mxu0 0
      %762 = vmatprep.subr.bf16.mxu0 0
      %763 = vmatpush1.bf16.msra.mxu0 0
      %764 = vmatprep.subr.bf16.mxu0 0
      %765 = vmatpush1.bf16.msra.mxu0 0
      %766 = vmatprep.subr.bf16.mxu0 0
      %767 = vmatpush1.bf16.msra.mxu0 0
      %768 = vmatprep.mubr.bf16.mxu0 0
      %769 = vmatmul.mubr.bf16.gmra.mrb[0].mxu0 %v730
      %v770 = vpop.f32.mrb[0].mxu0
      %v771 = vadd.f32 0.0, %v770
      %v772 = vpop.f32.mrb[0].mxu0
      %v773 = vpop.f32.mrb[0].mxu0
      %v774 = vpop.f32.mrb[0].mxu0
      %775 = vdwg.mxu0
      %776 = vst.msk [vmem:[#allocation2] sm:$0xff] %vm669, %v771
      %s777 = scalar_lea.vmem %s2, 64
      %v778 = vld [vmem:[%s777] sm:$0xf]
      %v779 = vld [vmem:[%s777 + $0x4] sm:$0xf]
      %v780 = vld [vmem:[%s777 + $0x8] sm:$0xf]
      %v781 = vld [vmem:[%s777 + $0xc] sm:$0xf]
      %v782 = vld [vmem:[%s777 + $0x10] sm:$0xf]
      %v783 = vld [vmem:[%s777 + $0x14] sm:$0xf]
      %v784 = vld [vmem:[%s777 + $0x18] sm:$0xf]
      %v785 = vld [vmem:[%s777 + $0x1c] sm:$0xf]
      %v786 = vld [vmem:[%s777 + $0x20] sm:$0xf]
      %v787 = vld [vmem:[%s777 + $0x24] sm:$0xf]
      %v788 = vld [vmem:[%s777 + $0x28] sm:$0xf]
      %v789 = vld [vmem:[%s777 + $0x2c] sm:$0xf]
      %v790 = vld [vmem:[%s777 + $0x30] sm:$0xf]
      %v791 = vld [vmem:[%s777 + $0x34] sm:$0xf]
      %v792 = vld [vmem:[%s777 + $0x38] sm:$0xf]
      %v793 = vld [vmem:[%s777 + $0x3c] sm:$0xf]
      %v810 = vunpack.c.l.b16 %v778
      %v811 = vunpack.c.l.b16 %v779
      %v812 = vunpack.c.l.b16 %v780
      %v813 = vunpack.c.l.b16 %v781
      %v814 = vunpack.c.l.b16 %v782
      %v815 = vunpack.c.l.b16 %v783
      %v816 = vunpack.c.l.b16 %v784
      %v817 = vunpack.c.l.b16 %v785
      %v818 = vunpack.c.l.b16 %v786
      %v819 = vunpack.c.l.b16 %v787
      %v820 = vunpack.c.l.b16 %v788
      %v821 = vunpack.c.l.b16 %v789
      %v822 = vunpack.c.l.b16 %v790
      %v823 = vunpack.c.l.b16 %v791
      %v824 = vunpack.c.l.b16 %v792
      %v825 = vunpack.c.l.b16 %v793
      %v826 = vpack.c.b16 %v811, %v810
      %v827 = vpack.c.b16 %v813, %v812
      %v828 = vpack.c.b16 %v815, %v814
      %v829 = vpack.c.b16 %v817, %v816
      %v830 = vpack.c.b16 %v819, %v818
      %v831 = vpack.c.b16 %v821, %v820
      %v832 = vpack.c.b16 %v823, %v822
      %v833 = vpack.c.b16 %v825, %v824
      %842 = vmatprep.subr.bf16.mxu0 0
      %843 = vmatpush1.bf16.msra.mxu0 %v826
      %844 = vmatprep.subr.bf16.mxu0 0
      %845 = vmatpush1.bf16.msra.mxu0 %v827
      %846 = vmatprep.subr.bf16.mxu0 0
      %847 = vmatpush1.bf16.msra.mxu0 %v828
      %848 = vmatprep.subr.bf16.mxu0 0
      %849 = vmatpush1.bf16.msra.mxu0 %v829
      %850 = vmatprep.subr.bf16.mxu0 0
      %851 = vmatpush1.bf16.msra.mxu0 %v830
      %852 = vmatprep.subr.bf16.mxu0 0
      %853 = vmatpush1.bf16.msra.mxu0 %v831
      %854 = vmatprep.subr.bf16.mxu0 0
      %855 = vmatpush1.bf16.msra.mxu0 %v832
      %856 = vmatprep.subr.bf16.mxu0 0
      %857 = vmatpush1.bf16.msra.mxu0 %v833
      %858 = vmatprep.subr.bf16.mxu0 0
      %859 = vmatpush1.bf16.msra.mxu0 0
      %860 = vmatprep.subr.bf16.mxu0 0
      %861 = vmatpush1.bf16.msra.mxu0 0
      %862 = vmatprep.subr.bf16.mxu0 0
      %863 = vmatpush1.bf16.msra.mxu0 0
      %864 = vmatprep.subr.bf16.mxu0 0
      %865 = vmatpush1.bf16.msra.mxu0 0
      %866 = vmatprep.subr.bf16.mxu0 0
      %867 = vmatpush1.bf16.msra.mxu0 0
      %868 = vmatprep.subr.bf16.mxu0 0
      %869 = vmatpush1.bf16.msra.mxu0 0
      %870 = vmatprep.subr.bf16.mxu0 0
      %871 = vmatpush1.bf16.msra.mxu0 0
      %872 = vmatprep.subr.bf16.mxu0 0
      %873 = vmatpush1.bf16.msra.mxu0 0
      %874 = vmatprep.mubr.bf16.mxu0 0
      %875 = vmatmul.mubr.bf16.gmra.mrb[0].mxu0 %v351
      %v876 = vpop.f32.mrb[0].mxu0
      %v877 = vadd.f32 0.0, %v876
      %v878 = vpop.f32.mrb[0].mxu0
      %v879 = vpop.f32.mrb[0].mxu0
      %v880 = vpop.f32.mrb[0].mxu0
      %881 = vdwg.mxu0
      %v882 = vmul.f32 %v877, 0.35355338
      %s883 = scalar_lea.vmem %s3, 64
      %v884 = vld [vmem:[%s883] sm:$0xf]
      %v885 = vld [vmem:[%s883 + $0x4] sm:$0xf]
      %v886 = vld [vmem:[%s883 + $0x8] sm:$0xf]
      %v887 = vld [vmem:[%s883 + $0xc] sm:$0xf]
      %v888 = vld [vmem:[%s883 + $0x10] sm:$0xf]
      %v889 = vld [vmem:[%s883 + $0x14] sm:$0xf]
      %v890 = vld [vmem:[%s883 + $0x18] sm:$0xf]
      %v891 = vld [vmem:[%s883 + $0x1c] sm:$0xf]
      %v892 = vld [vmem:[%s883 + $0x20] sm:$0xf]
      %v893 = vld [vmem:[%s883 + $0x24] sm:$0xf]
      %v894 = vld [vmem:[%s883 + $0x28] sm:$0xf]
      %v895 = vld [vmem:[%s883 + $0x2c] sm:$0xf]
      %v896 = vld [vmem:[%s883 + $0x30] sm:$0xf]
      %v897 = vld [vmem:[%s883 + $0x34] sm:$0xf]
      %v898 = vld [vmem:[%s883 + $0x38] sm:$0xf]
      %v899 = vld [vmem:[%s883 + $0x3c] sm:$0xf]
      %v916 = vunpack.c.l.b16 %v884
      %v917 = vunpack.c.l.b16 %v885
      %v918 = vunpack.c.l.b16 %v886
      %v919 = vunpack.c.l.b16 %v887
      %v920 = vunpack.c.l.b16 %v888
      %v921 = vunpack.c.l.b16 %v889
      %v922 = vunpack.c.l.b16 %v890
      %v923 = vunpack.c.l.b16 %v891
      %v924 = vunpack.c.l.b16 %v892
      %v925 = vunpack.c.l.b16 %v893
      %v926 = vunpack.c.l.b16 %v894
      %v927 = vunpack.c.l.b16 %v895
      %v928 = vunpack.c.l.b16 %v896
      %v929 = vunpack.c.l.b16 %v897
      %v930 = vunpack.c.l.b16 %v898
      %v931 = vunpack.c.l.b16 %v899
      %v932 = vpack.c.b16 %v917, %v916
      %v933 = vpack.c.b16 %v919, %v918
      %v934 = vpack.c.b16 %v921, %v920
      %v935 = vpack.c.b16 %v923, %v922
      %v936 = vpack.c.b16 %v925, %v924
      %v937 = vpack.c.b16 %v927, %v926
      %v938 = vpack.c.b16 %v929, %v928
      %v939 = vpack.c.b16 %v931, %v930
      %948 = vmatprep.subr.bf16.mxu0 0
      %949 = vmatpush1.bf16.msra.mxu0 %v932
      %950 = vmatprep.subr.bf16.mxu0 0
      %951 = vmatpush1.bf16.msra.mxu0 %v933
      %952 = vmatprep.subr.bf16.mxu0 0
      %953 = vmatpush1.bf16.msra.mxu0 %v934
      %954 = vmatprep.subr.bf16.mxu0 0
      %955 = vmatpush1.bf16.msra.mxu0 %v935
      %956 = vmatprep.subr.bf16.mxu0 0
      %957 = vmatpush1.bf16.msra.mxu0 %v936
      %958 = vmatprep.subr.bf16.mxu0 0
      %959 = vmatpush1.bf16.msra.mxu0 %v937
      %960 = vmatprep.subr.bf16.mxu0 0
      %961 = vmatpush1.bf16.msra.mxu0 %v938
      %962 = vmatprep.subr.bf16.mxu0 0
      %963 = vmatpush1.bf16.msra.mxu0 %v939
      %964 = vmatprep.subr.bf16.mxu0 0
      %965 = vmatpush1.bf16.msra.mxu0 0
      %966 = vmatprep.subr.bf16.mxu0 0
      %967 = vmatpush1.bf16.msra.mxu0 0
      %968 = vmatprep.subr.bf16.mxu0 0
      %969 = vmatpush1.bf16.msra.mxu0 0
      %970 = vmatprep.subr.bf16.mxu0 0
      %971 = vmatpush1.bf16.msra.mxu0 0
      %972 = vmatprep.subr.bf16.mxu0 0
      %973 = vmatpush1.bf16.msra.mxu0 0
      %974 = vmatprep.subr.bf16.mxu0 0
      %975 = vmatpush1.bf16.msra.mxu0 0
      %976 = vmatprep.subr.bf16.mxu0 0
      %977 = vmatpush1.bf16.msra.mxu0 0
      %978 = vmatprep.subr.bf16.mxu0 0
      %979 = vmatpush1.bf16.msra.mxu0 0
      %980 = vmatprep.mubr.bf16.mxu0 0
      %981 = vmatmul.mubr.bf16.gmra.mrb[0].mxu0 %v353
      %v982 = vpop.f32.mrb[0].mxu0
      %v983 = vadd.f32 0.0, %v982
      %v984 = vpop.f32.mrb[0].mxu0
      %v985 = vpop.f32.mrb[0].mxu0
      %v986 = vpop.f32.mrb[0].mxu0
      %987 = vdwg.mxu0
      %s988 = scalar_lea.vmem %s4, 64
      %v989 = vld [vmem:[%s988] sm:$0xf]
      %v990 = vld [vmem:[%s988 + $0x4] sm:$0xf]
      %v991 = vld [vmem:[%s988 + $0x8] sm:$0xf]
      %v992 = vld [vmem:[%s988 + $0xc] sm:$0xf]
      %v993 = vld [vmem:[%s988 + $0x10] sm:$0xf]
      %v994 = vld [vmem:[%s988 + $0x14] sm:$0xf]
      %v995 = vld [vmem:[%s988 + $0x18] sm:$0xf]
      %v996 = vld [vmem:[%s988 + $0x1c] sm:$0xf]
      %v997 = vld [vmem:[%s988 + $0x20] sm:$0xf]
      %v998 = vld [vmem:[%s988 + $0x24] sm:$0xf]
      %v999 = vld [vmem:[%s988 + $0x28] sm:$0xf]
      %v1000 = vld [vmem:[%s988 + $0x2c] sm:$0xf]
      %v1001 = vld [vmem:[%s988 + $0x30] sm:$0xf]
      %v1002 = vld [vmem:[%s988 + $0x34] sm:$0xf]
      %v1003 = vld [vmem:[%s988 + $0x38] sm:$0xf]
      %v1004 = vld [vmem:[%s988 + $0x3c] sm:$0xf]
      %v1021 = vunpack.c.l.b16 %v989
      %v1022 = vunpack.c.l.b16 %v990
      %v1023 = vunpack.c.l.b16 %v991
      %v1024 = vunpack.c.l.b16 %v992
      %v1025 = vunpack.c.l.b16 %v993
      %v1026 = vunpack.c.l.b16 %v994
      %v1027 = vunpack.c.l.b16 %v995
      %v1028 = vunpack.c.l.b16 %v996
      %v1029 = vunpack.c.l.b16 %v997
      %v1030 = vunpack.c.l.b16 %v998
      %v1031 = vunpack.c.l.b16 %v999
      %v1032 = vunpack.c.l.b16 %v1000
      %v1033 = vunpack.c.l.b16 %v1001
      %v1034 = vunpack.c.l.b16 %v1002
      %v1035 = vunpack.c.l.b16 %v1003
      %v1036 = vunpack.c.l.b16 %v1004
      %v1037 = vpack.c.b16 %v1022, %v1021
      %v1038 = vpack.c.b16 %v1024, %v1023
      %v1039 = vpack.c.b16 %v1026, %v1025
      %v1040 = vpack.c.b16 %v1028, %v1027
      %v1041 = vpack.c.b16 %v1030, %v1029
      %v1042 = vpack.c.b16 %v1032, %v1031
      %v1043 = vpack.c.b16 %v1034, %v1033
      %v1044 = vpack.c.b16 %v1036, %v1035
      %1053 = vmatprep.subr.bf16.mxu0 0
      %1054 = vmatpush1.bf16.msra.mxu0 %v1037
      %1055 = vmatprep.subr.bf16.mxu0 0
      %1056 = vmatpush1.bf16.msra.mxu0 %v1038
      %1057 = vmatprep.subr.bf16.mxu0 0
      %1058 = vmatpush1.bf16.msra.mxu0 %v1039
      %1059 = vmatprep.subr.bf16.mxu0 0
      %1060 = vmatpush1.bf16.msra.mxu0 %v1040
      %1061 = vmatprep.subr.bf16.mxu0 0
      %1062 = vmatpush1.bf16.msra.mxu0 %v1041
      %1063 = vmatprep.subr.bf16.mxu0 0
      %1064 = vmatpush1.bf16.msra.mxu0 %v1042
      %1065 = vmatprep.subr.bf16.mxu0 0
      %1066 = vmatpush1.bf16.msra.mxu0 %v1043
      %1067 = vmatprep.subr.bf16.mxu0 0
      %1068 = vmatpush1.bf16.msra.mxu0 %v1044
      %1069 = vmatprep.subr.bf16.mxu0 0
      %1070 = vmatpush1.bf16.msra.mxu0 0
      %1071 = vmatprep.subr.bf16.mxu0 0
      %1072 = vmatpush1.bf16.msra.mxu0 0
      %1073 = vmatprep.subr.bf16.mxu0 0
      %1074 = vmatpush1.bf16.msra.mxu0 0
      %1075 = vmatprep.subr.bf16.mxu0 0
      %1076 = vmatpush1.bf16.msra.mxu0 0
      %1077 = vmatprep.subr.bf16.mxu0 0
      %1078 = vmatpush1.bf16.msra.mxu0 0
      %1079 = vmatprep.subr.bf16.mxu0 0
      %1080 = vmatpush1.bf16.msra.mxu0 0
      %1081 = vmatprep.subr.bf16.mxu0 0
      %1082 = vmatpush1.bf16.msra.mxu0 0
      %1083 = vmatprep.subr.bf16.mxu0 0
      %1084 = vmatpush1.bf16.msra.mxu0 0
      %1085 = vmatprep.mubr.bf16.mxu0 0
      %1086 = vmatmul.mubr.bf16.gmra.mrb[0].mxu0 %v353
      %v1087 = vpop.f32.mrb[0].mxu0
      %v1088 = vadd.f32 0.0, %v1087
      %v1089 = vpop.f32.mrb[0].mxu0
      %v1090 = vpop.f32.mrb[0].mxu0
      %v1091 = vpop.f32.mrb[0].mxu0
      %1092 = vdwg.mxu0
      %v1093 = vpack.c.bf16 %v882, %v882
      %v1094 = vpack.c.bf16 %v983, %v983
      %v1096 = vsel %vm669, %v1093, 0
      %v1099 = vsel %vm669, %v1094, 0
      %1101 = vmatprep.subr.bf16.mxu0 0
      %1102 = vmatpush1.bf16.xpose.msra.mxu0 %v1099
      %1103 = vmatprep.subr.bf16.mxu0 0
      %1104 = vmatpush1.bf16.xpose.msra.mxu0 0
      %1105 = vmatprep.subr.bf16.mxu0 0
      %1106 = vmatpush1.bf16.xpose.msra.mxu0 0
      %1107 = vmatprep.subr.bf16.mxu0 0
      %1108 = vmatpush1.bf16.xpose.msra.mxu0 0
      %1109 = vmatprep.subr.bf16.mxu0 0
      %1110 = vmatpush1.bf16.xpose.msra.mxu0 0
      %1111 = vmatprep.subr.bf16.mxu0 0
      %1112 = vmatpush1.bf16.xpose.msra.mxu0 0
      %1113 = vmatprep.subr.bf16.mxu0 0
      %1114 = vmatpush1.bf16.xpose.msra.mxu0 0
      %1115 = vmatprep.subr.bf16.mxu0 0
      %1116 = vmatpush1.bf16.xpose.msra.mxu0 0
      %1117 = vmatprep.subr.bf16.mxu0 0
      %1118 = vmatpush1.bf16.xpose.msra.mxu0 0
      %1119 = vmatprep.subr.bf16.mxu0 0
      %1120 = vmatpush1.bf16.xpose.msra.mxu0 0
      %1121 = vmatprep.subr.bf16.mxu0 0
      %1122 = vmatpush1.bf16.xpose.msra.mxu0 0
      %1123 = vmatprep.subr.bf16.mxu0 0
      %1124 = vmatpush1.bf16.xpose.msra.mxu0 0
      %1125 = vmatprep.subr.bf16.mxu0 0
      %1126 = vmatpush1.bf16.xpose.msra.mxu0 0
      %1127 = vmatprep.subr.bf16.mxu0 0
      %1128 = vmatpush1.bf16.xpose.msra.mxu0 0
      %1129 = vmatprep.subr.bf16.mxu0 0
      %1130 = vmatpush1.bf16.xpose.msra.mxu0 0
      %1131 = vmatprep.subr.bf16.mxu0 0
      %1132 = vmatpush1.bf16.xpose.msra.mxu0 0
      %1133 = vmatprep.mubr.bf16.mxu0 0
      %1134 = vmatmul.mubr.bf16.gmra.mrb[0].mxu0 %v1096
      %v1135 = vpop.f32.mrb[0].mxu0
      %v1136 = vadd.f32 0.0, %v1135
      %v1137 = vpop.f32.mrb[0].mxu0
      %v1138 = vpop.f32.mrb[0].mxu0
      %v1139 = vpop.f32.mrb[0].mxu0
      %1140 = vdwg.mxu0
      %v1141 = vsel %vm669, %v1136, -inf
      %1142 = vmax.xlane.f32.xlu0 %v1141
      %v1143 = vpop.xlane.xlu0 %1142
      %v1144 = vsub.f32 %v1136, %v1143
      %v1145 = vmul.f32 %v1144, 1.442695
      %v1146 = vpow.pop %v1145
      %v1147 = vsel %vm669, %v1146, 0.0
      %1148 = vadd.xlane.f32.xlu0 %v1147
      %v1149 = vpop.xlane.xlu0 %1148
      %v1150 = vrcp.pop %v1149
      %v1151 = vmul.f32 %v1146, %v1150
      %v1152 = vpack.c.bf16 %v1151, %v1151
      %v1153 = vpack.c.bf16 %v1088, %v1088
      %v1155 = vsel %vm669, %v1152, 0
      %v1158 = vsel %vm732, %v1153, 0
      %1160 = vmatprep.subr.bf16.mxu0 0
      %1161 = vmatpush1.bf16.msra.mxu0 %v1158
      %1162 = vmatprep.subr.bf16.mxu0 0
      %1163 = vmatpush1.bf16.msra.mxu0 0
      %1164 = vmatprep.subr.bf16.mxu0 0
      %1165 = vmatpush1.bf16.msra.mxu0 0
      %1166 = vmatprep.subr.bf16.mxu0 0
      %1167 = vmatpush1.bf16.msra.mxu0 0
      %1168 = vmatprep.subr.bf16.mxu0 0
      %1169 = vmatpush1.bf16.msra.mxu0 0
      %1170 = vmatprep.subr.bf16.mxu0 0
      %1171 = vmatpush1.bf16.msra.mxu0 0
      %1172 = vmatprep.subr.bf16.mxu0 0
      %1173 = vmatpush1.bf16.msra.mxu0 0
      %1174 = vmatprep.subr.bf16.mxu0 0
      %1175 = vmatpush1.bf16.msra.mxu0 0
      %1176 = vmatprep.subr.bf16.mxu0 0
      %1177 = vmatpush1.bf16.msra.mxu0 0
      %1178 = vmatprep.subr.bf16.mxu0 0
      %1179 = vmatpush1.bf16.msra.mxu0 0
      %1180 = vmatprep.subr.bf16.mxu0 0
      %1181 = vmatpush1.bf16.msra.mxu0 0
      %1182 = vmatprep.subr.bf16.mxu0 0
      %1183 = vmatpush1.bf16.msra.mxu0 0
      %1184 = vmatprep.subr.bf16.mxu0 0
      %1185 = vmatpush1.bf16.msra.mxu0 0
      %1186 = vmatprep.subr.bf16.mxu0 0
      %1187 = vmatpush1.bf16.msra.mxu0 0
      %1188 = vmatprep.subr.bf16.mxu0 0
      %1189 = vmatpush1.bf16.msra.mxu0 0
      %1190 = vmatprep.subr.bf16.mxu0 0
      %1191 = vmatpush1.bf16.msra.mxu0 0
      %1192 = vmatprep.mubr.bf16.mxu0 0
      %1193 = vmatmul.mubr.bf16.gmra.mrb[0].mxu0 %v1155
      %v1194 = vpop.f32.mrb[0].mxu0
      %v1195 = vadd.f32 0.0, %v1194
      %v1196 = vpop.f32.mrb[0].mxu0
      %v1197 = vpop.f32.mrb[0].mxu0
      %v1198 = vpop.f32.mrb[0].mxu0
      %1199 = vdwg.mxu0
      %1201 = vrot.lane.b32.xlu0 %v1195, 8
      %v1202 = vpop.permute.xlu0 %1201
      %vm1204 = vcmask 130112
      %1205 = vst.msk [vmem:[#allocation2] sm:$0xff] %vm1204, %v1202
      %s1206 = scalar_lea.vmem %s2, 128
      %v1207 = vld [vmem:[%s1206] sm:$0xf]
      %v1208 = vld [vmem:[%s1206 + $0x4] sm:$0xf]
      %v1209 = vld [vmem:[%s1206 + $0x8] sm:$0xf]
      %v1210 = vld [vmem:[%s1206 + $0xc] sm:$0xf]
      %v1211 = vld [vmem:[%s1206 + $0x10] sm:$0xf]
      %v1212 = vld [vmem:[%s1206 + $0x14] sm:$0xf]
      %v1213 = vld [vmem:[%s1206 + $0x18] sm:$0xf]
      %v1214 = vld [vmem:[%s1206 + $0x1c] sm:$0xf]
      %v1215 = vld [vmem:[%s1206 + $0x20] sm:$0xf]
      %v1216 = vld [vmem:[%s1206 + $0x24] sm:$0xf]
      %v1217 = vld [vmem:[%s1206 + $0x28] sm:$0xf]
      %v1218 = vld [vmem:[%s1206 + $0x2c] sm:$0xf]
      %v1219 = vld [vmem:[%s1206 + $0x30] sm:$0xf]
      %v1220 = vld [vmem:[%s1206 + $0x34] sm:$0xf]
      %v1221 = vld [vmem:[%s1206 + $0x38] sm:$0xf]
      %v1222 = vld [vmem:[%s1206 + $0x3c] sm:$0xf]
      %v1239 = vunpack.c.l.b16 %v1207
      %v1240 = vunpack.c.l.b16 %v1208
      %v1241 = vunpack.c.l.b16 %v1209
      %v1242 = vunpack.c.l.b16 %v1210
      %v1243 = vunpack.c.l.b16 %v1211
      %v1244 = vunpack.c.l.b16 %v1212
      %v1245 = vunpack.c.l.b16 %v1213
      %v1246 = vunpack.c.l.b16 %v1214
      %v1247 = vunpack.c.l.b16 %v1215
      %v1248 = vunpack.c.l.b16 %v1216
      %v1249 = vunpack.c.l.b16 %v1217
      %v1250 = vunpack.c.l.b16 %v1218
      %v1251 = vunpack.c.l.b16 %v1219
      %v1252 = vunpack.c.l.b16 %v1220
      %v1253 = vunpack.c.l.b16 %v1221
      %v1254 = vunpack.c.l.b16 %v1222
      %v1255 = vpack.c.b16 %v1240, %v1239
      %v1256 = vpack.c.b16 %v1242, %v1241
      %v1257 = vpack.c.b16 %v1244, %v1243
      %v1258 = vpack.c.b16 %v1246, %v1245
      %v1259 = vpack.c.b16 %v1248, %v1247
      %v1260 = vpack.c.b16 %v1250, %v1249
      %v1261 = vpack.c.b16 %v1252, %v1251
      %v1262 = vpack.c.b16 %v1254, %v1253
      %1271 = vmatprep.subr.bf16.mxu0 0
      %1272 = vmatpush1.bf16.msra.mxu0 %v1255
      %1273 = vmatprep.subr.bf16.mxu0 0
      %1274 = vmatpush1.bf16.msra.mxu0 %v1256
      %1275 = vmatprep.subr.bf16.mxu0 0
      %1276 = vmatpush1.bf16.msra.mxu0 %v1257
      %1277 = vmatprep.subr.bf16.mxu0 0
      %1278 = vmatpush1.bf16.msra.mxu0 %v1258
      %1279 = vmatprep.subr.bf16.mxu0 0
      %1280 = vmatpush1.bf16.msra.mxu0 %v1259
      %1281 = vmatprep.subr.bf16.mxu0 0
      %1282 = vmatpush1.bf16.msra.mxu0 %v1260
      %1283 = vmatprep.subr.bf16.mxu0 0
      %1284 = vmatpush1.bf16.msra.mxu0 %v1261
      %1285 = vmatprep.subr.bf16.mxu0 0
      %1286 = vmatpush1.bf16.msra.mxu0 %v1262
      %1287 = vmatprep.subr.bf16.mxu0 0
      %1288 = vmatpush1.bf16.msra.mxu0 0
      %1289 = vmatprep.subr.bf16.mxu0 0
      %1290 = vmatpush1.bf16.msra.mxu0 0
      %1291 = vmatprep.subr.bf16.mxu0 0
      %1292 = vmatpush1.bf16.msra.mxu0 0
      %1293 = vmatprep.subr.bf16.mxu0 0
      %1294 = vmatpush1.bf16.msra.mxu0 0
      %1295 = vmatprep.subr.bf16.mxu0 0
      %1296 = vmatpush1.bf16.msra.mxu0 0
      %1297 = vmatprep.subr.bf16.mxu0 0
      %1298 = vmatpush1.bf16.msra.mxu0 0
      %1299 = vmatprep.subr.bf16.mxu0 0
      %1300 = vmatpush1.bf16.msra.mxu0 0
      %1301 = vmatprep.subr.bf16.mxu0 0
      %1302 = vmatpush1.bf16.msra.mxu0 0
      %1303 = vmatprep.mubr.bf16.mxu0 0
      %1304 = vmatmul.mubr.bf16.gmra.mrb[0].mxu0 %v351
      %v1305 = vpop.f32.mrb[0].mxu0
      %v1306 = vadd.f32 0.0, %v1305
      %v1307 = vpop.f32.mrb[0].mxu0
      %v1308 = vpop.f32.mrb[0].mxu0
      %v1309 = vpop.f32.mrb[0].mxu0
      %1310 = vdwg.mxu0
      %v1311 = vmul.f32 %v1306, 0.35355338
      %s1312 = scalar_lea.vmem %s3, 128
      %v1313 = vld [vmem:[%s1312] sm:$0xf]
      %v1314 = vld [vmem:[%s1312 + $0x4] sm:$0xf]
      %v1315 = vld [vmem:[%s1312 + $0x8] sm:$0xf]
      %v1316 = vld [vmem:[%s1312 + $0xc] sm:$0xf]
      %v1317 = vld [vmem:[%s1312 + $0x10] sm:$0xf]
      %v1318 = vld [vmem:[%s1312 + $0x14] sm:$0xf]
      %v1319 = vld [vmem:[%s1312 + $0x18] sm:$0xf]
      %v1320 = vld [vmem:[%s1312 + $0x1c] sm:$0xf]
      %v1321 = vld [vmem:[%s1312 + $0x20] sm:$0xf]
      %v1322 = vld [vmem:[%s1312 + $0x24] sm:$0xf]
      %v1323 = vld [vmem:[%s1312 + $0x28] sm:$0xf]
      %v1324 = vld [vmem:[%s1312 + $0x2c] sm:$0xf]
      %v1325 = vld [vmem:[%s1312 + $0x30] sm:$0xf]
      %v1326 = vld [vmem:[%s1312 + $0x34] sm:$0xf]
      %v1327 = vld [vmem:[%s1312 + $0x38] sm:$0xf]
      %v1328 = vld [vmem:[%s1312 + $0x3c] sm:$0xf]
      %v1345 = vunpack.c.l.b16 %v1313
      %v1346 = vunpack.c.l.b16 %v1314
      %v1347 = vunpack.c.l.b16 %v1315
      %v1348 = vunpack.c.l.b16 %v1316
      %v1349 = vunpack.c.l.b16 %v1317
      %v1350 = vunpack.c.l.b16 %v1318
      %v1351 = vunpack.c.l.b16 %v1319
      %v1352 = vunpack.c.l.b16 %v1320
      %v1353 = vunpack.c.l.b16 %v1321
      %v1354 = vunpack.c.l.b16 %v1322
      %v1355 = vunpack.c.l.b16 %v1323
      %v1356 = vunpack.c.l.b16 %v1324
      %v1357 = vunpack.c.l.b16 %v1325
      %v1358 = vunpack.c.l.b16 %v1326
      %v1359 = vunpack.c.l.b16 %v1327
      %v1360 = vunpack.c.l.b16 %v1328
      %v1361 = vpack.c.b16 %v1346, %v1345
      %v1362 = vpack.c.b16 %v1348, %v1347
      %v1363 = vpack.c.b16 %v1350, %v1349
      %v1364 = vpack.c.b16 %v1352, %v1351
      %v1365 = vpack.c.b16 %v1354, %v1353
      %v1366 = vpack.c.b16 %v1356, %v1355
      %v1367 = vpack.c.b16 %v1358, %v1357
      %v1368 = vpack.c.b16 %v1360, %v1359
      %1377 = vmatprep.subr.bf16.mxu0 0
      %1378 = vmatpush1.bf16.msra.mxu0 %v1361
      %1379 = vmatprep.subr.bf16.mxu0 0
      %1380 = vmatpush1.bf16.msra.mxu0 %v1362
      %1381 = vmatprep.subr.bf16.mxu0 0
      %1382 = vmatpush1.bf16.msra.mxu0 %v1363
      %1383 = vmatprep.subr.bf16.mxu0 0
      %1384 = vmatpush1.bf16.msra.mxu0 %v1364
      %1385 = vmatprep.subr.bf16.mxu0 0
      %1386 = vmatpush1.bf16.msra.mxu0 %v1365
      %1387 = vmatprep.subr.bf16.mxu0 0
      %1388 = vmatpush1.bf16.msra.mxu0 %v1366
      %1389 = vmatprep.subr.bf16.mxu0 0
      %1390 = vmatpush1.bf16.msra.mxu0 %v1367
      %1391 = vmatprep.subr.bf16.mxu0 0
      %1392 = vmatpush1.bf16.msra.mxu0 %v1368
      %1393 = vmatprep.subr.bf16.mxu0 0
      %1394 = vmatpush1.bf16.msra.mxu0 0
      %1395 = vmatprep.subr.bf16.mxu0 0
      %1396 = vmatpush1.bf16.msra.mxu0 0
      %1397 = vmatprep.subr.bf16.mxu0 0
      %1398 = vmatpush1.bf16.msra.mxu0 0
      %1399 = vmatprep.subr.bf16.mxu0 0
      %1400 = vmatpush1.bf16.msra.mxu0 0
      %1401 = vmatprep.subr.bf16.mxu0 0
      %1402 = vmatpush1.bf16.msra.mxu0 0
      %1403 = vmatprep.subr.bf16.mxu0 0
      %1404 = vmatpush1.bf16.msra.mxu0 0
      %1405 = vmatprep.subr.bf16.mxu0 0
      %1406 = vmatpush1.bf16.msra.mxu0 0
      %1407 = vmatprep.subr.bf16.mxu0 0
      %1408 = vmatpush1.bf16.msra.mxu0 0
      %1409 = vmatprep.mubr.bf16.mxu0 0
      %1410 = vmatmul.mubr.bf16.gmra.mrb[0].mxu0 %v353
      %v1411 = vpop.f32.mrb[0].mxu0
      %v1412 = vadd.f32 0.0, %v1411
      %v1413 = vpop.f32.mrb[0].mxu0
      %v1414 = vpop.f32.mrb[0].mxu0
      %v1415 = vpop.f32.mrb[0].mxu0
      %1416 = vdwg.mxu0
      %s1417 = scalar_lea.vmem %s4, 128
      %v1418 = vld [vmem:[%s1417] sm:$0xf]
      %v1419 = vld [vmem:[%s1417 + $0x4] sm:$0xf]
      %v1420 = vld [vmem:[%s1417 + $0x8] sm:$0xf]
      %v1421 = vld [vmem:[%s1417 + $0xc] sm:$0xf]
      %v1422 = vld [vmem:[%s1417 + $0x10] sm:$0xf]
      %v1423 = vld [vmem:[%s1417 + $0x14] sm:$0xf]
      %v1424 = vld [vmem:[%s1417 + $0x18] sm:$0xf]
      %v1425 = vld [vmem:[%s1417 + $0x1c] sm:$0xf]
      %v1426 = vld [vmem:[%s1417 + $0x20] sm:$0xf]
      %v1427 = vld [vmem:[%s1417 + $0x24] sm:$0xf]
      %v1428 = vld [vmem:[%s1417 + $0x28] sm:$0xf]
      %v1429 = vld [vmem:[%s1417 + $0x2c] sm:$0xf]
      %v1430 = vld [vmem:[%s1417 + $0x30] sm:$0xf]
      %v1431 = vld [vmem:[%s1417 + $0x34] sm:$0xf]
      %v1432 = vld [vmem:[%s1417 + $0x38] sm:$0xf]
      %v1433 = vld [vmem:[%s1417 + $0x3c] sm:$0xf]
      %v1450 = vunpack.c.l.b16 %v1418
      %v1451 = vunpack.c.l.b16 %v1419
      %v1452 = vunpack.c.l.b16 %v1420
      %v1453 = vunpack.c.l.b16 %v1421
      %v1454 = vunpack.c.l.b16 %v1422
      %v1455 = vunpack.c.l.b16 %v1423
      %v1456 = vunpack.c.l.b16 %v1424
      %v1457 = vunpack.c.l.b16 %v1425
      %v1458 = vunpack.c.l.b16 %v1426
      %v1459 = vunpack.c.l.b16 %v1427
      %v1460 = vunpack.c.l.b16 %v1428
      %v1461 = vunpack.c.l.b16 %v1429
      %v1462 = vunpack.c.l.b16 %v1430
      %v1463 = vunpack.c.l.b16 %v1431
      %v1464 = vunpack.c.l.b16 %v1432
      %v1465 = vunpack.c.l.b16 %v1433
      %v1466 = vpack.c.b16 %v1451, %v1450
      %v1467 = vpack.c.b16 %v1453, %v1452
      %v1468 = vpack.c.b16 %v1455, %v1454
      %v1469 = vpack.c.b16 %v1457, %v1456
      %v1470 = vpack.c.b16 %v1459, %v1458
      %v1471 = vpack.c.b16 %v1461, %v1460
      %v1472 = vpack.c.b16 %v1463, %v1462
      %v1473 = vpack.c.b16 %v1465, %v1464
      %1482 = vmatprep.subr.bf16.mxu0 0
      %1483 = vmatpush1.bf16.msra.mxu0 %v1466
      %1484 = vmatprep.subr.bf16.mxu0 0
      %1485 = vmatpush1.bf16.msra.mxu0 %v1467
      %1486 = vmatprep.subr.bf16.mxu0 0
      %1487 = vmatpush1.bf16.msra.mxu0 %v1468
      %1488 = vmatprep.subr.bf16.mxu0 0
      %1489 = vmatpush1.bf16.msra.mxu0 %v1469
      %1490 = vmatprep.subr.bf16.mxu0 0
      %1491 = vmatpush1.bf16.msra.mxu0 %v1470
      %1492 = vmatprep.subr.bf16.mxu0 0
      %1493 = vmatpush1.bf16.msra.mxu0 %v1471
      %1494 = vmatprep.subr.bf16.mxu0 0
      %1495 = vmatpush1.bf16.msra.mxu0 %v1472
      %1496 = vmatprep.subr.bf16.mxu0 0
      %1497 = vmatpush1.bf16.msra.mxu0 %v1473
      %1498 = vmatprep.subr.bf16.mxu0 0
      %1499 = vmatpush1.bf16.msra.mxu0 0
      %1500 = vmatprep.subr.bf16.mxu0 0
      %1501 = vmatpush1.bf16.msra.mxu0 0
      %1502 = vmatprep.subr.bf16.mxu0 0
      %1503 = vmatpush1.bf16.msra.mxu0 0
      %1504 = vmatprep.subr.bf16.mxu0 0
      %1505 = vmatpush1.bf16.msra.mxu0 0
      %1506 = vmatprep.subr.bf16.mxu0 0
      %1507 = vmatpush1.bf16.msra.mxu0 0
      %1508 = vmatprep.subr.bf16.mxu0 0
      %1509 = vmatpush1.bf16.msra.mxu0 0
      %1510 = vmatprep.subr.bf16.mxu0 0
      %1511 = vmatpush1.bf16.msra.mxu0 0
      %1512 = vmatprep.subr.bf16.mxu0 0
      %1513 = vmatpush1.bf16.msra.mxu0 0
      %1514 = vmatprep.mubr.bf16.mxu0 0
      %1515 = vmatmul.mubr.bf16.gmra.mrb[0].mxu0 %v353
      %v1516 = vpop.f32.mrb[0].mxu0
      %v1517 = vadd.f32 0.0, %v1516
      %v1518 = vpop.f32.mrb[0].mxu0
      %v1519 = vpop.f32.mrb[0].mxu0
      %v1520 = vpop.f32.mrb[0].mxu0
      %1521 = vdwg.mxu0
      %v1522 = vpack.c.bf16 %v1311, %v1311
      %v1523 = vpack.c.bf16 %v1412, %v1412
      %v1525 = vsel %vm669, %v1522, 0
      %v1528 = vsel %vm669, %v1523, 0
      %1530 = vmatprep.subr.bf16.mxu0 0
      %1531 = vmatpush1.bf16.xpose.msra.mxu0 %v1528
      %1532 = vmatprep.subr.bf16.mxu0 0
      %1533 = vmatpush1.bf16.xpose.msra.mxu0 0
      %1534 = vmatprep.subr.bf16.mxu0 0
      %1535 = vmatpush1.bf16.xpose.msra.mxu0 0
      %1536 = vmatprep.subr.bf16.mxu0 0
      %1537 = vmatpush1.bf16.xpose.msra.mxu0 0
      %1538 = vmatprep.subr.bf16.mxu0 0
      %1539 = vmatpush1.bf16.xpose.msra.mxu0 0
      %1540 = vmatprep.subr.bf16.mxu0 0
      %1541 = vmatpush1.bf16.xpose.msra.mxu0 0
      %1542 = vmatprep.subr.bf16.mxu0 0
      %1543 = vmatpush1.bf16.xpose.msra.mxu0 0
      %1544 = vmatprep.subr.bf16.mxu0 0
      %1545 = vmatpush1.bf16.xpose.msra.mxu0 0
      %1546 = vmatprep.subr.bf16.mxu0 0
      %1547 = vmatpush1.bf16.xpose.msra.mxu0 0
      %1548 = vmatprep.subr.bf16.mxu0 0
      %1549 = vmatpush1.bf16.xpose.msra.mxu0 0
      %1550 = vmatprep.subr.bf16.mxu0 0
      %1551 = vmatpush1.bf16.xpose.msra.mxu0 0
      %1552 = vmatprep.subr.bf16.mxu0 0
      %1553 = vmatpush1.bf16.xpose.msra.mxu0 0
      %1554 = vmatprep.subr.bf16.mxu0 0
      %1555 = vmatpush1.bf16.xpose.msra.mxu0 0
      %1556 = vmatprep.subr.bf16.mxu0 0
      %1557 = vmatpush1.bf16.xpose.msra.mxu0 0
      %1558 = vmatprep.subr.bf16.mxu0 0
      %1559 = vmatpush1.bf16.xpose.msra.mxu0 0
      %1560 = vmatprep.subr.bf16.mxu0 0
      %1561 = vmatpush1.bf16.xpose.msra.mxu0 0
      %1562 = vmatprep.mubr.bf16.mxu0 0
      %1563 = vmatmul.mubr.bf16.gmra.mrb[0].mxu0 %v1525
      %v1564 = vpop.f32.mrb[0].mxu0
      %v1565 = vadd.f32 0.0, %v1564
      %v1566 = vpop.f32.mrb[0].mxu0
      %v1567 = vpop.f32.mrb[0].mxu0
      %v1568 = vpop.f32.mrb[0].mxu0
      %1569 = vdwg.mxu0
      %v1570 = vsel %vm669, %v1565, -inf
      %1571 = vmax.xlane.f32.xlu0 %v1570
      %v1572 = vpop.xlane.xlu0 %1571
      %v1573 = vsub.f32 %v1565, %v1572
      %v1574 = vmul.f32 %v1573, 1.442695
      %v1575 = vpow.pop %v1574
      %v1576 = vsel %vm669, %v1575, 0.0
      %1577 = vadd.xlane.f32.xlu0 %v1576
      %v1578 = vpop.xlane.xlu0 %1577
      %v1579 = vrcp.pop %v1578
      %v1580 = vmul.f32 %v1575, %v1579
      %v1581 = vpack.c.bf16 %v1580, %v1580
      %v1582 = vpack.c.bf16 %v1517, %v1517
      %v1584 = vsel %vm669, %v1581, 0
      %v1587 = vsel %vm732, %v1582, 0
      %1589 = vmatprep.subr.bf16.mxu0 0
      %1590 = vmatpush1.bf16.msra.mxu0 %v1587
      %1591 = vmatprep.subr.bf16.mxu0 0
      %1592 = vmatpush1.bf16.msra.mxu0 0
      %1593 = vmatprep.subr.bf16.mxu0 0
      %1594 = vmatpush1.bf16.msra.mxu0 0
      %1595 = vmatprep.subr.bf16.mxu0 0
      %1596 = vmatpush1.bf16.msra.mxu0 0
      %1597 = vmatprep.subr.bf16.mxu0 0
      %1598 = vmatpush1.bf16.msra.mxu0 0
      %1599 = vmatprep.subr.bf16.mxu0 0
      %1600 = vmatpush1.bf16.msra.mxu0 0
      %1601 = vmatprep.subr.bf16.mxu0 0
      %1602 = vmatpush1.bf16.msra.mxu0 0
      %1603 = vmatprep.subr.bf16.mxu0 0
      %1604 = vmatpush1.bf16.msra.mxu0 0
      %1605 = vmatprep.subr.bf16.mxu0 0
      %1606 = vmatpush1.bf16.msra.mxu0 0
      %1607 = vmatprep.subr.bf16.mxu0 0
      %1608 = vmatpush1.bf16.msra.mxu0 0
      %1609 = vmatprep.subr.bf16.mxu0 0
      %1610 = vmatpush1.bf16.msra.mxu0 0
      %1611 = vmatprep.subr.bf16.mxu0 0
      %1612 = vmatpush1.bf16.msra.mxu0 0
      %1613 = vmatprep.subr.bf16.mxu0 0
      %1614 = vmatpush1.bf16.msra.mxu0 0
      %1615 = vmatprep.subr.bf16.mxu0 0
      %1616 = vmatpush1.bf16.msra.mxu0 0
      %1617 = vmatprep.subr.bf16.mxu0 0
      %1618 = vmatpush1.bf16.msra.mxu0 0
      %1619 = vmatprep.subr.bf16.mxu0 0
      %1620 = vmatpush1.bf16.msra.mxu0 0
      %1621 = vmatprep.mubr.bf16.mxu0 0
      %1622 = vmatmul.mubr.bf16.gmra.mrb[0].mxu0 %v1584
      %v1623 = vpop.f32.mrb[0].mxu0
      %v1624 = vadd.f32 0.0, %v1623
      %v1625 = vpop.f32.mrb[0].mxu0
      %v1626 = vpop.f32.mrb[0].mxu0
      %v1627 = vpop.f32.mrb[0].mxu0
      %1628 = vdwg.mxu0
      %1630 = vrot.lane.b32.xlu0 %v1624, 16
      %v1631 = vpop.permute.xlu0 %1630
      %vm1633 = vcmask 195712
      %1634 = vst.msk [vmem:[#allocation2] sm:$0xff] %vm1633, %v1631
      %s1635 = scalar_lea.vmem %s2, 192
      %v1636 = vld [vmem:[%s1635] sm:$0xf]
      %v1637 = vld [vmem:[%s1635 + $0x4] sm:$0xf]
      %v1638 = vld [vmem:[%s1635 + $0x8] sm:$0xf]
      %v1639 = vld [vmem:[%s1635 + $0xc] sm:$0xf]
      %v1640 = vld [vmem:[%s1635 + $0x10] sm:$0xf]
      %v1641 = vld [vmem:[%s1635 + $0x14] sm:$0xf]
      %v1642 = vld [vmem:[%s1635 + $0x18] sm:$0xf]
      %v1643 = vld [vmem:[%s1635 + $0x1c] sm:$0xf]
      %v1644 = vld [vmem:[%s1635 + $0x20] sm:$0xf]
      %v1645 = vld [vmem:[%s1635 + $0x24] sm:$0xf]
      %v1646 = vld [vmem:[%s1635 + $0x28] sm:$0xf]
      %v1647 = vld [vmem:[%s1635 + $0x2c] sm:$0xf]
      %v1648 = vld [vmem:[%s1635 + $0x30] sm:$0xf]
      %v1649 = vld [vmem:[%s1635 + $0x34] sm:$0xf]
      %v1650 = vld [vmem:[%s1635 + $0x38] sm:$0xf]
      %v1651 = vld [vmem:[%s1635 + $0x3c] sm:$0xf]
      %v1668 = vunpack.c.l.b16 %v1636
      %v1669 = vunpack.c.l.b16 %v1637
      %v1670 = vunpack.c.l.b16 %v1638
      %v1671 = vunpack.c.l.b16 %v1639
      %v1672 = vunpack.c.l.b16 %v1640
      %v1673 = vunpack.c.l.b16 %v1641
      %v1674 = vunpack.c.l.b16 %v1642
      %v1675 = vunpack.c.l.b16 %v1643
      %v1676 = vunpack.c.l.b16 %v1644
      %v1677 = vunpack.c.l.b16 %v1645
      %v1678 = vunpack.c.l.b16 %v1646
      %v1679 = vunpack.c.l.b16 %v1647
      %v1680 = vunpack.c.l.b16 %v1648
      %v1681 = vunpack.c.l.b16 %v1649
      %v1682 = vunpack.c.l.b16 %v1650
      %v1683 = vunpack.c.l.b16 %v1651
      %v1684 = vpack.c.b16 %v1669, %v1668
      %v1685 = vpack.c.b16 %v1671, %v1670
      %v1686 = vpack.c.b16 %v1673, %v1672
      %v1687 = vpack.c.b16 %v1675, %v1674
      %v1688 = vpack.c.b16 %v1677, %v1676
      %v1689 = vpack.c.b16 %v1679, %v1678
      %v1690 = vpack.c.b16 %v1681, %v1680
      %v1691 = vpack.c.b16 %v1683, %v1682
      %1700 = vmatprep.subr.bf16.mxu0 0
      %1701 = vmatpush1.bf16.msra.mxu0 %v1684
      %1702 = vmatprep.subr.bf16.mxu0 0
      %1703 = vmatpush1.bf16.msra.mxu0 %v1685
      %1704 = vmatprep.subr.bf16.mxu0 0
      %1705 = vmatpush1.bf16.msra.mxu0 %v1686
      %1706 = vmatprep.subr.bf16.mxu0 0
      %1707 = vmatpush1.bf16.msra.mxu0 %v1687
      %1708 = vmatprep.subr.bf16.mxu0 0
      %1709 = vmatpush1.bf16.msra.mxu0 %v1688
      %1710 = vmatprep.subr.bf16.mxu0 0
      %1711 = vmatpush1.bf16.msra.mxu0 %v1689
      %1712 = vmatprep.subr.bf16.mxu0 0
      %1713 = vmatpush1.bf16.msra.mxu0 %v1690
      %1714 = vmatprep.subr.bf16.mxu0 0
      %1715 = vmatpush1.bf16.msra.mxu0 %v1691
      %1716 = vmatprep.subr.bf16.mxu0 0
      %1717 = vmatpush1.bf16.msra.mxu0 0
      %1718 = vmatprep.subr.bf16.mxu0 0
      %1719 = vmatpush1.bf16.msra.mxu0 0
      %1720 = vmatprep.subr.bf16.mxu0 0
      %1721 = vmatpush1.bf16.msra.mxu0 0
      %1722 = vmatprep.subr.bf16.mxu0 0
      %1723 = vmatpush1.bf16.msra.mxu0 0
      %1724 = vmatprep.subr.bf16.mxu0 0
      %1725 = vmatpush1.bf16.msra.mxu0 0
      %1726 = vmatprep.subr.bf16.mxu0 0
      %1727 = vmatpush1.bf16.msra.mxu0 0
      %1728 = vmatprep.subr.bf16.mxu0 0
      %1729 = vmatpush1.bf16.msra.mxu0 0
      %1730 = vmatprep.subr.bf16.mxu0 0
      %1731 = vmatpush1.bf16.msra.mxu0 0
      %1732 = vmatprep.mubr.bf16.mxu0 0
      %1733 = vmatmul.mubr.bf16.gmra.mrb[0].mxu0 %v351
      %v1734 = vpop.f32.mrb[0].mxu0
      %v1735 = vadd.f32 0.0, %v1734
      %v1736 = vpop.f32.mrb[0].mxu0
      %v1737 = vpop.f32.mrb[0].mxu0
      %v1738 = vpop.f32.mrb[0].mxu0
      %1739 = vdwg.mxu0
      %v1740 = vmul.f32 %v1735, 0.35355338
      %s1741 = scalar_lea.vmem %s3, 192
      %v1742 = vld [vmem:[%s1741] sm:$0xf]
      %v1743 = vld [vmem:[%s1741 + $0x4] sm:$0xf]
      %v1744 = vld [vmem:[%s1741 + $0x8] sm:$0xf]
      %v1745 = vld [vmem:[%s1741 + $0xc] sm:$0xf]
      %v1746 = vld [vmem:[%s1741 + $0x10] sm:$0xf]
      %v1747 = vld [vmem:[%s1741 + $0x14] sm:$0xf]
      %v1748 = vld [vmem:[%s1741 + $0x18] sm:$0xf]
      %v1749 = vld [vmem:[%s1741 + $0x1c] sm:$0xf]
      %v1750 = vld [vmem:[%s1741 + $0x20] sm:$0xf]
      %v1751 = vld [vmem:[%s1741 + $0x24] sm:$0xf]
      %v1752 = vld [vmem:[%s1741 + $0x28] sm:$0xf]
      %v1753 = vld [vmem:[%s1741 + $0x2c] sm:$0xf]
      %v1754 = vld [vmem:[%s1741 + $0x30] sm:$0xf]
      %v1755 = vld [vmem:[%s1741 + $0x34] sm:$0xf]
      %v1756 = vld [vmem:[%s1741 + $0x38] sm:$0xf]
      %v1757 = vld [vmem:[%s1741 + $0x3c] sm:$0xf]
      %v1774 = vunpack.c.l.b16 %v1742
      %v1775 = vunpack.c.l.b16 %v1743
      %v1776 = vunpack.c.l.b16 %v1744
      %v1777 = vunpack.c.l.b16 %v1745
      %v1778 = vunpack.c.l.b16 %v1746
      %v1779 = vunpack.c.l.b16 %v1747
      %v1780 = vunpack.c.l.b16 %v1748
      %v1781 = vunpack.c.l.b16 %v1749
      %v1782 = vunpack.c.l.b16 %v1750
      %v1783 = vunpack.c.l.b16 %v1751
      %v1784 = vunpack.c.l.b16 %v1752
      %v1785 = vunpack.c.l.b16 %v1753
      %v1786 = vunpack.c.l.b16 %v1754
      %v1787 = vunpack.c.l.b16 %v1755
      %v1788 = vunpack.c.l.b16 %v1756
      %v1789 = vunpack.c.l.b16 %v1757
      %v1790 = vpack.c.b16 %v1775, %v1774
      %v1791 = vpack.c.b16 %v1777, %v1776
      %v1792 = vpack.c.b16 %v1779, %v1778
      %v1793 = vpack.c.b16 %v1781, %v1780
      %v1794 = vpack.c.b16 %v1783, %v1782
      %v1795 = vpack.c.b16 %v1785, %v1784
      %v1796 = vpack.c.b16 %v1787, %v1786
      %v1797 = vpack.c.b16 %v1789, %v1788
      %1806 = vmatprep.subr.bf16.mxu0 0
      %1807 = vmatpush1.bf16.msra.mxu0 %v1790
      %1808 = vmatprep.subr.bf16.mxu0 0
      %1809 = vmatpush1.bf16.msra.mxu0 %v1791
      %1810 = vmatprep.subr.bf16.mxu0 0
      %1811 = vmatpush1.bf16.msra.mxu0 %v1792
      %1812 = vmatprep.subr.bf16.mxu0 0
      %1813 = vmatpush1.bf16.msra.mxu0 %v1793
      %1814 = vmatprep.subr.bf16.mxu0 0
      %1815 = vmatpush1.bf16.msra.mxu0 %v1794
      %1816 = vmatprep.subr.bf16.mxu0 0
      %1817 = vmatpush1.bf16.msra.mxu0 %v1795
      %1818 = vmatprep.subr.bf16.mxu0 0
      %1819 = vmatpush1.bf16.msra.mxu0 %v1796
      %1820 = vmatprep.subr.bf16.mxu0 0
      %1821 = vmatpush1.bf16.msra.mxu0 %v1797
      %1822 = vmatprep.subr.bf16.mxu0 0
      %1823 = vmatpush1.bf16.msra.mxu0 0
      %1824 = vmatprep.subr.bf16.mxu0 0
      %1825 = vmatpush1.bf16.msra.mxu0 0
      %1826 = vmatprep.subr.bf16.mxu0 0
      %1827 = vmatpush1.bf16.msra.mxu0 0
      %1828 = vmatprep.subr.bf16.mxu0 0
      %1829 = vmatpush1.bf16.msra.mxu0 0
      %1830 = vmatprep.subr.bf16.mxu0 0
      %1831 = vmatpush1.bf16.msra.mxu0 0
      %1832 = vmatprep.subr.bf16.mxu0 0
      %1833 = vmatpush1.bf16.msra.mxu0 0
      %1834 = vmatprep.subr.bf16.mxu0 0
      %1835 = vmatpush1.bf16.msra.mxu0 0
      %1836 = vmatprep.subr.bf16.mxu0 0
      %1837 = vmatpush1.bf16.msra.mxu0 0
      %1838 = vmatprep.mubr.bf16.mxu0 0
      %1839 = vmatmul.mubr.bf16.gmra.mrb[0].mxu0 %v353
      %v1840 = vpop.f32.mrb[0].mxu0
      %v1841 = vadd.f32 0.0, %v1840
      %v1842 = vpop.f32.mrb[0].mxu0
      %v1843 = vpop.f32.mrb[0].mxu0
      %v1844 = vpop.f32.mrb[0].mxu0
      %1845 = vdwg.mxu0
      %s1846 = scalar_lea.vmem %s4, 192
      %v1847 = vld [vmem:[%s1846] sm:$0xf]
      %v1848 = vld [vmem:[%s1846 + $0x4] sm:$0xf]
      %v1849 = vld [vmem:[%s1846 + $0x8] sm:$0xf]
      %v1850 = vld [vmem:[%s1846 + $0xc] sm:$0xf]
      %v1851 = vld [vmem:[%s1846 + $0x10] sm:$0xf]
      %v1852 = vld [vmem:[%s1846 + $0x14] sm:$0xf]
      %v1853 = vld [vmem:[%s1846 + $0x18] sm:$0xf]
      %v1854 = vld [vmem:[%s1846 + $0x1c] sm:$0xf]
      %v1855 = vld [vmem:[%s1846 + $0x20] sm:$0xf]
      %v1856 = vld [vmem:[%s1846 + $0x24] sm:$0xf]
      %v1857 = vld [vmem:[%s1846 + $0x28] sm:$0xf]
      %v1858 = vld [vmem:[%s1846 + $0x2c] sm:$0xf]
      %v1859 = vld [vmem:[%s1846 + $0x30] sm:$0xf]
      %v1860 = vld [vmem:[%s1846 + $0x34] sm:$0xf]
      %v1861 = vld [vmem:[%s1846 + $0x38] sm:$0xf]
      %v1862 = vld [vmem:[%s1846 + $0x3c] sm:$0xf]
      %v1879 = vunpack.c.l.b16 %v1847
      %v1880 = vunpack.c.l.b16 %v1848
      %v1881 = vunpack.c.l.b16 %v1849
      %v1882 = vunpack.c.l.b16 %v1850
      %v1883 = vunpack.c.l.b16 %v1851
      %v1884 = vunpack.c.l.b16 %v1852
      %v1885 = vunpack.c.l.b16 %v1853
      %v1886 = vunpack.c.l.b16 %v1854
      %v1887 = vunpack.c.l.b16 %v1855
      %v1888 = vunpack.c.l.b16 %v1856
      %v1889 = vunpack.c.l.b16 %v1857
      %v1890 = vunpack.c.l.b16 %v1858
      %v1891 = vunpack.c.l.b16 %v1859
      %v1892 = vunpack.c.l.b16 %v1860
      %v1893 = vunpack.c.l.b16 %v1861
      %v1894 = vunpack.c.l.b16 %v1862
      %v1895 = vpack.c.b16 %v1880, %v1879
      %v1896 = vpack.c.b16 %v1882, %v1881
      %v1897 = vpack.c.b16 %v1884, %v1883
      %v1898 = vpack.c.b16 %v1886, %v1885
      %v1899 = vpack.c.b16 %v1888, %v1887
      %v1900 = vpack.c.b16 %v1890, %v1889
      %v1901 = vpack.c.b16 %v1892, %v1891
      %v1902 = vpack.c.b16 %v1894, %v1893
      %1911 = vmatprep.subr.bf16.mxu0 0
      %1912 = vmatpush1.bf16.msra.mxu0 %v1895
      %1913 = vmatprep.subr.bf16.mxu0 0
      %1914 = vmatpush1.bf16.msra.mxu0 %v1896
      %1915 = vmatprep.subr.bf16.mxu0 0
      %1916 = vmatpush1.bf16.msra.mxu0 %v1897
      %1917 = vmatprep.subr.bf16.mxu0 0
      %1918 = vmatpush1.bf16.msra.mxu0 %v1898
      %1919 = vmatprep.subr.bf16.mxu0 0
      %1920 = vmatpush1.bf16.msra.mxu0 %v1899
      %1921 = vmatprep.subr.bf16.mxu0 0
      %1922 = vmatpush1.bf16.msra.mxu0 %v1900
      %1923 = vmatprep.subr.bf16.mxu0 0
      %1924 = vmatpush1.bf16.msra.mxu0 %v1901
      %1925 = vmatprep.subr.bf16.mxu0 0
      %1926 = vmatpush1.bf16.msra.mxu0 %v1902
      %1927 = vmatprep.subr.bf16.mxu0 0
      %1928 = vmatpush1.bf16.msra.mxu0 0
      %1929 = vmatprep.subr.bf16.mxu0 0
      %1930 = vmatpush1.bf16.msra.mxu0 0
      %1931 = vmatprep.subr.bf16.mxu0 0
      %1932 = vmatpush1.bf16.msra.mxu0 0
      %1933 = vmatprep.subr.bf16.mxu0 0
      %1934 = vmatpush1.bf16.msra.mxu0 0
      %1935 = vmatprep.subr.bf16.mxu0 0
      %1936 = vmatpush1.bf16.msra.mxu0 0
      %1937 = vmatprep.subr.bf16.mxu0 0
      %1938 = vmatpush1.bf16.msra.mxu0 0
      %1939 = vmatprep.subr.bf16.mxu0 0
      %1940 = vmatpush1.bf16.msra.mxu0 0
      %1941 = vmatprep.subr.bf16.mxu0 0
      %1942 = vmatpush1.bf16.msra.mxu0 0
      %1943 = vmatprep.mubr.bf16.mxu0 0
      %1944 = vmatmul.mubr.bf16.gmra.mrb[0].mxu0 %v353
      %v1945 = vpop.f32.mrb[0].mxu0
      %v1946 = vadd.f32 0.0, %v1945
      %v1947 = vpop.f32.mrb[0].mxu0
      %v1948 = vpop.f32.mrb[0].mxu0
      %v1949 = vpop.f32.mrb[0].mxu0
      %1950 = vdwg.mxu0
      %v1951 = vpack.c.bf16 %v1740, %v1740
      %v1952 = vpack.c.bf16 %v1841, %v1841
      %v1954 = vsel %vm669, %v1951, 0
      %v1957 = vsel %vm669, %v1952, 0
      %1959 = vmatprep.subr.bf16.mxu0 0
      %1960 = vmatpush1.bf16.xpose.msra.mxu0 %v1957
      %1961 = vmatprep.subr.bf16.mxu0 0
      %1962 = vmatpush1.bf16.xpose.msra.mxu0 0
      %1963 = vmatprep.subr.bf16.mxu0 0
      %1964 = vmatpush1.bf16.xpose.msra.mxu0 0
      %1965 = vmatprep.subr.bf16.mxu0 0
      %1966 = vmatpush1.bf16.xpose.msra.mxu0 0
      %1967 = vmatprep.subr.bf16.mxu0 0
      %1968 = vmatpush1.bf16.xpose.msra.mxu0 0
      %1969 = vmatprep.subr.bf16.mxu0 0
      %1970 = vmatpush1.bf16.xpose.msra.mxu0 0
      %1971 = vmatprep.subr.bf16.mxu0 0
      %1972 = vmatpush1.bf16.xpose.msra.mxu0 0
      %1973 = vmatprep.subr.bf16.mxu0 0
      %1974 = vmatpush1.bf16.xpose.msra.mxu0 0
      %1975 = vmatprep.subr.bf16.mxu0 0
      %1976 = vmatpush1.bf16.xpose.msra.mxu0 0
      %1977 = vmatprep.subr.bf16.mxu0 0
      %1978 = vmatpush1.bf16.xpose.msra.mxu0 0
      %1979 = vmatprep.subr.bf16.mxu0 0
      %1980 = vmatpush1.bf16.xpose.msra.mxu0 0
      %1981 = vmatprep.subr.bf16.mxu0 0
      %1982 = vmatpush1.bf16.xpose.msra.mxu0 0
      %1983 = vmatprep.subr.bf16.mxu0 0
      %1984 = vmatpush1.bf16.xpose.msra.mxu0 0
      %1985 = vmatprep.subr.bf16.mxu0 0
      %1986 = vmatpush1.bf16.xpose.msra.mxu0 0
      %1987 = vmatprep.subr.bf16.mxu0 0
      %1988 = vmatpush1.bf16.xpose.msra.mxu0 0
      %1989 = vmatprep.subr.bf16.mxu0 0
      %1990 = vmatpush1.bf16.xpose.msra.mxu0 0
      %1991 = vmatprep.mubr.bf16.mxu0 0
      %1992 = vmatmul.mubr.bf16.gmra.mrb[0].mxu0 %v1954
      %v1993 = vpop.f32.mrb[0].mxu0
      %v1994 = vadd.f32 0.0, %v1993
      %v1995 = vpop.f32.mrb[0].mxu0
      %v1996 = vpop.f32.mrb[0].mxu0
      %v1997 = vpop.f32.mrb[0].mxu0
      %1998 = vdwg.mxu0
      %v1999 = vsel %vm669, %v1994, -inf
      %2000 = vmax.xlane.f32.xlu0 %v1999
      %v2001 = vpop.xlane.xlu0 %2000
      %v2002 = vsub.f32 %v1994, %v2001
      %v2003 = vmul.f32 %v2002, 1.442695
      %v2004 = vpow.pop %v2003
      %v2005 = vsel %vm669, %v2004, 0.0
      %2006 = vadd.xlane.f32.xlu0 %v2005
      %v2007 = vpop.xlane.xlu0 %2006
      %v2008 = vrcp.pop %v2007
      %v2009 = vmul.f32 %v2004, %v2008
      %v2010 = vpack.c.bf16 %v2009, %v2009
      %v2011 = vpack.c.bf16 %v1946, %v1946
      %v2013 = vsel %vm669, %v2010, 0
      %v2016 = vsel %vm732, %v2011, 0
      %2018 = vmatprep.subr.bf16.mxu0 0
      %2019 = vmatpush1.bf16.msra.mxu0 %v2016
      %2020 = vmatprep.subr.bf16.mxu0 0
      %2021 = vmatpush1.bf16.msra.mxu0 0
      %2022 = vmatprep.subr.bf16.mxu0 0
      %2023 = vmatpush1.bf16.msra.mxu0 0
      %2024 = vmatprep.subr.bf16.mxu0 0
      %2025 = vmatpush1.bf16.msra.mxu0 0
      %2026 = vmatprep.subr.bf16.mxu0 0
      %2027 = vmatpush1.bf16.msra.mxu0 0
      %2028 = vmatprep.subr.bf16.mxu0 0
      %2029 = vmatpush1.bf16.msra.mxu0 0
      %2030 = vmatprep.subr.bf16.mxu0 0
      %2031 = vmatpush1.bf16.msra.mxu0 0
      %2032 = vmatprep.subr.bf16.mxu0 0
      %2033 = vmatpush1.bf16.msra.mxu0 0
      %2034 = vmatprep.subr.bf16.mxu0 0
      %2035 = vmatpush1.bf16.msra.mxu0 0
      %2036 = vmatprep.subr.bf16.mxu0 0
      %2037 = vmatpush1.bf16.msra.mxu0 0
      %2038 = vmatprep.subr.bf16.mxu0 0
      %2039 = vmatpush1.bf16.msra.mxu0 0
      %2040 = vmatprep.subr.bf16.mxu0 0
      %2041 = vmatpush1.bf16.msra.mxu0 0
      %2042 = vmatprep.subr.bf16.mxu0 0
      %2043 = vmatpush1.bf16.msra.mxu0 0
      %2044 = vmatprep.subr.bf16.mxu0 0
      %2045 = vmatpush1.bf16.msra.mxu0 0
      %2046 = vmatprep.subr.bf16.mxu0 0
      %2047 = vmatpush1.bf16.msra.mxu0 0
      %2048 = vmatprep.subr.bf16.mxu0 0
      %2049 = vmatpush1.bf16.msra.mxu0 0
      %2050 = vmatprep.mubr.bf16.mxu0 0
      %2051 = vmatmul.mubr.bf16.gmra.mrb[0].mxu0 %v2013
      %v2052 = vpop.f32.mrb[0].mxu0
      %v2053 = vadd.f32 0.0, %v2052
      %v2054 = vpop.f32.mrb[0].mxu0
      %v2055 = vpop.f32.mrb[0].mxu0
      %v2056 = vpop.f32.mrb[0].mxu0
      %2057 = vdwg.mxu0
      %2059 = vrot.lane.b32.xlu0 %v2053, 24
      %v2060 = vpop.permute.xlu0 %2059
      %vm2062 = vcmask 261312
      %2063 = vst.msk [vmem:[#allocation2] sm:$0xff] %vm2062, %v2060
      %v2064 = vld [vmem:[#allocation2] sm:$0xff]
      %v2065 = vpack.c.bf16 %v2064, %v2064
      %v2066 = vld [vmem:[%s5] sm:$0xf]
      %v2067 = vld [vmem:[%s5 + $0x4] sm:$0xf]
      %v2068 = vld [vmem:[%s5 + $0x8] sm:$0xf]
      %v2069 = vld [vmem:[%s5 + $0xc] sm:$0xf]
      %v2074 = vunpack.c.l.b16 %v2066
      %v2075 = vunpack.c.l.b16 %v2067
      %v2076 = vunpack.c.l.b16 %v2068
      %v2077 = vunpack.c.l.b16 %v2069
      %v2078 = vpack.c.b16 %v2075, %v2074
      %v2079 = vpack.c.b16 %v2077, %v2076
      %vm2082 = vcmask 261120
      %v2084 = vsel %vm2082, %v2065, 0
      %2086 = vmatprep.subr.bf16.mxu0 0
      %2087 = vmatpush1.bf16.msra.mxu0 %v2078
      %2088 = vmatprep.subr.bf16.mxu0 0
      %2089 = vmatpush1.bf16.msra.mxu0 %v2079
      %2090 = vmatprep.subr.bf16.mxu0 0
      %2091 = vmatpush1.bf16.msra.mxu0 0
      %2092 = vmatprep.subr.bf16.mxu0 0
      %2093 = vmatpush1.bf16.msra.mxu0 0
      %2094 = vmatprep.subr.bf16.mxu0 0
      %2095 = vmatpush1.bf16.msra.mxu0 0
      %2096 = vmatprep.subr.bf16.mxu0 0
      %2097 = vmatpush1.bf16.msra.mxu0 0
      %2098 = vmatprep.subr.bf16.mxu0 0
      %2099 = vmatpush1.bf16.msra.mxu0 0
      %2100 = vmatprep.subr.bf16.mxu0 0
      %2101 = vmatpush1.bf16.msra.mxu0 0
      %2102 = vmatprep.subr.bf16.mxu0 0
      %2103 = vmatpush1.bf16.msra.mxu0 0
      %2104 = vmatprep.subr.bf16.mxu0 0
      %2105 = vmatpush1.bf16.msra.mxu0 0
      %2106 = vmatprep.subr.bf16.mxu0 0
      %2107 = vmatpush1.bf16.msra.mxu0 0
      %2108 = vmatprep.subr.bf16.mxu0 0
      %2109 = vmatpush1.bf16.msra.mxu0 0
      %2110 = vmatprep.subr.bf16.mxu0 0
      %2111 = vmatpush1.bf16.msra.mxu0 0
      %2112 = vmatprep.subr.bf16.mxu0 0
      %2113 = vmatpush1.bf16.msra.mxu0 0
      %2114 = vmatprep.subr.bf16.mxu0 0
      %2115 = vmatpush1.bf16.msra.mxu0 0
      %2116 = vmatprep.subr.bf16.mxu0 0
      %2117 = vmatpush1.bf16.msra.mxu0 0
      %2118 = vmatprep.mubr.bf16.mxu0 0
      %2119 = vmatmul.mubr.bf16.gmra.mrb[0].mxu0 %v2084
      %v2120 = vpop.f32.mrb[0].mxu0
      %v2121 = vadd.f32 %v350, %v2120
      %v2122 = vpop.f32.mrb[0].mxu0
      %v2123 = vpop.f32.mrb[0].mxu0
      %v2124 = vpop.f32.mrb[0].mxu0
      %2125 = vdwg.mxu0
      %v2126 = vld [vmem:[%s6] sm:$0x1]
      %v2127 = vld [vmem:[%s7] sm:$0x1]
      %2128 = vadd.xlane.f32.xlu0 %v2121
      %v2129 = vpop.xlane.xlu0 %2128
      %v2130 = vmul.f32 %v2129, 0.03125
      %v2131 = vsub.f32 %v2121, %v2130
      %v2132 = vlaneseq
      %v2133 = vand.u32 %v2132, 127
      %vm2134 = vcmp.lt.s32.totalorder %v2133, 32
      %v2135 = vsel %vm2134, 1, 0
      %vm2136 = vcmp.eq.s32.totalorder %v2135, 1
      %v2137 = vsel %vm2136, %v2131, 0.0
      %v2138 = vmul.f32 %v2137, %v2137
      %2139 = vadd.xlane.f32.xlu0 %v2138
      %v2140 = vpop.xlane.xlu0 %2139
      %v2141 = vmul.f32 %v2140, 0.03125
      %v2142 = vadd.f32 %v2141, 1e-05
      %v2143 = vrsqrt.pop %v2142
      %v2144 = vmul.f32 %v2137, %v2143
      %v2146 = vlaneseq
      %v2147 = vshrl.u32 %v2146, 7
      %v2148 = vsub.s32 0, %v2147
      %v2149 = vrot.slane %v2126, %v2148
      %v2151 = vmul.f32 %v2144, %v2149
      %v2153 = vlaneseq
      %v2154 = vshrl.u32 %v2153, 7
      %v2155 = vsub.s32 0, %v2154
      %v2156 = vrot.slane %v2127, %v2155
      %v2158 = vadd.f32 %v2151, %v2156
      %2159 = vst [vmem:[%s348] sm:$0xff] %v2158
      %p2160 = scmp.lt.s32.totalorder %s23, 1
      %s2161 = scalar_select %p2160, %s23, 1
      %p2162 = scmp.lt.s32.totalorder %s24, 0
      %s2163 = scalar_select %p2162, %s24, 0
      %s2164 = sadd.s32 %s2163, %s2161
      %s2165 = smul.addr %s2164, 8
      %s2166 = scalar_lea.vmem %s8, %s2165
      // Predicated region
      $region53: #{decoder_forward.6} parent=51 // pred_check
        %p2167 = pneg %p231
      $region54: #{decoder_forward.6} parent=51 // pred_check_branch
        %2169 = sbr.rel (%p2167) target = $region56
      $region55: #{decoder_forward.6} parent=51 // pred_region
        _
      $region56: #{decoder_forward.6} parent=51 // pred_fallthru
        _
    $region52: #{decoder_forward.6} parent=5 // pred_fallthru
      _
    %p2170 = scmp.le.s32.totalorder 2, %s14
    // Predicated region
    $region57: #{decoder_forward.6} parent=5 // pred_check
      %p2171 = pneg %p2170
    $region58: #{decoder_forward.6} parent=5 // pred_check_branch
      %2173 = sbr.rel (%p2171) target = $region60
    $region59: #{decoder_forward.6} parent=5 // pred_region
      %s2174 = ssub.s32 %s14, 2
      // Predicated region
      $region61: #{decoder_forward.6} parent=59 // pred_check
        %p2175 = pneg %p237
      $region62: #{decoder_forward.6} parent=59 // pred_check_branch
        %2177 = sbr.rel (%p2175) target = $region64
      $region63: #{decoder_forward.6} parent=59 // pred_region
        %p2178 = scmp.lt.s32.totalorder %s25, 1
        %s2179 = scalar_select %p2178, %s25, 1
        %p2180 = scmp.lt.s32.totalorder %s26, 0
        %s2181 = scalar_select %p2180, %s26, 0
        %s2182 = sadd.s32 %s2181, %s2179
        %s2183 = smul.addr %s2182, 8
        %s2184 = scalar_lea.vmem %s8, %s2183
      $region64: #{decoder_forward.6} parent=59 // pred_fallthru
        _
    $region60: #{decoder_forward.6} parent=5 // pred_fallthru
      _
  $region6: #{decoder_forward.6} parent=0 // loop_footer
    %s18 = sadd.s32 1, %s14
  $region7: #{decoder_forward.6} parent=0 // loop_footer_branch
    %13 = sbr.rel target = $region3
  $region8: #{decoder_forward.6} parent=0 // loop_exit
    _

</llo_original>
